<compile_context>
chip_gen: v5e
topology: v5e:2x2
jax: 0.10.0
libtpu: 0.0.40
codegen_flags: <defaults>
</compile_context>

<pallas_src>
import jax
import jax.numpy as jnp
from jax import lax
from jax.experimental import pallas as pl
from jax.experimental.pallas import tpu as pltpu

H = 128          # LSTM hidden size (fixed by the module)
OUT = 16         # fc output size
G = 8 * H        # fused gate width: 4 gates x 2 directions


def _bilstm_fc_kernel(x_ref, len_ref, w_in_ref, b_in_ref, whh_ref,
                      w_fc_ref, b_fc_ref, out_ref, xproj_ref):
    """Fused bidirectional-LSTM recurrence + fc.

    x_ref:     (T*Bp, D)  bf16  time-major rows (row = t*Bp + b)
    len_ref:   (Bp, 1)    int32 sequence lengths (padded rows have length 0)
    w_in_ref:  (D, 8H)    bf16  input weights, both dirs, gate-major interleaved
    b_in_ref:  (1, 8H)    f32   combined bias (b_ih + b_hh), both dirs
    whh_ref:   (2H, 8H)   bf16  block-diagonal recurrent weights [fwd | bwd]
    w_fc_ref:  (2H, OUT)  f32   fc weight (already transposed)
    b_fc_ref:  (1, OUT)   f32
    out_ref:   (Bp, OUT)  f32
    xproj_ref: (T*Bp, 8H) f32   VMEM scratch holding the hoisted input projection
    """
    TB = x_ref.shape[0]
    Bp = len_ref.shape[0]
    T = TB // Bp

    # (1) Hoisted input projection: one MXU-efficient matmul covering every
    #     timestep and BOTH directions, bias folded in, f32 accumulation.
    xproj_ref[...] = (
        jnp.dot(x_ref[...], w_in_ref[...], preferred_element_type=jnp.float32)
        + b_in_ref[...])

    # Loop-invariant loads, hoisted out of the recurrence.
    whh = whh_ref[...]                               # (2H, 8H) bf16
    lengths = len_ref[...]                           # (Bp, 1) int32

    # Lane-group selectors (hoisted: JAX does not CSE broadcast_in_dim).
    gate_col = lax.broadcasted_iota(jnp.int32, (1, G), 1)
    fwd_gate_lane = (gate_col % (2 * H)) < H         # fwd gate column groups
    state_col = lax.broadcasted_iota(jnp.int32, (1, 2 * H), 1)
    fwd_state_lane = state_col < H                   # fwd half of [h_f | h_b]

    def step(i, carry):
        # (2) Fused fwd+bwd step: forward works on t_f = i while backward works
        #     on t_b = T-1-i; one block-diagonal K=2H matmul feeds both sets of
        #     gates so the two directions' serial latencies overlap.
        h, c = carry                                 # (Bp, 2H) f32 each
        t_f = i
        t_b = T - 1 - i
        r_f = t_f * Bp
        r_b = t_b * Bp
        if not isinstance(i, int):                   # dynamic-start hint
            r_f = pl.multiple_of(r_f, 8)
            r_b = pl.multiple_of(r_b, 8)
        xp_f = xproj_ref[pl.ds(r_f, Bp), :]          # (Bp, 8H) f32
        xp_b = xproj_ref[pl.ds(r_b, Bp), :]
        xp = jnp.where(fwd_gate_lane, xp_f, xp_b)    # pick each dir's own time
        gates = xp + jnp.dot(h.astype(jnp.bfloat16), whh,
                             preferred_element_type=jnp.float32)
        # Gate-major column layout: [i_f,i_b | f_f,f_b | g_f,g_b | o_f,o_b]
        i_g = jax.nn.sigmoid(gates[:, 0 * 2 * H:1 * 2 * H])
        f_g = jax.nn.sigmoid(gates[:, 1 * 2 * H:2 * 2 * H])
        g_g = jnp.tanh(gates[:, 2 * 2 * H:3 * 2 * H])
        o_g = jax.nn.sigmoid(gates[:, 3 * 2 * H:4 * 2 * H])
        c_new = f_g * c + i_g * g_g
        h_new = o_g * jnp.tanh(c_new)
        # Packed-sequence semantics: each direction only advances its own half
        # of the state on its own valid steps.  One mask, reused for h and c.
        t_sel = jnp.where(fwd_state_lane, t_f, t_b)  # (1, 2H) int32
        m = (t_sel < lengths).astype(jnp.float32)    # (Bp, 2H)
        c = c + m * (c_new - c)
        h = h + m * (h_new - h)
        return h, c

    h0 = jnp.zeros((Bp, 2 * H), jnp.float32)
    c0 = jnp.zeros((Bp, 2 * H), jnp.float32)

    # (3) Unrolled recurrence.  T is static: full unroll for short sequences
    #     (every slice start becomes a compile-time constant and the scheduler
    #     sees across iterations); rolled fallback for long sequences.
    if T <= 64:
        carry = (h0, c0)
        for i in range(T):
            carry = step(i, carry)
        h_fin = carry[0]
    else:
        h_fin, _ = lax.fori_loop(0, T, step, (h0, c0), unroll=4)

    # dropout(0.5) is identity in eval mode.
    # relu(fc(cat([h_fwd, h_bwd], 1))): h_fin already is [h_fwd | h_bwd].
    y = (jnp.dot(h_fin, w_fc_ref[...], preferred_element_type=jnp.float32)
         + b_fc_ref[...])
    out_ref[...] = jnp.maximum(y, 0.0)


def _interleave_gates(fwd, bwd):
    """(K, 4H) fwd / bwd gate blocks (PyTorch order i,f,g,o along columns) ->
    (K, 8H) gate-major interleaved columns [i_f,i_b, f_f,f_b, g_f,g_b, o_f,o_b]."""
    K = fwd.shape[0]
    return jnp.stack([fwd.reshape(K, 4, H), bwd.reshape(K, 4, H)],
                     axis=2).reshape(K, 8 * H)


@jax.jit
def ball_to_ball_forward(x, lengths, params):
    """x: (B, T, D) float32 (batch_first, like PyTorch). lengths: (B,) int."""
    B, T, D = x.shape
    (wih_f, whh_f, bih_f, bhh_f,
     wih_b, whh_b, bih_b, bhh_b,
     fc_w, fc_b) = params

    # Pad batch to a sublane multiple so every in-kernel slice is (8,128)-clean.
    Bp = ((B + 7) // 8) * 8
    x_p = jnp.pad(x.astype(jnp.float32), ((0, Bp - B), (0, 0), (0, 0)))
    len_p = jnp.pad(lengths.astype(jnp.int32), (0, Bp - B)).reshape(Bp, 1)

    # Time-major flattened rows (row = t*Bp + b); bf16 MXU operand.
    x_tm = jnp.transpose(x_p, (1, 0, 2)).reshape(T * Bp, D).astype(jnp.bfloat16)

    # Combined input weights / bias for both directions (gate-major interleave)
    # and a block-diagonal recurrent weight so the fused step is ONE K=2H matmul.
    w_in = _interleave_gates(wih_f.T, wih_b.T).astype(jnp.bfloat16)        # (D, 8H)
    b_in = _interleave_gates((bih_f + bhh_f).reshape(1, 4 * H),
                             (bih_b + bhh_b).reshape(1, 4 * H))            # (1, 8H) f32
    zeros_h = jnp.zeros((H, 4 * H), jnp.float32)
    whh = jnp.concatenate(
        [_interleave_gates(whh_f.T, zeros_h),
         _interleave_gates(zeros_h, whh_b.T)],
        axis=0).astype(jnp.bfloat16)                                       # (2H, 8H)
    w_fc = fc_w.T.astype(jnp.float32)                                      # (2H, OUT)
    b_fc = fc_b.reshape(1, OUT).astype(jnp.float32)

    args = (x_tm, len_p, w_in, b_in, whh, w_fc, b_fc)
    out = pl.pallas_call(
        _bilstm_fc_kernel,
        out_shape=jax.ShapeDtypeStruct((Bp, OUT), jnp.float32),
        in_specs=[pl.BlockSpec(memory_space=pltpu.MemorySpace.VMEM)] * len(args),
        out_specs=pl.BlockSpec(memory_space=pltpu.MemorySpace.VMEM),
        # xproj scratch: T*Bp rows x 8H f32 (~256 KiB at these shapes).
        # TODO(synk): for large B or T, tile the batch over a "parallel" grid
        # axis so x/xproj stay within v7x's 64 MiB VMEM (32 MiB default scoped).
        scratch_shapes=[pltpu.VMEM((T * Bp, G), jnp.float32)],
        compiler_params=pltpu.CompilerParams(vmem_limit_bytes=32 * 1024 * 1024),
    )(*args)
    return out[:B]


def init_params(key, input_dim):
    """Deterministic init matching PyTorch parameter shapes (uniform +-1/sqrt(H))."""
    ks = jax.random.split(key, 10)
    bound = 1.0 / jnp.sqrt(jnp.float32(H))

    def u(k, shape):
        return jax.random.uniform(k, shape, jnp.float32, -bound, bound)

    wih_f = u(ks[0], (4 * H, input_dim))
    whh_f = u(ks[1], (4 * H, H))
    bih_f = u(ks[2], (4 * H,))
    bhh_f = u(ks[3], (4 * H,))
    wih_b = u(ks[4], (4 * H, input_dim))
    whh_b = u(ks[5], (4 * H, H))
    bih_b = u(ks[6], (4 * H,))
    bhh_b = u(ks[7], (4 * H,))
    fc_w = u(ks[8], (OUT, 2 * H))
    fc_b = u(ks[9], (OUT,))
    return (wih_f, whh_f, bih_f, bhh_f,
            wih_b, whh_b, bih_b, bhh_b,
            fc_w, fc_b)


def _reference_forward(x, lengths, params, mxu_dtype=jnp.float32):
    """Pure-JAX reference of the PyTorch semantics.  `mxu_dtype` optionally
    mirrors the kernel's bf16 matmul operands (accumulation stays f32)."""
    (wih_f, whh_f, bih_f, bhh_f,
     wih_b, whh_b, bih_b, bhh_b,
     fc_w, fc_b) = params
    B, T, D = x.shape
    lengths = lengths.astype(jnp.int32).reshape(B, 1)

    def run_direction(wih, whh, b, reverse):
        wih_c = wih.astype(mxu_dtype)
        whh_c = whh.astype(mxu_dtype)

        def step(carry, inp):
            h, c = carry
            x_t, t = inp
            gates = (jnp.dot(x_t.astype(mxu_dtype), wih_c.T,
                             preferred_element_type=jnp.float32)
                     + jnp.dot(h.astype(mxu_dtype), whh_c.T,
                               preferred_element_type=jnp.float32)
                     + b)
            i = jax.nn.sigmoid(gates[:, :H])
            f = jax.nn.sigmoid(gates[:, H:2 * H])
            g = jnp.tanh(gates[:, 2 * H:3 * H])
            o = jax.nn.sigmoid(gates[:, 3 * H:])
            c_new = f * c + i * g
            h_new = o * jnp.tanh(c_new)
            mask = t < lengths
            return (jnp.where(mask, h_new, h), jnp.where(mask, c_new, c)), None

        h0 = jnp.zeros((B, H), jnp.float32)
        c0 = jnp.zeros((B, H), jnp.float32)
        xs = jnp.transpose(x, (1, 0, 2))
        ts = jnp.arange(T)
        if reverse:
            xs, ts = xs[::-1], ts[::-1]
        (h, _), _ = lax.scan(step, (h0, c0), (xs, ts))
        return h

    h_f = run_direction(wih_f, whh_f, bih_f + bhh_f, reverse=False)
    h_b = run_direction(wih_b, whh_b, bih_b + bhh_b, reverse=True)
    hn = jnp.concatenate([h_f, h_b], axis=1)
    return jnp.maximum(hn @ fc_w.T + fc_b, 0.0)


if __name__ == "__main__":
    key = jax.random.PRNGKey(0)
    k_x, k_p = jax.random.split(key)

    B, T, D = 2, 8, 4                 # small shapes: batch=2, seq=8, input_dim=4
    x = jax.random.normal(k_x, (B, T, D), jnp.float32)
    lengths = jnp.array([8, 5], jnp.int32)   # variable lengths (packed semantics)
    params = init_params(k_p, D)

    out = ball_to_ball_forward(x, lengths, params)
    jax.block_until_ready(out)
    assert out.shape == (B, OUT)

    # Logic check: reference using the same bf16 MXU operand dtype as the kernel.
    ref_bf16 = _reference_forward(x, lengths, params, mxu_dtype=jnp.bfloat16)
    assert float(jnp.max(jnp.abs(out - ref_bf16))) < 5e-3, "kernel/bf16-reference mismatch"

    # Fidelity check vs. pure-f32 PyTorch semantics (difference = bf16 operand rounding).
    ref_f32 = _reference_forward(x, lengths, params)
    assert float(jnp.max(jnp.abs(out - ref_f32))) < 2e-2, "kernel/f32-reference mismatch"

    print("KERNEL_OK")
</pallas_src>

<mosaic_0001>
module attributes {stable_mosaic.version = 11 : i64} {
  func.func @_bilstm_fc_kernel(%arg0: memref<64x4xbf16, #tpu.memory_space<vmem>>, %arg1: memref<8x1xi32, #tpu.memory_space<vmem>>, %arg2: memref<4x1024xbf16, #tpu.memory_space<vmem>>, %arg3: memref<1x1024xf32, #tpu.memory_space<vmem>>, %arg4: memref<256x1024xbf16, #tpu.memory_space<vmem>>, %arg5: memref<256x16xf32, #tpu.memory_space<vmem>>, %arg6: memref<1x16xf32, #tpu.memory_space<vmem>>, %arg7: memref<8x16xf32, #tpu.memory_space<vmem>>, %arg8: memref<64x1024xf32, #tpu.memory_space<vmem>>) attributes {dimension_semantics = [], scalar_prefetch = 0 : i64, scratch_operands = 1 : i64, tpu.core_type = #tpu.core_type<tc>} {
    %c0 = arith.constant 0 : index
    %c0_0 = arith.constant 0 : index
    %0 = vector.load %arg0[%c0, %c0_0] : memref<64x4xbf16, #tpu.memory_space<vmem>>, vector<64x4xbf16>
    %c0_1 = arith.constant 0 : index
    %c0_2 = arith.constant 0 : index
    %1 = vector.load %arg2[%c0_1, %c0_2] : memref<4x1024xbf16, #tpu.memory_space<vmem>>, vector<4x1024xbf16>
    %cst = arith.constant dense<0.000000e+00> : vector<64x1024xf32>
    %2 = tpu.matmul %0, %1, %cst {dimension_numbers = #tpu.dot_dimension_numbers<[1], [0], [0], [1], [0, 0, 1, 1], [], []>} : vector<64x4xbf16>, vector<4x1024xbf16>, vector<64x1024xf32> -> vector<64x1024xf32>
    %c0_3 = arith.constant 0 : index
    %c0_4 = arith.constant 0 : index
    %3 = vector.load %arg3[%c0_3, %c0_4] : memref<1x1024xf32, #tpu.memory_space<vmem>>, vector<1x1024xf32>
    %4 = vector.broadcast %3 : vector<1x1024xf32> to vector<64x1024xf32>
    %5 = arith.addf %2, %4 : vector<64x1024xf32>
    %c0_5 = arith.constant 0 : index
    %c0_6 = arith.constant 0 : index
    %6 = vector.load %arg8[%c0_5, %c0_6] : memref<64x1024xf32, #tpu.memory_space<vmem>>, vector<64x1024xf32>
    tpu.vector_store %arg8[%c0_5, %c0_6], %5 {strides = array<i32>} : memref<64x1024xf32, #tpu.memory_space<vmem>>, vector<64x1024xf32>,
    %c0_7 = arith.constant 0 : index
    %c0_8 = arith.constant 0 : index
    %7 = vector.load %arg4[%c0_7, %c0_8] : memref<256x1024xbf16, #tpu.memory_space<vmem>>, vector<256x1024xbf16>
    %c0_9 = arith.constant 0 : index
    %c0_10 = arith.constant 0 : index
    %8 = vector.load %arg1[%c0_9, %c0_10] : memref<8x1xi32, #tpu.memory_space<vmem>>, vector<8x1xi32>
    %9 = tpu.iota {dimensions = array<i32: 1>} : vector<1x1024xi32>
    %c256_i32 = arith.constant 256 : i32
    %c0_i32 = arith.constant 0 : i32
    %10 = arith.cmpi eq, %c256_i32, %c0_i32 : i32
    %c1_i32 = arith.constant 1 : i32
    %11 = arith.select %10, %c1_i32, %c256_i32 : i32
    %12 = vector.broadcast %11 : i32 to vector<1x1024xi32>
    %13 = arith.remsi %9, %12 : vector<1x1024xi32>
    %c0_i32_11 = arith.constant 0 : i32
    %14 = vector.broadcast %c0_i32_11 : i32 to vector<1x1024xi32>
    %15 = arith.cmpi ne, %13, %14 : vector<1x1024xi32>
    %c0_i32_12 = arith.constant 0 : i32
    %16 = vector.broadcast %c0_i32_12 : i32 to vector<1x1024xi32>
    %17 = arith.cmpi slt, %13, %16 : vector<1x1024xi32>
    %c0_i32_13 = arith.constant 0 : i32
    %18 = arith.cmpi slt, %11, %c0_i32_13 : i32
    %19 = vector.broadcast %18 : i1 to vector<1x1024xi1>
    %20 = vector.broadcast %19 : vector<1x1024xi1> to vector<1x1024xi1>
    %21 = arith.xori %17, %20 : vector<1x1024xi1>
    %22 = arith.andi %21, %15 : vector<1x1024xi1>
    %23 = vector.broadcast %11 : i32 to vector<1x1024xi32>
    %24 = arith.addi %13, %23 : vector<1x1024xi32>
    %25 = arith.select %22, %24, %13 : vector<1x1024xi1>, vector<1x1024xi32>
    %c128_i32 = arith.constant 128 : i32
    %26 = vector.broadcast %c128_i32 : i32 to vector<1x1024xi32>
    %27 = arith.cmpi slt, %25, %26 : vector<1x1024xi32>
    %28 = tpu.iota {dimensions = array<i32: 1>} : vector<1x256xi32>
    %c128_i32_14 = arith.constant 128 : i32
    %29 = vector.broadcast %c128_i32_14 : i32 to vector<1x256xi32>
    %30 = arith.cmpi slt, %28, %29 : vector<1x256xi32>
    %cst_15 = arith.constant 0.000000e+00 : f32
    %31 = vector.broadcast %cst_15 : f32 to vector<8x256xf32>
    %cst_16 = arith.constant 0.000000e+00 : f32
    %32 = vector.broadcast %cst_16 : f32 to vector<8x256xf32>
    %c0_17 = arith.constant 0 : index
    %c0_18 = arith.constant 0 : index
    %33 = vector.load %arg8[%c0_17, %c0_18] : memref<64x1024xf32, #tpu.memory_space<vmem>>, vector<8x1024xf32>
    %c56 = arith.constant 56 : index
    %c0_19 = arith.constant 0 : index
    %34 = vector.load %arg8[%c56, %c0_19] : memref<64x1024xf32, #tpu.memory_space<vmem>>, vector<8x1024xf32>
    %35 = vector.shape_cast %27 : vector<1x1024xi1> to vector<1x1024xi1>
    %36 = vector.broadcast %35 : vector<1x1024xi1> to vector<8x1024xi1>
    %37 = arith.select %36, %33, %34 : vector<8x1024xi1>, vector<8x1024xf32>
    %38 = arith.truncf %31 : vector<8x256xf32> to vector<8x256xbf16>
    %cst_20 = arith.constant dense<0.000000e+00> : vector<8x1024xf32>
    %39 = tpu.matmul %38, %7, %cst_20 {dimension_numbers = #tpu.dot_dimension_numbers<[1], [0], [0], [1], [0, 0, 1, 1], [], []>} : vector<8x256xbf16>, vector<256x1024xbf16>, vector<8x1024xf32> -> vector<8x1024xf32>
    %40 = arith.addf %37, %39 : vector<8x1024xf32>
    %41 = vector.extract_strided_slice %40 {offsets = [0, 0], sizes = [8, 256], strides = [1, 1]} : vector<8x1024xf32> to vector<8x256xf32>
    %42 = arith.negf %41 : vector<8x256xf32>
    %43 = math.exp %42 : vector<8x256xf32>
    %cst_21 = arith.constant 1.000000e+00 : f32
    %44 = vector.broadcast %cst_21 : f32 to vector<8x256xf32>
    %45 = arith.addf %44, %43 : vector<8x256xf32>
    %46 = arith.divf %44, %45 : vector<8x256xf32>
    %47 = vector.extract_strided_slice %40 {offsets = [0, 256], sizes = [8, 256], strides = [1, 1]} : vector<8x1024xf32> to vector<8x256xf32>
    %48 = arith.negf %47 : vector<8x256xf32>
    %49 = math.exp %48 : vector<8x256xf32>
    %cst_22 = arith.constant 1.000000e+00 : f32
    %50 = vector.broadcast %cst_22 : f32 to vector<8x256xf32>
    %51 = arith.addf %50, %49 : vector<8x256xf32>
    %52 = arith.divf %50, %51 : vector<8x256xf32>
    %53 = vector.extract_strided_slice %40 {offsets = [0, 512], sizes = [8, 256], strides = [1, 1]} : vector<8x1024xf32> to vector<8x256xf32>
    %54 = math.tanh %53 : vector<8x256xf32>
    %55 = vector.extract_strided_slice %40 {offsets = [0, 768], sizes = [8, 256], strides = [1, 1]} : vector<8x1024xf32> to vector<8x256xf32>
    %56 = arith.negf %55 : vector<8x256xf32>
    %57 = math.exp %56 : vector<8x256xf32>
    %cst_23 = arith.constant 1.000000e+00 : f32
    %58 = vector.broadcast %cst_23 : f32 to vector<8x256xf32>
    %59 = arith.addf %58, %57 : vector<8x256xf32>
    %60 = arith.divf %58, %59 : vector<8x256xf32>
    %61 = arith.mulf %52, %32 : vector<8x256xf32>
    %62 = arith.mulf %46, %54 : vector<8x256xf32>
    %63 = arith.addf %61, %62 : vector<8x256xf32>
    %64 = math.tanh %63 : vector<8x256xf32>
    %65 = arith.mulf %60, %64 : vector<8x256xf32>
    %c0_i32_24 = arith.constant 0 : i32
    %c7_i32 = arith.constant 7 : i32
    %66 = vector.broadcast %c0_i32_24 : i32 to vector<1x256xi32>
    %67 = vector.broadcast %c7_i32 : i32 to vector<1x256xi32>
    %68 = arith.select %30, %66, %67 : vector<1x256xi1>, vector<1x256xi32>
    %69 = vector.broadcast %68 : vector<1x256xi32> to vector<8x256xi32>
    %70 = vector.broadcast %8 : vector<8x1xi32> to vector<8x256xi32>
    %71 = arith.cmpi slt, %69, %70 : vector<8x256xi32>
    %72 = arith.extui %71 : vector<8x256xi1> to vector<8x256xi32>
    %73 = arith.sitofp %72 : vector<8x256xi32> to vector<8x256xf32>
    %74 = arith.subf %63, %32 : vector<8x256xf32>
    %75 = arith.mulf %73, %74 : vector<8x256xf32>
    %76 = arith.addf %32, %75 : vector<8x256xf32>
    %77 = arith.subf %65, %31 : vector<8x256xf32>
    %78 = arith.mulf %73, %77 : vector<8x256xf32>
    %79 = arith.addf %31, %78 : vector<8x256xf32>
    %c8 = arith.constant 8 : index
    %c0_25 = arith.constant 0 : index
    %80 = vector.load %arg8[%c8, %c0_25] : memref<64x1024xf32, #tpu.memory_space<vmem>>, vector<8x1024xf32>
    %c48 = arith.constant 48 : index
    %c0_26 = arith.constant 0 : index
    %81 = vector.load %arg8[%c48, %c0_26] : memref<64x1024xf32, #tpu.memory_space<vmem>>, vector<8x1024xf32>
    %82 = vector.shape_cast %27 : vector<1x1024xi1> to vector<1x1024xi1>
    %83 = vector.broadcast %82 : vector<1x1024xi1> to vector<8x1024xi1>
    %84 = arith.select %83, %80, %81 : vector<8x1024xi1>, vector<8x1024xf32>
    %85 = arith.truncf %79 : vector<8x256xf32> to vector<8x256xbf16>
    %cst_27 = arith.constant dense<0.000000e+00> : vector<8x1024xf32>
    %86 = tpu.matmul %85, %7, %cst_27 {dimension_numbers = #tpu.dot_dimension_numbers<[1], [0], [0], [1], [0, 0, 1, 1], [], []>} : vector<8x256xbf16>, vector<256x1024xbf16>, vector<8x1024xf32> -> vector<8x1024xf32>
    %87 = arith.addf %84, %86 : vector<8x1024xf32>
    %88 = vector.extract_strided_slice %87 {offsets = [0, 0], sizes = [8, 256], strides = [1, 1]} : vector<8x1024xf32> to vector<8x256xf32>
    %89 = arith.negf %88 : vector<8x256xf32>
    %90 = math.exp %89 : vector<8x256xf32>
    %cst_28 = arith.constant 1.000000e+00 : f32
    %91 = vector.broadcast %cst_28 : f32 to vector<8x256xf32>
    %92 = arith.addf %91, %90 : vector<8x256xf32>
    %93 = arith.divf %91, %92 : vector<8x256xf32>
    %94 = vector.extract_strided_slice %87 {offsets = [0, 256], sizes = [8, 256], strides = [1, 1]} : vector<8x1024xf32> to vector<8x256xf32>
    %95 = arith.negf %94 : vector<8x256xf32>
    %96 = math.exp %95 : vector<8x256xf32>
    %cst_29 = arith.constant 1.000000e+00 : f32
    %97 = vector.broadcast %cst_29 : f32 to vector<8x256xf32>
    %98 = arith.addf %97, %96 : vector<8x256xf32>
    %99 = arith.divf %97, %98 : vector<8x256xf32>
    %100 = vector.extract_strided_slice %87 {offsets = [0, 512], sizes = [8, 256], strides = [1, 1]} : vector<8x1024xf32> to vector<8x256xf32>
    %101 = math.tanh %100 : vector<8x256xf32>
    %102 = vector.extract_strided_slice %87 {offsets = [0, 768], sizes = [8, 256], strides = [1, 1]} : vector<8x1024xf32> to vector<8x256xf32>
    %103 = arith.negf %102 : vector<8x256xf32>
    %104 = math.exp %103 : vector<8x256xf32>
    %cst_30 = arith.constant 1.000000e+00 : f32
    %105 = vector.broadcast %cst_30 : f32 to vector<8x256xf32>
    %106 = arith.addf %105, %104 : vector<8x256xf32>
    %107 = arith.divf %105, %106 : vector<8x256xf32>
    %108 = arith.mulf %99, %76 : vector<8x256xf32>
    %109 = arith.mulf %93, %101 : vector<8x256xf32>
    %110 = arith.addf %108, %109 : vector<8x256xf32>
    %111 = math.tanh %110 : vector<8x256xf32>
    %112 = arith.mulf %107, %111 : vector<8x256xf32>
    %c1_i32_31 = arith.constant 1 : i32
    %c6_i32 = arith.constant 6 : i32
    %113 = vector.broadcast %c1_i32_31 : i32 to vector<1x256xi32>
    %114 = vector.broadcast %c6_i32 : i32 to vector<1x256xi32>
    %115 = arith.select %30, %113, %114 : vector<1x256xi1>, vector<1x256xi32>
    %116 = vector.broadcast %115 : vector<1x256xi32> to vector<8x256xi32>
    %117 = vector.broadcast %8 : vector<8x1xi32> to vector<8x256xi32>
    %118 = arith.cmpi slt, %116, %117 : vector<8x256xi32>
    %119 = arith.extui %118 : vector<8x256xi1> to vector<8x256xi32>
    %120 = arith.sitofp %119 : vector<8x256xi32> to vector<8x256xf32>
    %121 = arith.subf %110, %76 : vector<8x256xf32>
    %122 = arith.mulf %120, %121 : vector<8x256xf32>
    %123 = arith.addf %76, %122 : vector<8x256xf32>
    %124 = arith.subf %112, %79 : vector<8x256xf32>
    %125 = arith.mulf %120, %124 : vector<8x256xf32>
    %126 = arith.addf %79, %125 : vector<8x256xf32>
    %c16 = arith.constant 16 : index
    %c0_32 = arith.constant 0 : index
    %127 = vector.load %arg8[%c16, %c0_32] : memref<64x1024xf32, #tpu.memory_space<vmem>>, vector<8x1024xf32>
    %c40 = arith.constant 40 : index
    %c0_33 = arith.constant 0 : index
    %128 = vector.load %arg8[%c40, %c0_33] : memref<64x1024xf32, #tpu.memory_space<vmem>>, vector<8x1024xf32>
    %129 = vector.shape_cast %27 : vector<1x1024xi1> to vector<1x1024xi1>
    %130 = vector.broadcast %129 : vector<1x1024xi1> to vector<8x1024xi1>
    %131 = arith.select %130, %127, %128 : vector<8x1024xi1>, vector<8x1024xf32>
    %132 = arith.truncf %126 : vector<8x256xf32> to vector<8x256xbf16>
    %cst_34 = arith.constant dense<0.000000e+00> : vector<8x1024xf32>
    %133 = tpu.matmul %132, %7, %cst_34 {dimension_numbers = #tpu.dot_dimension_numbers<[1], [0], [0], [1], [0, 0, 1, 1], [], []>} : vector<8x256xbf16>, vector<256x1024xbf16>, vector<8x1024xf32> -> vector<8x1024xf32>
    %134 = arith.addf %131, %133 : vector<8x1024xf32>
    %135 = vector.extract_strided_slice %134 {offsets = [0, 0], sizes = [8, 256], strides = [1, 1]} : vector<8x1024xf32> to vector<8x256xf32>
    %136 = arith.negf %135 : vector<8x256xf32>
    %137 = math.exp %136 : vector<8x256xf32>
    %cst_35 = arith.constant 1.000000e+00 : f32
    %138 = vector.broadcast %cst_35 : f32 to vector<8x256xf32>
    %139 = arith.addf %138, %137 : vector<8x256xf32>
    %140 = arith.divf %138, %139 : vector<8x256xf32>
    %141 = vector.extract_strided_slice %134 {offsets = [0, 256], sizes = [8, 256], strides = [1, 1]} : vector<8x1024xf32> to vector<8x256xf32>
    %142 = arith.negf %141 : vector<8x256xf32>
    %143 = math.exp %142 : vector<8x256xf32>
    %cst_36 = arith.constant 1.000000e+00 : f32
    %144 = vector.broadcast %cst_36 : f32 to vector<8x256xf32>
    %145 = arith.addf %144, %143 : vector<8x256xf32>
    %146 = arith.divf %144, %145 : vector<8x256xf32>
    %147 = vector.extract_strided_slice %134 {offsets = [0, 512], sizes = [8, 256], strides = [1, 1]} : vector<8x1024xf32> to vector<8x256xf32>
    %148 = math.tanh %147 : vector<8x256xf32>
    %149 = vector.extract_strided_slice %134 {offsets = [0, 768], sizes = [8, 256], strides = [1, 1]} : vector<8x1024xf32> to vector<8x256xf32>
    %150 = arith.negf %149 : vector<8x256xf32>
    %151 = math.exp %150 : vector<8x256xf32>
    %cst_37 = arith.constant 1.000000e+00 : f32
    %152 = vector.broadcast %cst_37 : f32 to vector<8x256xf32>
    %153 = arith.addf %152, %151 : vector<8x256xf32>
    %154 = arith.divf %152, %153 : vector<8x256xf32>
    %155 = arith.mulf %146, %123 : vector<8x256xf32>
    %156 = arith.mulf %140, %148 : vector<8x256xf32>
    %157 = arith.addf %155, %156 : vector<8x256xf32>
    %158 = math.tanh %157 : vector<8x256xf32>
    %159 = arith.mulf %154, %158 : vector<8x256xf32>
    %c2_i32 = arith.constant 2 : i32
    %c5_i32 = arith.constant 5 : i32
    %160 = vector.broadcast %c2_i32 : i32 to vector<1x256xi32>
    %161 = vector.broadcast %c5_i32 : i32 to vector<1x256xi32>
    %162 = arith.select %30, %160, %161 : vector<1x256xi1>, vector<1x256xi32>
    %163 = vector.broadcast %162 : vector<1x256xi32> to vector<8x256xi32>
    %164 = vector.broadcast %8 : vector<8x1xi32> to vector<8x256xi32>
    %165 = arith.cmpi slt, %163, %164 : vector<8x256xi32>
    %166 = arith.extui %165 : vector<8x256xi1> to vector<8x256xi32>
    %167 = arith.sitofp %166 : vector<8x256xi32> to vector<8x256xf32>
    %168 = arith.subf %157, %123 : vector<8x256xf32>
    %169 = arith.mulf %167, %168 : vector<8x256xf32>
    %170 = arith.addf %123, %169 : vector<8x256xf32>
    %171 = arith.subf %159, %126 : vector<8x256xf32>
    %172 = arith.mulf %167, %171 : vector<8x256xf32>
    %173 = arith.addf %126, %172 : vector<8x256xf32>
    %c24 = arith.constant 24 : index
    %c0_38 = arith.constant 0 : index
    %174 = vector.load %arg8[%c24, %c0_38] : memref<64x1024xf32, #tpu.memory_space<vmem>>, vector<8x1024xf32>
    %c32 = arith.constant 32 : index
    %c0_39 = arith.constant 0 : index
    %175 = vector.load %arg8[%c32, %c0_39] : memref<64x1024xf32, #tpu.memory_space<vmem>>, vector<8x1024xf32>
    %176 = vector.shape_cast %27 : vector<1x1024xi1> to vector<1x1024xi1>
    %177 = vector.broadcast %176 : vector<1x1024xi1> to vector<8x1024xi1>
    %178 = arith.select %177, %174, %175 : vector<8x1024xi1>, vector<8x1024xf32>
    %179 = arith.truncf %173 : vector<8x256xf32> to vector<8x256xbf16>
    %cst_40 = arith.constant dense<0.000000e+00> : vector<8x1024xf32>
    %180 = tpu.matmul %179, %7, %cst_40 {dimension_numbers = #tpu.dot_dimension_numbers<[1], [0], [0], [1], [0, 0, 1, 1], [], []>} : vector<8x256xbf16>, vector<256x1024xbf16>, vector<8x1024xf32> -> vector<8x1024xf32>
    %181 = arith.addf %178, %180 : vector<8x1024xf32>
    %182 = vector.extract_strided_slice %181 {offsets = [0, 0], sizes = [8, 256], strides = [1, 1]} : vector<8x1024xf32> to vector<8x256xf32>
    %183 = arith.negf %182 : vector<8x256xf32>
    %184 = math.exp %183 : vector<8x256xf32>
    %cst_41 = arith.constant 1.000000e+00 : f32
    %185 = vector.broadcast %cst_41 : f32 to vector<8x256xf32>
    %186 = arith.addf %185, %184 : vector<8x256xf32>
    %187 = arith.divf %185, %186 : vector<8x256xf32>
    %188 = vector.extract_strided_slice %181 {offsets = [0, 256], sizes = [8, 256], strides = [1, 1]} : vector<8x1024xf32> to vector<8x256xf32>
    %189 = arith.negf %188 : vector<8x256xf32>
    %190 = math.exp %189 : vector<8x256xf32>
    %cst_42 = arith.constant 1.000000e+00 : f32
    %191 = vector.broadcast %cst_42 : f32 to vector<8x256xf32>
    %192 = arith.addf %191, %190 : vector<8x256xf32>
    %193 = arith.divf %191, %192 : vector<8x256xf32>
    %194 = vector.extract_strided_slice %181 {offsets = [0, 512], sizes = [8, 256], strides = [1, 1]} : vector<8x1024xf32> to vector<8x256xf32>
    %195 = math.tanh %194 : vector<8x256xf32>
    %196 = vector.extract_strided_slice %181 {offsets = [0, 768], sizes = [8, 256], strides = [1, 1]} : vector<8x1024xf32> to vector<8x256xf32>
    %197 = arith.negf %196 : vector<8x256xf32>
    %198 = math.exp %197 : vector<8x256xf32>
    %cst_43 = arith.constant 1.000000e+00 : f32
    %199 = vector.broadcast %cst_43 : f32 to vector<8x256xf32>
    %200 = arith.addf %199, %198 : vector<8x256xf32>
    %201 = arith.divf %199, %200 : vector<8x256xf32>
    %202 = arith.mulf %193, %170 : vector<8x256xf32>
    %203 = arith.mulf %187, %195 : vector<8x256xf32>
    %204 = arith.addf %202, %203 : vector<8x256xf32>
    %205 = math.tanh %204 : vector<8x256xf32>
    %206 = arith.mulf %201, %205 : vector<8x256xf32>
    %c3_i32 = arith.constant 3 : i32
    %c4_i32 = arith.constant 4 : i32
    %207 = vector.broadcast %c3_i32 : i32 to vector<1x256xi32>
    %208 = vector.broadcast %c4_i32 : i32 to vector<1x256xi32>
    %209 = arith.select %30, %207, %208 : vector<1x256xi1>, vector<1x256xi32>
    %210 = vector.broadcast %209 : vector<1x256xi32> to vector<8x256xi32>
    %211 = vector.broadcast %8 : vector<8x1xi32> to vector<8x256xi32>
    %212 = arith.cmpi slt, %210, %211 : vector<8x256xi32>
    %213 = arith.extui %212 : vector<8x256xi1> to vector<8x256xi32>
    %214 = arith.sitofp %213 : vector<8x256xi32> to vector<8x256xf32>
    %215 = arith.subf %204, %170 : vector<8x256xf32>
    %216 = arith.mulf %214, %215 : vector<8x256xf32>
    %217 = arith.addf %170, %216 : vector<8x256xf32>
    %218 = arith.subf %206, %173 : vector<8x256xf32>
    %219 = arith.mulf %214, %218 : vector<8x256xf32>
    %220 = arith.addf %173, %219 : vector<8x256xf32>
    %c32_44 = arith.constant 32 : index
    %c0_45 = arith.constant 0 : index
    %221 = vector.load %arg8[%c32_44, %c0_45] : memref<64x1024xf32, #tpu.memory_space<vmem>>, vector<8x1024xf32>
    %c24_46 = arith.constant 24 : index
    %c0_47 = arith.constant 0 : index
    %222 = vector.load %arg8[%c24_46, %c0_47] : memref<64x1024xf32, #tpu.memory_space<vmem>>, vector<8x1024xf32>
    %223 = vector.shape_cast %27 : vector<1x1024xi1> to vector<1x1024xi1>
    %224 = vector.broadcast %223 : vector<1x1024xi1> to vector<8x1024xi1>
    %225 = arith.select %224, %221, %222 : vector<8x1024xi1>, vector<8x1024xf32>
    %226 = arith.truncf %220 : vector<8x256xf32> to vector<8x256xbf16>
    %cst_48 = arith.constant dense<0.000000e+00> : vector<8x1024xf32>
    %227 = tpu.matmul %226, %7, %cst_48 {dimension_numbers = #tpu.dot_dimension_numbers<[1], [0], [0], [1], [0, 0, 1, 1], [], []>} : vector<8x256xbf16>, vector<256x1024xbf16>, vector<8x1024xf32> -> vector<8x1024xf32>
    %228 = arith.addf %225, %227 : vector<8x1024xf32>
    %229 = vector.extract_strided_slice %228 {offsets = [0, 0], sizes = [8, 256], strides = [1, 1]} : vector<8x1024xf32> to vector<8x256xf32>
    %230 = arith.negf %229 : vector<8x256xf32>
    %231 = math.exp %230 : vector<8x256xf32>
    %cst_49 = arith.constant 1.000000e+00 : f32
    %232 = vector.broadcast %cst_49 : f32 to vector<8x256xf32>
    %233 = arith.addf %232, %231 : vector<8x256xf32>
    %234 = arith.divf %232, %233 : vector<8x256xf32>
    %235 = vector.extract_strided_slice %228 {offsets = [0, 256], sizes = [8, 256], strides = [1, 1]} : vector<8x1024xf32> to vector<8x256xf32>
    %236 = arith.negf %235 : vector<8x256xf32>
    %237 = math.exp %236 : vector<8x256xf32>
    %cst_50 = arith.constant 1.000000e+00 : f32
    %238 = vector.broadcast %cst_50 : f32 to vector<8x256xf32>
    %239 = arith.addf %238, %237 : vector<8x256xf32>
    %240 = arith.divf %238, %239 : vector<8x256xf32>
    %241 = vector.extract_strided_slice %228 {offsets = [0, 512], sizes = [8, 256], strides = [1, 1]} : vector<8x1024xf32> to vector<8x256xf32>
    %242 = math.tanh %241 : vector<8x256xf32>
    %243 = vector.extract_strided_slice %228 {offsets = [0, 768], sizes = [8, 256], strides = [1, 1]} : vector<8x1024xf32> to vector<8x256xf32>
    %244 = arith.negf %243 : vector<8x256xf32>
    %245 = math.exp %244 : vector<8x256xf32>
    %cst_51 = arith.constant 1.000000e+00 : f32
    %246 = vector.broadcast %cst_51 : f32 to vector<8x256xf32>
    %247 = arith.addf %246, %245 : vector<8x256xf32>
    %248 = arith.divf %246, %247 : vector<8x256xf32>
    %249 = arith.mulf %240, %217 : vector<8x256xf32>
    %250 = arith.mulf %234, %242 : vector<8x256xf32>
    %251 = arith.addf %249, %250 : vector<8x256xf32>
    %252 = math.tanh %251 : vector<8x256xf32>
    %253 = arith.mulf %248, %252 : vector<8x256xf32>
    %c4_i32_52 = arith.constant 4 : i32
    %c3_i32_53 = arith.constant 3 : i32
    %254 = vector.broadcast %c4_i32_52 : i32 to vector<1x256xi32>
    %255 = vector.broadcast %c3_i32_53 : i32 to vector<1x256xi32>
    %256 = arith.select %30, %254, %255 : vector<1x256xi1>, vector<1x256xi32>
    %257 = vector.broadcast %256 : vector<1x256xi32> to vector<8x256xi32>
    %258 = vector.broadcast %8 : vector<8x1xi32> to vector<8x256xi32>
    %259 = arith.cmpi slt, %257, %258 : vector<8x256xi32>
    %260 = arith.extui %259 : vector<8x256xi1> to vector<8x256xi32>
    %261 = arith.sitofp %260 : vector<8x256xi32> to vector<8x256xf32>
    %262 = arith.subf %251, %217 : vector<8x256xf32>
    %263 = arith.mulf %261, %262 : vector<8x256xf32>
    %264 = arith.addf %217, %263 : vector<8x256xf32>
    %265 = arith.subf %253, %220 : vector<8x256xf32>
    %266 = arith.mulf %261, %265 : vector<8x256xf32>
    %267 = arith.addf %220, %266 : vector<8x256xf32>
    %c40_54 = arith.constant 40 : index
    %c0_55 = arith.constant 0 : index
    %268 = vector.load %arg8[%c40_54, %c0_55] : memref<64x1024xf32, #tpu.memory_space<vmem>>, vector<8x1024xf32>
    %c16_56 = arith.constant 16 : index
    %c0_57 = arith.constant 0 : index
    %269 = vector.load %arg8[%c16_56, %c0_57] : memref<64x1024xf32, #tpu.memory_space<vmem>>, vector<8x1024xf32>
    %270 = vector.shape_cast %27 : vector<1x1024xi1> to vector<1x1024xi1>
    %271 = vector.broadcast %270 : vector<1x1024xi1> to vector<8x1024xi1>
    %272 = arith.select %271, %268, %269 : vector<8x1024xi1>, vector<8x1024xf32>
    %273 = arith.truncf %267 : vector<8x256xf32> to vector<8x256xbf16>
    %cst_58 = arith.constant dense<0.000000e+00> : vector<8x1024xf32>
    %274 = tpu.matmul %273, %7, %cst_58 {dimension_numbers = #tpu.dot_dimension_numbers<[1], [0], [0], [1], [0, 0, 1, 1], [], []>} : vector<8x256xbf16>, vector<256x1024xbf16>, vector<8x1024xf32> -> vector<8x1024xf32>
    %275 = arith.addf %272, %274 : vector<8x1024xf32>
    %276 = vector.extract_strided_slice %275 {offsets = [0, 0], sizes = [8, 256], strides = [1, 1]} : vector<8x1024xf32> to vector<8x256xf32>
    %277 = arith.negf %276 : vector<8x256xf32>
    %278 = math.exp %277 : vector<8x256xf32>
    %cst_59 = arith.constant 1.000000e+00 : f32
    %279 = vector.broadcast %cst_59 : f32 to vector<8x256xf32>
    %280 = arith.addf %279, %278 : vector<8x256xf32>
    %281 = arith.divf %279, %280 : vector<8x256xf32>
    %282 = vector.extract_strided_slice %275 {offsets = [0, 256], sizes = [8, 256], strides = [1, 1]} : vector<8x1024xf32> to vector<8x256xf32>
    %283 = arith.negf %282 : vector<8x256xf32>
    %284 = math.exp %283 : vector<8x256xf32>
    %cst_60 = arith.constant 1.000000e+00 : f32
    %285 = vector.broadcast %cst_60 : f32 to vector<8x256xf32>
    %286 = arith.addf %285, %284 : vector<8x256xf32>
    %287 = arith.divf %285, %286 : vector<8x256xf32>
    %288 = vector.extract_strided_slice %275 {offsets = [0, 512], sizes = [8, 256], strides = [1, 1]} : vector<8x1024xf32> to vector<8x256xf32>
    %289 = math.tanh %288 : vector<8x256xf32>
    %290 = vector.extract_strided_slice %275 {offsets = [0, 768], sizes = [8, 256], strides = [1, 1]} : vector<8x1024xf32> to vector<8x256xf32>
    %291 = arith.negf %290 : vector<8x256xf32>
    %292 = math.exp %291 : vector<8x256xf32>
    %cst_61 = arith.constant 1.000000e+00 : f32
    %293 = vector.broadcast %cst_61 : f32 to vector<8x256xf32>
    %294 = arith.addf %293, %292 : vector<8x256xf32>
    %295 = arith.divf %293, %294 : vector<8x256xf32>
    %296 = arith.mulf %287, %264 : vector<8x256xf32>
    %297 = arith.mulf %281, %289 : vector<8x256xf32>
    %298 = arith.addf %296, %297 : vector<8x256xf32>
    %299 = math.tanh %298 : vector<8x256xf32>
    %300 = arith.mulf %295, %299 : vector<8x256xf32>
    %c5_i32_62 = arith.constant 5 : i32
    %c2_i32_63 = arith.constant 2 : i32
    %301 = vector.broadcast %c5_i32_62 : i32 to vector<1x256xi32>
    %302 = vector.broadcast %c2_i32_63 : i32 to vector<1x256xi32>
    %303 = arith.select %30, %301, %302 : vector<1x256xi1>, vector<1x256xi32>
    %304 = vector.broadcast %303 : vector<1x256xi32> to vector<8x256xi32>
    %305 = vector.broadcast %8 : vector<8x1xi32> to vector<8x256xi32>
    %306 = arith.cmpi slt, %304, %305 : vector<8x256xi32>
    %307 = arith.extui %306 : vector<8x256xi1> to vector<8x256xi32>
    %308 = arith.sitofp %307 : vector<8x256xi32> to vector<8x256xf32>
    %309 = arith.subf %298, %264 : vector<8x256xf32>
    %310 = arith.mulf %308, %309 : vector<8x256xf32>
    %311 = arith.addf %264, %310 : vector<8x256xf32>
    %312 = arith.subf %300, %267 : vector<8x256xf32>
    %313 = arith.mulf %308, %312 : vector<8x256xf32>
    %314 = arith.addf %267, %313 : vector<8x256xf32>
    %c48_64 = arith.constant 48 : index
    %c0_65 = arith.constant 0 : index
    %315 = vector.load %arg8[%c48_64, %c0_65] : memref<64x1024xf32, #tpu.memory_space<vmem>>, vector<8x1024xf32>
    %c8_66 = arith.constant 8 : index
    %c0_67 = arith.constant 0 : index
    %316 = vector.load %arg8[%c8_66, %c0_67] : memref<64x1024xf32, #tpu.memory_space<vmem>>, vector<8x1024xf32>
    %317 = vector.shape_cast %27 : vector<1x1024xi1> to vector<1x1024xi1>
    %318 = vector.broadcast %317 : vector<1x1024xi1> to vector<8x1024xi1>
    %319 = arith.select %318, %315, %316 : vector<8x1024xi1>, vector<8x1024xf32>
    %320 = arith.truncf %314 : vector<8x256xf32> to vector<8x256xbf16>
    %cst_68 = arith.constant dense<0.000000e+00> : vector<8x1024xf32>
    %321 = tpu.matmul %320, %7, %cst_68 {dimension_numbers = #tpu.dot_dimension_numbers<[1], [0], [0], [1], [0, 0, 1, 1], [], []>} : vector<8x256xbf16>, vector<256x1024xbf16>, vector<8x1024xf32> -> vector<8x1024xf32>
    %322 = arith.addf %319, %321 : vector<8x1024xf32>
    %323 = vector.extract_strided_slice %322 {offsets = [0, 0], sizes = [8, 256], strides = [1, 1]} : vector<8x1024xf32> to vector<8x256xf32>
    %324 = arith.negf %323 : vector<8x256xf32>
    %325 = math.exp %324 : vector<8x256xf32>
    %cst_69 = arith.constant 1.000000e+00 : f32
    %326 = vector.broadcast %cst_69 : f32 to vector<8x256xf32>
    %327 = arith.addf %326, %325 : vector<8x256xf32>
    %328 = arith.divf %326, %327 : vector<8x256xf32>
    %329 = vector.extract_strided_slice %322 {offsets = [0, 256], sizes = [8, 256], strides = [1, 1]} : vector<8x1024xf32> to vector<8x256xf32>
    %330 = arith.negf %329 : vector<8x256xf32>
    %331 = math.exp %330 : vector<8x256xf32>
    %cst_70 = arith.constant 1.000000e+00 : f32
    %332 = vector.broadcast %cst_70 : f32 to vector<8x256xf32>
    %333 = arith.addf %332, %331 : vector<8x256xf32>
    %334 = arith.divf %332, %333 : vector<8x256xf32>
    %335 = vector.extract_strided_slice %322 {offsets = [0, 512], sizes = [8, 256], strides = [1, 1]} : vector<8x1024xf32> to vector<8x256xf32>
    %336 = math.tanh %335 : vector<8x256xf32>
    %337 = vector.extract_strided_slice %322 {offsets = [0, 768], sizes = [8, 256], strides = [1, 1]} : vector<8x1024xf32> to vector<8x256xf32>
    %338 = arith.negf %337 : vector<8x256xf32>
    %339 = math.exp %338 : vector<8x256xf32>
    %cst_71 = arith.constant 1.000000e+00 : f32
    %340 = vector.broadcast %cst_71 : f32 to vector<8x256xf32>
    %341 = arith.addf %340, %339 : vector<8x256xf32>
    %342 = arith.divf %340, %341 : vector<8x256xf32>
    %343 = arith.mulf %334, %311 : vector<8x256xf32>
    %344 = arith.mulf %328, %336 : vector<8x256xf32>
    %345 = arith.addf %343, %344 : vector<8x256xf32>
    %346 = math.tanh %345 : vector<8x256xf32>
    %347 = arith.mulf %342, %346 : vector<8x256xf32>
    %c6_i32_72 = arith.constant 6 : i32
    %c1_i32_73 = arith.constant 1 : i32
    %348 = vector.broadcast %c6_i32_72 : i32 to vector<1x256xi32>
    %349 = vector.broadcast %c1_i32_73 : i32 to vector<1x256xi32>
    %350 = arith.select %30, %348, %349 : vector<1x256xi1>, vector<1x256xi32>
    %351 = vector.broadcast %350 : vector<1x256xi32> to vector<8x256xi32>
    %352 = vector.broadcast %8 : vector<8x1xi32> to vector<8x256xi32>
    %353 = arith.cmpi slt, %351, %352 : vector<8x256xi32>
    %354 = arith.extui %353 : vector<8x256xi1> to vector<8x256xi32>
    %355 = arith.sitofp %354 : vector<8x256xi32> to vector<8x256xf32>
    %356 = arith.subf %345, %311 : vector<8x256xf32>
    %357 = arith.mulf %355, %356 : vector<8x256xf32>
    %358 = arith.addf %311, %357 : vector<8x256xf32>
    %359 = arith.subf %347, %314 : vector<8x256xf32>
    %360 = arith.mulf %355, %359 : vector<8x256xf32>
    %361 = arith.addf %314, %360 : vector<8x256xf32>
    %c56_74 = arith.constant 56 : index
    %c0_75 = arith.constant 0 : index
    %362 = vector.load %arg8[%c56_74, %c0_75] : memref<64x1024xf32, #tpu.memory_space<vmem>>, vector<8x1024xf32>
    %c0_76 = arith.constant 0 : index
    %c0_77 = arith.constant 0 : index
    %363 = vector.load %arg8[%c0_76, %c0_77] : memref<64x1024xf32, #tpu.memory_space<vmem>>, vector<8x1024xf32>
    %364 = vector.shape_cast %27 : vector<1x1024xi1> to vector<1x1024xi1>
    %365 = vector.broadcast %364 : vector<1x1024xi1> to vector<8x1024xi1>
    %366 = arith.select %365, %362, %363 : vector<8x1024xi1>, vector<8x1024xf32>
    %367 = arith.truncf %361 : vector<8x256xf32> to vector<8x256xbf16>
    %cst_78 = arith.constant dense<0.000000e+00> : vector<8x1024xf32>
    %368 = tpu.matmul %367, %7, %cst_78 {dimension_numbers = #tpu.dot_dimension_numbers<[1], [0], [0], [1], [0, 0, 1, 1], [], []>} : vector<8x256xbf16>, vector<256x1024xbf16>, vector<8x1024xf32> -> vector<8x1024xf32>
    %369 = arith.addf %366, %368 : vector<8x1024xf32>
    %370 = vector.extract_strided_slice %369 {offsets = [0, 0], sizes = [8, 256], strides = [1, 1]} : vector<8x1024xf32> to vector<8x256xf32>
    %371 = arith.negf %370 : vector<8x256xf32>
    %372 = math.exp %371 : vector<8x256xf32>
    %cst_79 = arith.constant 1.000000e+00 : f32
    %373 = vector.broadcast %cst_79 : f32 to vector<8x256xf32>
    %374 = arith.addf %373, %372 : vector<8x256xf32>
    %375 = arith.divf %373, %374 : vector<8x256xf32>
    %376 = vector.extract_strided_slice %369 {offsets = [0, 256], sizes = [8, 256], strides = [1, 1]} : vector<8x1024xf32> to vector<8x256xf32>
    %377 = arith.negf %376 : vector<8x256xf32>
    %378 = math.exp %377 : vector<8x256xf32>
    %cst_80 = arith.constant 1.000000e+00 : f32
    %379 = vector.broadcast %cst_80 : f32 to vector<8x256xf32>
    %380 = arith.addf %379, %378 : vector<8x256xf32>
    %381 = arith.divf %379, %380 : vector<8x256xf32>
    %382 = vector.extract_strided_slice %369 {offsets = [0, 512], sizes = [8, 256], strides = [1, 1]} : vector<8x1024xf32> to vector<8x256xf32>
    %383 = math.tanh %382 : vector<8x256xf32>
    %384 = vector.extract_strided_slice %369 {offsets = [0, 768], sizes = [8, 256], strides = [1, 1]} : vector<8x1024xf32> to vector<8x256xf32>
    %385 = arith.negf %384 : vector<8x256xf32>
    %386 = math.exp %385 : vector<8x256xf32>
    %cst_81 = arith.constant 1.000000e+00 : f32
    %387 = vector.broadcast %cst_81 : f32 to vector<8x256xf32>
    %388 = arith.addf %387, %386 : vector<8x256xf32>
    %389 = arith.divf %387, %388 : vector<8x256xf32>
    %390 = arith.mulf %381, %358 : vector<8x256xf32>
    %391 = arith.mulf %375, %383 : vector<8x256xf32>
    %392 = arith.addf %390, %391 : vector<8x256xf32>
    %393 = math.tanh %392 : vector<8x256xf32>
    %394 = arith.mulf %389, %393 : vector<8x256xf32>
    %c7_i32_82 = arith.constant 7 : i32
    %c0_i32_83 = arith.constant 0 : i32
    %395 = vector.broadcast %c7_i32_82 : i32 to vector<1x256xi32>
    %396 = vector.broadcast %c0_i32_83 : i32 to vector<1x256xi32>
    %397 = arith.select %30, %395, %396 : vector<1x256xi1>, vector<1x256xi32>
    %398 = vector.broadcast %397 : vector<1x256xi32> to vector<8x256xi32>
    %399 = vector.broadcast %8 : vector<8x1xi32> to vector<8x256xi32>
    %400 = arith.cmpi slt, %398, %399 : vector<8x256xi32>
    %401 = arith.extui %400 : vector<8x256xi1> to vector<8x256xi32>
    %402 = arith.sitofp %401 : vector<8x256xi32> to vector<8x256xf32>
    %403 = arith.subf %394, %361 : vector<8x256xf32>
    %404 = arith.mulf %402, %403 : vector<8x256xf32>
    %405 = arith.addf %361, %404 : vector<8x256xf32>
    %c0_84 = arith.constant 0 : index
    %c0_85 = arith.constant 0 : index
    %406 = vector.load %arg5[%c0_84, %c0_85] : memref<256x16xf32, #tpu.memory_space<vmem>>, vector<256x16xf32>
    %cst_86 = arith.constant dense<0.000000e+00> : vector<8x16xf32>
    %407 = tpu.matmul %405, %406, %cst_86 {dimension_numbers = #tpu.dot_dimension_numbers<[1], [0], [0], [1], [0, 0, 1, 1], [], []>} : vector<8x256xf32>, vector<256x16xf32>, vector<8x16xf32> -> vector<8x16xf32>
    %c0_87 = arith.constant 0 : index
    %c0_88 = arith.constant 0 : index
    %408 = vector.load %arg6[%c0_87, %c0_88] : memref<1x16xf32, #tpu.memory_space<vmem>>, vector<1x16xf32>
    %409 = vector.broadcast %408 : vector<1x16xf32> to vector<8x16xf32>
    %410 = arith.addf %407, %409 : vector<8x16xf32>
    %cst_89 = arith.constant 0.000000e+00 : f32
    %411 = vector.broadcast %cst_89 : f32 to vector<8x16xf32>
    %412 = arith.maximumf %410, %411 : vector<8x16xf32>
    %c0_90 = arith.constant 0 : index
    %c0_91 = arith.constant 0 : index
    %413 = vector.load %arg7[%c0_90, %c0_91] : memref<8x16xf32, #tpu.memory_space<vmem>>, vector<8x16xf32>
    tpu.vector_store %arg7[%c0_90, %c0_91], %412 {strides = array<i32>} : memref<8x16xf32, #tpu.memory_space<vmem>>, vector<8x16xf32>,
    return
  }
}

</mosaic_0001>

<llo_original>
// kernel: ball_to_ball_forward.1
$region0: #{ball_to_ball_forward.1}
  #allocation0 [shape = 'u32[]', space=smem, size = 0x4, offset = 0x4, fixed_abs, tag = 'smem constant byte address 0x4 - core index']
  #allocation1 [shape = 'u32[72,128]{1,0:T(1,128)}', space=vmem, size = 0x9000, scoped, tag = 'internal scratch']
  #allocation2 [shape = 'f32[64,1024]{1,0:T(8,128)}', space=vmem, size = 0x40000, scoped, tag = 'scratch operand']
  %s0 = inlined_call_operand.vmem [shape: bf16[64,4], index: 0, kind: input, shape index: {}]
  %s1 = inlined_call_operand.vmem [shape: s32[8,1], index: 1, kind: input, shape index: {}]
  %s2 = inlined_call_operand.vmem [shape: bf16[4,1024], index: 2, kind: input, shape index: {}]
  %s3 = inlined_call_operand.vmem [shape: f32[1,1024], index: 3, kind: input, shape index: {}]
  %s4 = inlined_call_operand.vmem [shape: bf16[256,1024], index: 4, kind: input, shape index: {}]
  %s5 = inlined_call_operand.vmem [shape: f32[256,16], index: 5, kind: input, shape index: {}]
  %s6 = inlined_call_operand.vmem [shape: f32[1,16], index: 6, kind: input, shape index: {}]
  %s7 = inlined_call_operand.vmem [shape: f32[8,16], index: 7, kind: output, shape index: {}]
  %s8 = sld [smem:[#allocation0]]
  $region38: #{ball_to_ball_forward.1} parent=0
    _
  %s10 = ssub.s32 1, %s8
  %s11 = scalar_select 0, %s10, %s8
  // Predicated region
  $region2: #{ball_to_ball_forward.1} parent=0 // pred_check
    _
  $region3: #{ball_to_ball_forward.1} parent=0 // pred_check_branch
    %13 = sbr.rel (0) target = $region5
  $region4: #{ball_to_ball_forward.1} parent=0 // pred_region
    _
  $region5: #{ball_to_ball_forward.1} parent=0 // pred_fallthru
    _
  // Predicated region
  $region6: #{ball_to_ball_forward.1} parent=0 // pred_check
    _
  $region7: #{ball_to_ball_forward.1} parent=0 // pred_check_branch
    %15 = sbr.rel (0) target = $region9
  $region8: #{ball_to_ball_forward.1} parent=0 // pred_region
    _
  $region9: #{ball_to_ball_forward.1} parent=0 // pred_fallthru
    _
  // Predicated region
  $region10: #{ball_to_ball_forward.1} parent=0 // pred_check
    _
  $region11: #{ball_to_ball_forward.1} parent=0 // pred_check_branch
    %17 = sbr.rel (0) target = $region13
  $region12: #{ball_to_ball_forward.1} parent=0 // pred_region
    _
  $region13: #{ball_to_ball_forward.1} parent=0 // pred_fallthru
    _
  // Predicated region
  $region14: #{ball_to_ball_forward.1} parent=0 // pred_check
    _
  $region15: #{ball_to_ball_forward.1} parent=0 // pred_check_branch
    %19 = sbr.rel (0) target = $region17
  $region16: #{ball_to_ball_forward.1} parent=0 // pred_region
    _
  $region17: #{ball_to_ball_forward.1} parent=0 // pred_fallthru
    _
  // Predicated region
  $region18: #{ball_to_ball_forward.1} parent=0 // pred_check
    _
  $region19: #{ball_to_ball_forward.1} parent=0 // pred_check_branch
    %21 = sbr.rel (0) target = $region21
  $region20: #{ball_to_ball_forward.1} parent=0 // pred_region
    _
  $region21: #{ball_to_ball_forward.1} parent=0 // pred_fallthru
    _
  // Predicated region
  $region22: #{ball_to_ball_forward.1} parent=0 // pred_check
    _
  $region23: #{ball_to_ball_forward.1} parent=0 // pred_check_branch
    %23 = sbr.rel (0) target = $region25
  $region24: #{ball_to_ball_forward.1} parent=0 // pred_region
    _
  $region25: #{ball_to_ball_forward.1} parent=0 // pred_fallthru
    _
  // Predicated region
  $region26: #{ball_to_ball_forward.1} parent=0 // pred_check
    _
  $region27: #{ball_to_ball_forward.1} parent=0 // pred_check_branch
    %25 = sbr.rel (0) target = $region29
  $region28: #{ball_to_ball_forward.1} parent=0 // pred_region
    _
  $region29: #{ball_to_ball_forward.1} parent=0 // pred_fallthru
    _
  %v27 = vld [vmem:[%s0] sm:$0xf]
  %v28 = vld [vmem:[%s0 + $0x4] sm:$0xf]
  %v29 = vld [vmem:[%s0 + $0x8] sm:$0xf]
  %v30 = vld [vmem:[%s0 + $0xc] sm:$0xf]
  %v31 = vld [vmem:[%s0 + $0x10] sm:$0xf]
  %v32 = vld [vmem:[%s0 + $0x14] sm:$0xf]
  %v33 = vld [vmem:[%s0 + $0x18] sm:$0xf]
  %v34 = vld [vmem:[%s0 + $0x1c] sm:$0xf]
  %v35 = vld [vmem:[%s2] sm:$0xff]
  %v36 = vld [vmem:[%s2 + $0x8] sm:$0xff]
  %v37 = vld [vmem:[%s3] sm:$0xff]
  %v39 = vperm.slane %v37, 0
  %v40 = vperm.slane %v37, 1
  %v41 = vperm.slane %v37, 2
  %v42 = vperm.slane %v37, 3
  %v43 = vperm.slane %v37, 4
  %v44 = vperm.slane %v37, 5
  %v45 = vperm.slane %v37, 6
  %v46 = vperm.slane %v37, 7
  %v63 = vunpack.c.l.b16 %v27
  %v64 = vunpack.c.l.b16 %v28
  %v65 = vunpack.c.l.b16 %v29
  %v66 = vunpack.c.l.b16 %v30
  %v67 = vunpack.c.l.b16 %v31
  %v68 = vunpack.c.l.b16 %v32
  %v69 = vunpack.c.l.b16 %v33
  %v70 = vunpack.c.l.b16 %v34
  %v71 = vpack.c.b16 %v64, %v63
  %v72 = vpack.c.b16 %v66, %v65
  %v73 = vpack.c.b16 %v68, %v67
  %v74 = vpack.c.b16 %v70, %v69
  %76 = vst [vmem:[#allocation1] ss:$4 sm:$0xff] %v35
  %s78 = scalar_lea.vmem [#allocation1], 32
  %79 = vst [vmem:[%s78] ss:$4 sm:$0xff] %v36
  %v80 = vld.sshfl [vmem:[#allocation1] sm:$0xff pattern:$0x73625140]
  %v81 = vld.sshfl [vmem:[#allocation1 + $0x8] sm:$0xff pattern:$0x73625140]
  %v82 = vld.sshfl [vmem:[#allocation1 + $0x10] sm:$0xff pattern:$0x73625140]
  %v83 = vld.sshfl [vmem:[#allocation1 + $0x18] sm:$0xff pattern:$0x73625140]
  %v84 = vld.sshfl [vmem:[#allocation1 + $0x20] sm:$0xff pattern:$0x73625140]
  %v85 = vld.sshfl [vmem:[#allocation1 + $0x28] sm:$0xff pattern:$0x73625140]
  %v86 = vld.sshfl [vmem:[#allocation1 + $0x30] sm:$0xff pattern:$0x73625140]
  %v87 = vld.sshfl [vmem:[#allocation1 + $0x38] sm:$0xff pattern:$0x73625140]
  %vm88 = vcmask 31744
  %v90 = vsel %vm88, %v71, 0
  %v93 = vsel %vm88, %v72, 0
  %v96 = vsel %vm88, %v73, 0
  %v99 = vsel %vm88, %v74, 0
  %vm101 = vcmask 1041408
  %v102 = vsel %vm101, %v80, 0
  %v104 = vsel %vm101, %v81, 0
  %v106 = vsel %vm101, %v82, 0
  %v108 = vsel %vm101, %v83, 0
  %v110 = vsel %vm101, %v84, 0
  %v112 = vsel %vm101, %v85, 0
  %v114 = vsel %vm101, %v86, 0
  %v116 = vsel %vm101, %v87, 0
  %118 = vmatpush.bf16.msra.mxu0 0
  %119 = vmatpush.bf16.msra.mxu0 0
  %120 = vmatpush.bf16.msra.mxu0 0
  %121 = vmatpush.bf16.msra.mxu0 0
  %122 = vmatpush.bf16.msra.mxu0 0
  %123 = vmatpush.bf16.msra.mxu0 0
  %124 = vmatpush.bf16.msra.mxu0 0
  %125 = vmatpush.bf16.msra.mxu0 %v102
  %126 = vmatmul.bf16.gmra.mxu0 %v90
  %v127 = vpop.f32.mrf.mxu0
  %v128 = vadd.f32 %v39, %v127
  %v129 = vpop.f32.mrf.mxu0
  %v130 = vadd.f32 %v39, %v129
  %131 = vmatmul.bf16.gmra.mxu0 %v93
  %v132 = vpop.f32.mrf.mxu0
  %v133 = vadd.f32 %v39, %v132
  %v134 = vpop.f32.mrf.mxu0
  %v135 = vadd.f32 %v39, %v134
  %136 = vmatmul.bf16.gmra.mxu0 %v96
  %v137 = vpop.f32.mrf.mxu0
  %v138 = vadd.f32 %v39, %v137
  %v139 = vpop.f32.mrf.mxu0
  %v140 = vadd.f32 %v39, %v139
  %141 = vmatmul.bf16.gmra.mxu0 %v99
  %v142 = vpop.f32.mrf.mxu0
  %v143 = vadd.f32 %v39, %v142
  %v144 = vpop.f32.mrf.mxu0
  %v145 = vadd.f32 %v39, %v144
  %146 = vdwg.mxu0
  %147 = vmatpush.bf16.msra.mxu0 0
  %148 = vmatpush.bf16.msra.mxu0 0
  %149 = vmatpush.bf16.msra.mxu0 0
  %150 = vmatpush.bf16.msra.mxu0 0
  %151 = vmatpush.bf16.msra.mxu0 0
  %152 = vmatpush.bf16.msra.mxu0 0
  %153 = vmatpush.bf16.msra.mxu0 0
  %154 = vmatpush.bf16.msra.mxu0 %v104
  %155 = vmatmul.bf16.gmra.mxu0 %v90
  %v156 = vpop.f32.mrf.mxu0
  %v157 = vadd.f32 %v40, %v156
  %v158 = vpop.f32.mrf.mxu0
  %v159 = vadd.f32 %v40, %v158
  %160 = vmatmul.bf16.gmra.mxu0 %v93
  %v161 = vpop.f32.mrf.mxu0
  %v162 = vadd.f32 %v40, %v161
  %v163 = vpop.f32.mrf.mxu0
  %v164 = vadd.f32 %v40, %v163
  %165 = vmatmul.bf16.gmra.mxu0 %v96
  %v166 = vpop.f32.mrf.mxu0
  %v167 = vadd.f32 %v40, %v166
  %v168 = vpop.f32.mrf.mxu0
  %v169 = vadd.f32 %v40, %v168
  %170 = vmatmul.bf16.gmra.mxu0 %v99
  %v171 = vpop.f32.mrf.mxu0
  %v172 = vadd.f32 %v40, %v171
  %v173 = vpop.f32.mrf.mxu0
  %v174 = vadd.f32 %v40, %v173
  %175 = vdwg.mxu0
  %176 = vmatpush.bf16.msra.mxu0 0
  %177 = vmatpush.bf16.msra.mxu0 0
  %178 = vmatpush.bf16.msra.mxu0 0
  %179 = vmatpush.bf16.msra.mxu0 0
  %180 = vmatpush.bf16.msra.mxu0 0
  %181 = vmatpush.bf16.msra.mxu0 0
  %182 = vmatpush.bf16.msra.mxu0 0
  %183 = vmatpush.bf16.msra.mxu0 %v106
  %184 = vmatmul.bf16.gmra.mxu0 %v90
  %v185 = vpop.f32.mrf.mxu0
  %v186 = vadd.f32 %v41, %v185
  %v187 = vpop.f32.mrf.mxu0
  %v188 = vadd.f32 %v41, %v187
  %189 = vmatmul.bf16.gmra.mxu0 %v93
  %v190 = vpop.f32.mrf.mxu0
  %v191 = vadd.f32 %v41, %v190
  %v192 = vpop.f32.mrf.mxu0
  %v193 = vadd.f32 %v41, %v192
  %194 = vmatmul.bf16.gmra.mxu0 %v96
  %v195 = vpop.f32.mrf.mxu0
  %v196 = vadd.f32 %v41, %v195
  %v197 = vpop.f32.mrf.mxu0
  %v198 = vadd.f32 %v41, %v197
  %199 = vmatmul.bf16.gmra.mxu0 %v99
  %v200 = vpop.f32.mrf.mxu0
  %v201 = vadd.f32 %v41, %v200
  %v202 = vpop.f32.mrf.mxu0
  %v203 = vadd.f32 %v41, %v202
  %204 = vdwg.mxu0
  %205 = vmatpush.bf16.msra.mxu0 0
  %206 = vmatpush.bf16.msra.mxu0 0
  %207 = vmatpush.bf16.msra.mxu0 0
  %208 = vmatpush.bf16.msra.mxu0 0
  %209 = vmatpush.bf16.msra.mxu0 0
  %210 = vmatpush.bf16.msra.mxu0 0
  %211 = vmatpush.bf16.msra.mxu0 0
  %212 = vmatpush.bf16.msra.mxu0 %v108
  %213 = vmatmul.bf16.gmra.mxu0 %v90
  %v214 = vpop.f32.mrf.mxu0
  %v215 = vadd.f32 %v42, %v214
  %v216 = vpop.f32.mrf.mxu0
  %v217 = vadd.f32 %v42, %v216
  %218 = vmatmul.bf16.gmra.mxu0 %v93
  %v219 = vpop.f32.mrf.mxu0
  %v220 = vadd.f32 %v42, %v219
  %v221 = vpop.f32.mrf.mxu0
  %v222 = vadd.f32 %v42, %v221
  %223 = vmatmul.bf16.gmra.mxu0 %v96
  %v224 = vpop.f32.mrf.mxu0
  %v225 = vadd.f32 %v42, %v224
  %v226 = vpop.f32.mrf.mxu0
  %v227 = vadd.f32 %v42, %v226
  %228 = vmatmul.bf16.gmra.mxu0 %v99
  %v229 = vpop.f32.mrf.mxu0
  %v230 = vadd.f32 %v42, %v229
  %v231 = vpop.f32.mrf.mxu0
  %v232 = vadd.f32 %v42, %v231
  %233 = vdwg.mxu0
  %234 = vmatpush.bf16.msra.mxu0 0
  %235 = vmatpush.bf16.msra.mxu0 0
  %236 = vmatpush.bf16.msra.mxu0 0
  %237 = vmatpush.bf16.msra.mxu0 0
  %238 = vmatpush.bf16.msra.mxu0 0
  %239 = vmatpush.bf16.msra.mxu0 0
  %240 = vmatpush.bf16.msra.mxu0 0
  %241 = vmatpush.bf16.msra.mxu0 %v110
  %242 = vmatmul.bf16.gmra.mxu0 %v90
  %v243 = vpop.f32.mrf.mxu0
  %v244 = vadd.f32 %v43, %v243
  %v245 = vpop.f32.mrf.mxu0
  %v246 = vadd.f32 %v43, %v245
  %247 = vmatmul.bf16.gmra.mxu0 %v93
  %v248 = vpop.f32.mrf.mxu0
  %v249 = vadd.f32 %v43, %v248
  %v250 = vpop.f32.mrf.mxu0
  %v251 = vadd.f32 %v43, %v250
  %252 = vmatmul.bf16.gmra.mxu0 %v96
  %v253 = vpop.f32.mrf.mxu0
  %v254 = vadd.f32 %v43, %v253
  %v255 = vpop.f32.mrf.mxu0
  %v256 = vadd.f32 %v43, %v255
  %257 = vmatmul.bf16.gmra.mxu0 %v99
  %v258 = vpop.f32.mrf.mxu0
  %v259 = vadd.f32 %v43, %v258
  %v260 = vpop.f32.mrf.mxu0
  %v261 = vadd.f32 %v43, %v260
  %262 = vdwg.mxu0
  %263 = vmatpush.bf16.msra.mxu0 0
  %264 = vmatpush.bf16.msra.mxu0 0
  %265 = vmatpush.bf16.msra.mxu0 0
  %266 = vmatpush.bf16.msra.mxu0 0
  %267 = vmatpush.bf16.msra.mxu0 0
  %268 = vmatpush.bf16.msra.mxu0 0
  %269 = vmatpush.bf16.msra.mxu0 0
  %270 = vmatpush.bf16.msra.mxu0 %v112
  %271 = vmatmul.bf16.gmra.mxu0 %v90
  %v272 = vpop.f32.mrf.mxu0
  %v273 = vadd.f32 %v44, %v272
  %v274 = vpop.f32.mrf.mxu0
  %v275 = vadd.f32 %v44, %v274
  %276 = vmatmul.bf16.gmra.mxu0 %v93
  %v277 = vpop.f32.mrf.mxu0
  %v278 = vadd.f32 %v44, %v277
  %v279 = vpop.f32.mrf.mxu0
  %v280 = vadd.f32 %v44, %v279
  %281 = vmatmul.bf16.gmra.mxu0 %v96
  %v282 = vpop.f32.mrf.mxu0
  %v283 = vadd.f32 %v44, %v282
  %v284 = vpop.f32.mrf.mxu0
  %v285 = vadd.f32 %v44, %v284
  %286 = vmatmul.bf16.gmra.mxu0 %v99
  %v287 = vpop.f32.mrf.mxu0
  %v288 = vadd.f32 %v44, %v287
  %v289 = vpop.f32.mrf.mxu0
  %v290 = vadd.f32 %v44, %v289
  %291 = vdwg.mxu0
  %292 = vmatpush.bf16.msra.mxu0 0
  %293 = vmatpush.bf16.msra.mxu0 0
  %294 = vmatpush.bf16.msra.mxu0 0
  %295 = vmatpush.bf16.msra.mxu0 0
  %296 = vmatpush.bf16.msra.mxu0 0
  %297 = vmatpush.bf16.msra.mxu0 0
  %298 = vmatpush.bf16.msra.mxu0 0
  %299 = vmatpush.bf16.msra.mxu0 %v114
  %300 = vmatmul.bf16.gmra.mxu0 %v90
  %v301 = vpop.f32.mrf.mxu0
  %v302 = vadd.f32 %v45, %v301
  %v303 = vpop.f32.mrf.mxu0
  %v304 = vadd.f32 %v45, %v303
  %305 = vmatmul.bf16.gmra.mxu0 %v93
  %v306 = vpop.f32.mrf.mxu0
  %v307 = vadd.f32 %v45, %v306
  %v308 = vpop.f32.mrf.mxu0
  %v309 = vadd.f32 %v45, %v308
  %310 = vmatmul.bf16.gmra.mxu0 %v96
  %v311 = vpop.f32.mrf.mxu0
  %v312 = vadd.f32 %v45, %v311
  %v313 = vpop.f32.mrf.mxu0
  %v314 = vadd.f32 %v45, %v313
  %315 = vmatmul.bf16.gmra.mxu0 %v99
  %v316 = vpop.f32.mrf.mxu0
  %v317 = vadd.f32 %v45, %v316
  %v318 = vpop.f32.mrf.mxu0
  %v319 = vadd.f32 %v45, %v318
  %320 = vdwg.mxu0
  %321 = vmatpush.bf16.msra.mxu0 0
  %322 = vmatpush.bf16.msra.mxu0 0
  %323 = vmatpush.bf16.msra.mxu0 0
  %324 = vmatpush.bf16.msra.mxu0 0
  %325 = vmatpush.bf16.msra.mxu0 0
  %326 = vmatpush.bf16.msra.mxu0 0
  %327 = vmatpush.bf16.msra.mxu0 0
  %328 = vmatpush.bf16.msra.mxu0 %v116
  %329 = vmatmul.bf16.gmra.mxu0 %v90
  %v330 = vpop.f32.mrf.mxu0
  %v331 = vadd.f32 %v46, %v330
  %v332 = vpop.f32.mrf.mxu0
  %v333 = vadd.f32 %v46, %v332
  %334 = vmatmul.bf16.gmra.mxu0 %v93
  %v335 = vpop.f32.mrf.mxu0
  %v336 = vadd.f32 %v46, %v335
  %v337 = vpop.f32.mrf.mxu0
  %v338 = vadd.f32 %v46, %v337
  %339 = vmatmul.bf16.gmra.mxu0 %v96
  %v340 = vpop.f32.mrf.mxu0
  %v341 = vadd.f32 %v46, %v340
  %v342 = vpop.f32.mrf.mxu0
  %v343 = vadd.f32 %v46, %v342
  %344 = vmatmul.bf16.gmra.mxu0 %v99
  %v345 = vpop.f32.mrf.mxu0
  %v346 = vadd.f32 %v46, %v345
  %v347 = vpop.f32.mrf.mxu0
  %v348 = vadd.f32 %v46, %v347
  %349 = vdwg.mxu0
  %350 = vst [vmem:[#allocation2] sm:$0xff] %v128
  %351 = vst [vmem:[#allocation2 + $0x8] sm:$0xff] %v157
  %352 = vst [vmem:[#allocation2 + $0x10] sm:$0xff] %v186
  %353 = vst [vmem:[#allocation2 + $0x18] sm:$0xff] %v215
  %354 = vst [vmem:[#allocation2 + $0x20] sm:$0xff] %v244
  %355 = vst [vmem:[#allocation2 + $0x28] sm:$0xff] %v273
  %356 = vst [vmem:[#allocation2 + $0x30] sm:$0xff] %v302
  %357 = vst [vmem:[#allocation2 + $0x38] sm:$0xff] %v331
  %358 = vst [vmem:[#allocation2 + $0x40] sm:$0xff] %v130
  %359 = vst [vmem:[#allocation2 + $0x48] sm:$0xff] %v159
  %360 = vst [vmem:[#allocation2 + $0x50] sm:$0xff] %v188
  %361 = vst [vmem:[#allocation2 + $0x58] sm:$0xff] %v217
  %362 = vst [vmem:[#allocation2 + $0x60] sm:$0xff] %v246
  %363 = vst [vmem:[#allocation2 + $0x68] sm:$0xff] %v275
  %364 = vst [vmem:[#allocation2 + $0x70] sm:$0xff] %v304
  %365 = vst [vmem:[#allocation2 + $0x78] sm:$0xff] %v333
  %366 = vst [vmem:[#allocation2 + $0x80] sm:$0xff] %v133
  %367 = vst [vmem:[#allocation2 + $0x88] sm:$0xff] %v162
  %368 = vst [vmem:[#allocation2 + $0x90] sm:$0xff] %v191
  %369 = vst [vmem:[#allocation2 + $0x98] sm:$0xff] %v220
  %370 = vst [vmem:[#allocation2 + $0xa0] sm:$0xff] %v249
  %371 = vst [vmem:[#allocation2 + $0xa8] sm:$0xff] %v278
  %372 = vst [vmem:[#allocation2 + $0xb0] sm:$0xff] %v307
  %373 = vst [vmem:[#allocation2 + $0xb8] sm:$0xff] %v336
  %374 = vst [vmem:[#allocation2 + $0xc0] sm:$0xff] %v135
  %375 = vst [vmem:[#allocation2 + $0xc8] sm:$0xff] %v164
  %376 = vst [vmem:[#allocation2 + $0xd0] sm:$0xff] %v193
  %377 = vst [vmem:[#allocation2 + $0xd8] sm:$0xff] %v222
  %378 = vst [vmem:[#allocation2 + $0xe0] sm:$0xff] %v251
  %379 = vst [vmem:[#allocation2 + $0xe8] sm:$0xff] %v280
  %380 = vst [vmem:[#allocation2 + $0xf0] sm:$0xff] %v309
  %381 = vst [vmem:[#allocation2 + $0xf8] sm:$0xff] %v338
  %382 = vst [vmem:[#allocation2 + $0x100] sm:$0xff] %v138
  %383 = vst [vmem:[#allocation2 + $0x108] sm:$0xff] %v167
  %384 = vst [vmem:[#allocation2 + $0x110] sm:$0xff] %v196
  %385 = vst [vmem:[#allocation2 + $0x118] sm:$0xff] %v225
  %386 = vst [vmem:[#allocation2 + $0x120] sm:$0xff] %v254
  %387 = vst [vmem:[#allocation2 + $0x128] sm:$0xff] %v283
  %388 = vst [vmem:[#allocation2 + $0x130] sm:$0xff] %v312
  %389 = vst [vmem:[#allocation2 + $0x138] sm:$0xff] %v341
  %390 = vst [vmem:[#allocation2 + $0x140] sm:$0xff] %v140
  %391 = vst [vmem:[#allocation2 + $0x148] sm:$0xff] %v169
  %392 = vst [vmem:[#allocation2 + $0x150] sm:$0xff] %v198
  %393 = vst [vmem:[#allocation2 + $0x158] sm:$0xff] %v227
  %394 = vst [vmem:[#allocation2 + $0x160] sm:$0xff] %v256
  %395 = vst [vmem:[#allocation2 + $0x168] sm:$0xff] %v285
  %396 = vst [vmem:[#allocation2 + $0x170] sm:$0xff] %v314
  %397 = vst [vmem:[#allocation2 + $0x178] sm:$0xff] %v343
  %398 = vst [vmem:[#allocation2 + $0x180] sm:$0xff] %v143
  %399 = vst [vmem:[#allocation2 + $0x188] sm:$0xff] %v172
  %400 = vst [vmem:[#allocation2 + $0x190] sm:$0xff] %v201
  %401 = vst [vmem:[#allocation2 + $0x198] sm:$0xff] %v230
  %402 = vst [vmem:[#allocation2 + $0x1a0] sm:$0xff] %v259
  %403 = vst [vmem:[#allocation2 + $0x1a8] sm:$0xff] %v288
  %404 = vst [vmem:[#allocation2 + $0x1b0] sm:$0xff] %v317
  %405 = vst [vmem:[#allocation2 + $0x1b8] sm:$0xff] %v346
  %406 = vst [vmem:[#allocation2 + $0x1c0] sm:$0xff] %v145
  %407 = vst [vmem:[#allocation2 + $0x1c8] sm:$0xff] %v174
  %408 = vst [vmem:[#allocation2 + $0x1d0] sm:$0xff] %v203
  %409 = vst [vmem:[#allocation2 + $0x1d8] sm:$0xff] %v232
  %410 = vst [vmem:[#allocation2 + $0x1e0] sm:$0xff] %v261
  %411 = vst [vmem:[#allocation2 + $0x1e8] sm:$0xff] %v290
  %412 = vst [vmem:[#allocation2 + $0x1f0] sm:$0xff] %v319
  %413 = vst [vmem:[#allocation2 + $0x1f8] sm:$0xff] %v348
  %v414 = vld [vmem:[%s4] sm:$0xff]
  %v415 = vld [vmem:[%s4 + $0x8] sm:$0xff]
  %v416 = vld [vmem:[%s4 + $0x10] sm:$0xff]
  %v417 = vld [vmem:[%s4 + $0x18] sm:$0xff]
  %v418 = vld [vmem:[%s4 + $0x20] sm:$0xff]
  %v419 = vld [vmem:[%s4 + $0x28] sm:$0xff]
  %v420 = vld [vmem:[%s4 + $0x30] sm:$0xff]
  %v421 = vld [vmem:[%s4 + $0x38] sm:$0xff]
  %v422 = vld [vmem:[%s4 + $0x40] sm:$0xff]
  %v423 = vld [vmem:[%s4 + $0x48] sm:$0xff]
  %v424 = vld [vmem:[%s4 + $0x50] sm:$0xff]
  %v425 = vld [vmem:[%s4 + $0x58] sm:$0xff]
  %v426 = vld [vmem:[%s4 + $0x60] sm:$0xff]
  %v427 = vld [vmem:[%s4 + $0x68] sm:$0xff]
  %v428 = vld [vmem:[%s4 + $0x70] sm:$0xff]
  %v429 = vld [vmem:[%s4 + $0x78] sm:$0xff]
  %v430 = vld [vmem:[%s4 + $0x80] sm:$0xff]
  %v431 = vld [vmem:[%s4 + $0x88] sm:$0xff]
  %v432 = vld [vmem:[%s4 + $0x90] sm:$0xff]
  %v433 = vld [vmem:[%s4 + $0x98] sm:$0xff]
  %v434 = vld [vmem:[%s4 + $0xa0] sm:$0xff]
  %v435 = vld [vmem:[%s4 + $0xa8] sm:$0xff]
  %v436 = vld [vmem:[%s4 + $0xb0] sm:$0xff]
  %v437 = vld [vmem:[%s4 + $0xb8] sm:$0xff]
  %v438 = vld [vmem:[%s4 + $0xc0] sm:$0xff]
  %v439 = vld [vmem:[%s4 + $0xc8] sm:$0xff]
  %v440 = vld [vmem:[%s4 + $0xd0] sm:$0xff]
  %v441 = vld [vmem:[%s4 + $0xd8] sm:$0xff]
  %v442 = vld [vmem:[%s4 + $0xe0] sm:$0xff]
  %v443 = vld [vmem:[%s4 + $0xe8] sm:$0xff]
  %v444 = vld [vmem:[%s4 + $0xf0] sm:$0xff]
  %v445 = vld [vmem:[%s4 + $0xf8] sm:$0xff]
  %v446 = vld [vmem:[%s4 + $0x100] sm:$0xff]
  %v447 = vld [vmem:[%s4 + $0x108] sm:$0xff]
  %v448 = vld [vmem:[%s4 + $0x110] sm:$0xff]
  %v449 = vld [vmem:[%s4 + $0x118] sm:$0xff]
  %v450 = vld [vmem:[%s4 + $0x120] sm:$0xff]
  %v451 = vld [vmem:[%s4 + $0x128] sm:$0xff]
  %v452 = vld [vmem:[%s4 + $0x130] sm:$0xff]
  %v453 = vld [vmem:[%s4 + $0x138] sm:$0xff]
  %v454 = vld [vmem:[%s4 + $0x140] sm:$0xff]
  %v455 = vld [vmem:[%s4 + $0x148] sm:$0xff]
  %v456 = vld [vmem:[%s4 + $0x150] sm:$0xff]
  %v457 = vld [vmem:[%s4 + $0x158] sm:$0xff]
  %v458 = vld [vmem:[%s4 + $0x160] sm:$0xff]
  %v459 = vld [vmem:[%s4 + $0x168] sm:$0xff]
  %v460 = vld [vmem:[%s4 + $0x170] sm:$0xff]
  %v461 = vld [vmem:[%s4 + $0x178] sm:$0xff]
  %v462 = vld [vmem:[%s4 + $0x180] sm:$0xff]
  %v463 = vld [vmem:[%s4 + $0x188] sm:$0xff]
  %v464 = vld [vmem:[%s4 + $0x190] sm:$0xff]
  %v465 = vld [vmem:[%s4 + $0x198] sm:$0xff]
  %v466 = vld [vmem:[%s4 + $0x1a0] sm:$0xff]
  %v467 = vld [vmem:[%s4 + $0x1a8] sm:$0xff]
  %v468 = vld [vmem:[%s4 + $0x1b0] sm:$0xff]
  %v469 = vld [vmem:[%s4 + $0x1b8] sm:$0xff]
  %v470 = vld [vmem:[%s4 + $0x1c0] sm:$0xff]
  %v471 = vld [vmem:[%s4 + $0x1c8] sm:$0xff]
  %v472 = vld [vmem:[%s4 + $0x1d0] sm:$0xff]
  %v473 = vld [vmem:[%s4 + $0x1d8] sm:$0xff]
  %v474 = vld [vmem:[%s4 + $0x1e0] sm:$0xff]
  %v475 = vld [vmem:[%s4 + $0x1e8] sm:$0xff]
  %v476 = vld [vmem:[%s4 + $0x1f0] sm:$0xff]
  %v477 = vld [vmem:[%s4 + $0x1f8] sm:$0xff]
  %v478 = vld [vmem:[%s4 + $0x200] sm:$0xff]
  %v479 = vld [vmem:[%s4 + $0x208] sm:$0xff]
  %v480 = vld [vmem:[%s4 + $0x210] sm:$0xff]
  %v481 = vld [vmem:[%s4 + $0x218] sm:$0xff]
  %v482 = vld [vmem:[%s4 + $0x220] sm:$0xff]
  %v483 = vld [vmem:[%s4 + $0x228] sm:$0xff]
  %v484 = vld [vmem:[%s4 + $0x230] sm:$0xff]
  %v485 = vld [vmem:[%s4 + $0x238] sm:$0xff]
  %v486 = vld [vmem:[%s4 + $0x240] sm:$0xff]
  %v487 = vld [vmem:[%s4 + $0x248] sm:$0xff]
  %v488 = vld [vmem:[%s4 + $0x250] sm:$0xff]
  %v489 = vld [vmem:[%s4 + $0x258] sm:$0xff]
  %v490 = vld [vmem:[%s4 + $0x260] sm:$0xff]
  %v491 = vld [vmem:[%s4 + $0x268] sm:$0xff]
  %v492 = vld [vmem:[%s4 + $0x270] sm:$0xff]
  %v493 = vld [vmem:[%s4 + $0x278] sm:$0xff]
  %v494 = vld [vmem:[%s4 + $0x280] sm:$0xff]
  %v495 = vld [vmem:[%s4 + $0x288] sm:$0xff]
  %v496 = vld [vmem:[%s4 + $0x290] sm:$0xff]
  %v497 = vld [vmem:[%s4 + $0x298] sm:$0xff]
  %v498 = vld [vmem:[%s4 + $0x2a0] sm:$0xff]
  %v499 = vld [vmem:[%s4 + $0x2a8] sm:$0xff]
  %v500 = vld [vmem:[%s4 + $0x2b0] sm:$0xff]
  %v501 = vld [vmem:[%s4 + $0x2b8] sm:$0xff]
  %v502 = vld [vmem:[%s4 + $0x2c0] sm:$0xff]
  %v503 = vld [vmem:[%s4 + $0x2c8] sm:$0xff]
  %v504 = vld [vmem:[%s4 + $0x2d0] sm:$0xff]
  %v505 = vld [vmem:[%s4 + $0x2d8] sm:$0xff]
  %v506 = vld [vmem:[%s4 + $0x2e0] sm:$0xff]
  %v507 = vld [vmem:[%s4 + $0x2e8] sm:$0xff]
  %v508 = vld [vmem:[%s4 + $0x2f0] sm:$0xff]
  %v509 = vld [vmem:[%s4 + $0x2f8] sm:$0xff]
  %v510 = vld [vmem:[%s4 + $0x300] sm:$0xff]
  %v511 = vld [vmem:[%s4 + $0x308] sm:$0xff]
  %v512 = vld [vmem:[%s4 + $0x310] sm:$0xff]
  %v513 = vld [vmem:[%s4 + $0x318] sm:$0xff]
  %v514 = vld [vmem:[%s4 + $0x320] sm:$0xff]
  %v515 = vld [vmem:[%s4 + $0x328] sm:$0xff]
  %v516 = vld [vmem:[%s4 + $0x330] sm:$0xff]
  %v517 = vld [vmem:[%s4 + $0x338] sm:$0xff]
  %v518 = vld [vmem:[%s4 + $0x340] sm:$0xff]
  %v519 = vld [vmem:[%s4 + $0x348] sm:$0xff]
  %v520 = vld [vmem:[%s4 + $0x350] sm:$0xff]
  %v521 = vld [vmem:[%s4 + $0x358] sm:$0xff]
  %v522 = vld [vmem:[%s4 + $0x360] sm:$0xff]
  %v523 = vld [vmem:[%s4 + $0x368] sm:$0xff]
  %v524 = vld [vmem:[%s4 + $0x370] sm:$0xff]
  %v525 = vld [vmem:[%s4 + $0x378] sm:$0xff]
  %v526 = vld [vmem:[%s4 + $0x380] sm:$0xff]
  %v527 = vld [vmem:[%s4 + $0x388] sm:$0xff]
  %v528 = vld [vmem:[%s4 + $0x390] sm:$0xff]
  %v529 = vld [vmem:[%s4 + $0x398] sm:$0xff]
  %v530 = vld [vmem:[%s4 + $0x3a0] sm:$0xff]
  %v531 = vld [vmem:[%s4 + $0x3a8] sm:$0xff]
  %v532 = vld [vmem:[%s4 + $0x3b0] sm:$0xff]
  %v533 = vld [vmem:[%s4 + $0x3b8] sm:$0xff]
  %v534 = vld [vmem:[%s4 + $0x3c0] sm:$0xff]
  %v535 = vld [vmem:[%s4 + $0x3c8] sm:$0xff]
  %v536 = vld [vmem:[%s4 + $0x3d0] sm:$0xff]
  %v537 = vld [vmem:[%s4 + $0x3d8] sm:$0xff]
  %v538 = vld [vmem:[%s4 + $0x3e0] sm:$0xff]
  %v539 = vld [vmem:[%s4 + $0x3e8] sm:$0xff]
  %v540 = vld [vmem:[%s4 + $0x3f0] sm:$0xff]
  %v541 = vld [vmem:[%s4 + $0x3f8] sm:$0xff]
  %v542 = vld [vmem:[%s1] sm:$0xff]
  %v543 = vlaneseq
  %v544 = vand.u32 %v543, 127
  %v545 = vadd.s32 %v544, 128
  %v546 = vadd.s32 %v544, 256
  %v547 = vadd.s32 %v544, 384
  %v548 = vadd.s32 %v544, 512
  %v549 = vadd.s32 %v544, 640
  %v550 = vadd.s32 %v544, 768
  %v551 = vadd.s32 %v544, 896
  %vm552 = vcmp.lt.s32.totalorder %v544, 0
  %v553 = vsub.s32 0, %v544
  %v554 = vsel %vm552, %v553, %v544
  %v555 = vshrl.u32 %v554, 8
  %v556 = vand.u32 %v554, 255
  %v557 = vsub.s32 0, %v556
  %v558 = vsel %vm552, %v557, %v556
  %vm559 = vcmp.lt.s32.totalorder %v545, 0
  %v560 = vsub.s32 0, %v545
  %v561 = vsel %vm559, %v560, %v545
  %v562 = vshrl.u32 %v561, 8
  %v563 = vand.u32 %v561, 255
  %v564 = vsub.s32 0, %v563
  %v565 = vsel %vm559, %v564, %v563
  %vm566 = vcmp.lt.s32.totalorder %v546, 0
  %v567 = vsub.s32 0, %v546
  %v568 = vsel %vm566, %v567, %v546
  %v569 = vshrl.u32 %v568, 8
  %v570 = vand.u32 %v568, 255
  %v571 = vsub.s32 0, %v570
  %v572 = vsel %vm566, %v571, %v570
  %vm573 = vcmp.lt.s32.totalorder %v547, 0
  %v574 = vsub.s32 0, %v547
  %v575 = vsel %vm573, %v574, %v547
  %v576 = vshrl.u32 %v575, 8
  %v577 = vand.u32 %v575, 255
  %v578 = vsub.s32 0, %v577
  %v579 = vsel %vm573, %v578, %v577
  %vm580 = vcmp.lt.s32.totalorder %v548, 0
  %v581 = vsub.s32 0, %v548
  %v582 = vsel %vm580, %v581, %v548
  %v583 = vshrl.u32 %v582, 8
  %v584 = vand.u32 %v582, 255
  %v585 = vsub.s32 0, %v584
  %v586 = vsel %vm580, %v585, %v584
  %vm587 = vcmp.lt.s32.totalorder %v549, 0
  %v588 = vsub.s32 0, %v549
  %v589 = vsel %vm587, %v588, %v549
  %v590 = vshrl.u32 %v589, 8
  %v591 = vand.u32 %v589, 255
  %v592 = vsub.s32 0, %v591
  %v593 = vsel %vm587, %v592, %v591
  %vm594 = vcmp.lt.s32.totalorder %v550, 0
  %v595 = vsub.s32 0, %v550
  %v596 = vsel %vm594, %v595, %v550
  %v597 = vshrl.u32 %v596, 8
  %v598 = vand.u32 %v596, 255
  %v599 = vsub.s32 0, %v598
  %v600 = vsel %vm594, %v599, %v598
  %vm601 = vcmp.lt.s32.totalorder %v551, 0
  %v602 = vsub.s32 0, %v551
  %v603 = vsel %vm601, %v602, %v551
  %v604 = vshrl.u32 %v603, 8
  %v605 = vand.u32 %v603, 255
  %v606 = vsub.s32 0, %v605
  %v607 = vsel %vm601, %v606, %v605
  %vm608 = vcmp.ne.s32.totalorder %v558, 0
  %vm609 = vcmp.ne.s32.totalorder %v565, 0
  %vm610 = vcmp.ne.s32.totalorder %v572, 0
  %vm611 = vcmp.ne.s32.totalorder %v579, 0
  %vm612 = vcmp.ne.s32.totalorder %v586, 0
  %vm613 = vcmp.ne.s32.totalorder %v593, 0
  %vm614 = vcmp.ne.s32.totalorder %v600, 0
  %vm615 = vcmp.ne.s32.totalorder %v607, 0
  %vm616 = vcmp.lt.s32.totalorder %v558, 0
  %vm617 = vcmp.lt.s32.totalorder %v565, 0
  %vm618 = vcmp.lt.s32.totalorder %v572, 0
  %vm619 = vcmp.lt.s32.totalorder %v579, 0
  %vm620 = vcmp.lt.s32.totalorder %v586, 0
  %vm621 = vcmp.lt.s32.totalorder %v593, 0
  %vm622 = vcmp.lt.s32.totalorder %v600, 0
  %vm623 = vcmp.lt.s32.totalorder %v607, 0
  %vm624 = vmand %vm616, %vm608
  %vm625 = vmand %vm617, %vm609
  %vm626 = vmand %vm618, %vm610
  %vm627 = vmand %vm619, %vm611
  %vm628 = vmand %vm620, %vm612
  %vm629 = vmand %vm621, %vm613
  %vm630 = vmand %vm622, %vm614
  %vm631 = vmand %vm623, %vm615
  %v632 = vadd.s32 %v558, 256
  %v633 = vadd.s32 %v565, 256
  %v634 = vadd.s32 %v572, 256
  %v635 = vadd.s32 %v579, 256
  %v636 = vadd.s32 %v586, 256
  %v637 = vadd.s32 %v593, 256
  %v638 = vadd.s32 %v600, 256
  %v639 = vadd.s32 %v607, 256
  %v640 = vsel %vm624, %v632, %v558
  %v641 = vsel %vm625, %v633, %v565
  %v642 = vsel %vm626, %v634, %v572
  %v643 = vsel %vm627, %v635, %v579
  %v644 = vsel %vm628, %v636, %v586
  %v645 = vsel %vm629, %v637, %v593
  %v646 = vsel %vm630, %v638, %v600
  %v647 = vsel %vm631, %v639, %v607
  %vm648 = vcmp.lt.s32.totalorder %v640, 128
  %vm649 = vcmp.lt.s32.totalorder %v641, 128
  %vm650 = vcmp.lt.s32.totalorder %v642, 128
  %vm651 = vcmp.lt.s32.totalorder %v643, 128
  %vm652 = vcmp.lt.s32.totalorder %v644, 128
  %vm653 = vcmp.lt.s32.totalorder %v645, 128
  %vm654 = vcmp.lt.s32.totalorder %v646, 128
  %vm655 = vcmp.lt.s32.totalorder %v647, 128
  %vm656 = vcmp.lt.s32.totalorder %v544, 128
  %vm657 = vcmp.lt.s32.totalorder %v545, 128
  %v658 = vld [vmem:[#allocation2] sm:$0xff]
  %v659 = vld [vmem:[#allocation2 + $0x8] sm:$0xff]
  %v660 = vld [vmem:[#allocation2 + $0x10] sm:$0xff]
  %v661 = vld [vmem:[#allocation2 + $0x18] sm:$0xff]
  %v662 = vld [vmem:[#allocation2 + $0x20] sm:$0xff]
  %v663 = vld [vmem:[#allocation2 + $0x28] sm:$0xff]
  %v664 = vld [vmem:[#allocation2 + $0x30] sm:$0xff]
  %v665 = vld [vmem:[#allocation2 + $0x38] sm:$0xff]
  %v666 = vld [vmem:[#allocation2 + $0x1c0] sm:$0xff]
  %v667 = vld [vmem:[#allocation2 + $0x1c8] sm:$0xff]
  %v668 = vld [vmem:[#allocation2 + $0x1d0] sm:$0xff]
  %v669 = vld [vmem:[#allocation2 + $0x1d8] sm:$0xff]
  %v670 = vld [vmem:[#allocation2 + $0x1e0] sm:$0xff]
  %v671 = vld [vmem:[#allocation2 + $0x1e8] sm:$0xff]
  %v672 = vld [vmem:[#allocation2 + $0x1f0] sm:$0xff]
  %v673 = vld [vmem:[#allocation2 + $0x1f8] sm:$0xff]
  %v674 = vsel %vm648, 1, 0
  %v675 = vsel %vm649, 1, 0
  %v676 = vsel %vm650, 1, 0
  %v677 = vsel %vm651, 1, 0
  %v678 = vsel %vm652, 1, 0
  %v679 = vsel %vm653, 1, 0
  %v680 = vsel %vm654, 1, 0
  %v681 = vsel %vm655, 1, 0
  %vm682 = vcmp.eq.s32.totalorder %v674, 1
  %vm683 = vcmp.eq.s32.totalorder %v675, 1
  %vm684 = vcmp.eq.s32.totalorder %v676, 1
  %vm685 = vcmp.eq.s32.totalorder %v677, 1
  %vm686 = vcmp.eq.s32.totalorder %v678, 1
  %vm687 = vcmp.eq.s32.totalorder %v679, 1
  %vm688 = vcmp.eq.s32.totalorder %v680, 1
  %vm689 = vcmp.eq.s32.totalorder %v681, 1
  %v690 = vsel %vm682, %v658, %v666
  %v691 = vsel %vm683, %v659, %v667
  %v692 = vsel %vm684, %v660, %v668
  %v693 = vsel %vm685, %v661, %v669
  %v694 = vsel %vm686, %v662, %v670
  %v695 = vsel %vm687, %v663, %v671
  %v696 = vsel %vm688, %v664, %v672
  %v697 = vsel %vm689, %v665, %v673
  %v826 = vunpack.c.l.b16 %v414
  %v827 = vunpack.c.h.b16 %v414
  %v828 = vunpack.c.l.b16 %v415
  %v829 = vunpack.c.h.b16 %v415
  %v830 = vunpack.c.l.b16 %v416
  %v831 = vunpack.c.h.b16 %v416
  %v832 = vunpack.c.l.b16 %v417
  %v833 = vunpack.c.h.b16 %v417
  %v834 = vunpack.c.l.b16 %v418
  %v835 = vunpack.c.h.b16 %v418
  %v836 = vunpack.c.l.b16 %v419
  %v837 = vunpack.c.h.b16 %v419
  %v838 = vunpack.c.l.b16 %v420
  %v839 = vunpack.c.h.b16 %v420
  %v840 = vunpack.c.l.b16 %v421
  %v841 = vunpack.c.h.b16 %v421
  %v842 = vunpack.c.l.b16 %v422
  %v843 = vunpack.c.h.b16 %v422
  %v844 = vunpack.c.l.b16 %v423
  %v845 = vunpack.c.h.b16 %v423
  %v846 = vunpack.c.l.b16 %v424
  %v847 = vunpack.c.h.b16 %v424
  %v848 = vunpack.c.l.b16 %v425
  %v849 = vunpack.c.h.b16 %v425
  %v850 = vunpack.c.l.b16 %v426
  %v851 = vunpack.c.h.b16 %v426
  %v852 = vunpack.c.l.b16 %v427
  %v853 = vunpack.c.h.b16 %v427
  %v854 = vunpack.c.l.b16 %v428
  %v855 = vunpack.c.h.b16 %v428
  %v856 = vunpack.c.l.b16 %v429
  %v857 = vunpack.c.h.b16 %v429
  %v858 = vunpack.c.l.b16 %v430
  %v859 = vunpack.c.h.b16 %v430
  %v860 = vunpack.c.l.b16 %v431
  %v861 = vunpack.c.h.b16 %v431
  %v862 = vunpack.c.l.b16 %v432
  %v863 = vunpack.c.h.b16 %v432
  %v864 = vunpack.c.l.b16 %v433
  %v865 = vunpack.c.h.b16 %v433
  %v866 = vunpack.c.l.b16 %v434
  %v867 = vunpack.c.h.b16 %v434
  %v868 = vunpack.c.l.b16 %v435
  %v869 = vunpack.c.h.b16 %v435
  %v870 = vunpack.c.l.b16 %v436
  %v871 = vunpack.c.h.b16 %v436
  %v872 = vunpack.c.l.b16 %v437
  %v873 = vunpack.c.h.b16 %v437
  %v874 = vunpack.c.l.b16 %v438
  %v875 = vunpack.c.h.b16 %v438
  %v876 = vunpack.c.l.b16 %v439
  %v877 = vunpack.c.h.b16 %v439
  %v878 = vunpack.c.l.b16 %v440
  %v879 = vunpack.c.h.b16 %v440
  %v880 = vunpack.c.l.b16 %v441
  %v881 = vunpack.c.h.b16 %v441
  %v882 = vunpack.c.l.b16 %v442
  %v883 = vunpack.c.h.b16 %v442
  %v884 = vunpack.c.l.b16 %v443
  %v885 = vunpack.c.h.b16 %v443
  %v886 = vunpack.c.l.b16 %v444
  %v887 = vunpack.c.h.b16 %v444
  %v888 = vunpack.c.l.b16 %v445
  %v889 = vunpack.c.h.b16 %v445
  %v890 = vunpack.c.l.b16 %v446
  %v891 = vunpack.c.h.b16 %v446
  %v892 = vunpack.c.l.b16 %v447
  %v893 = vunpack.c.h.b16 %v447
  %v894 = vunpack.c.l.b16 %v448
  %v895 = vunpack.c.h.b16 %v448
  %v896 = vunpack.c.l.b16 %v449
  %v897 = vunpack.c.h.b16 %v449
  %v898 = vunpack.c.l.b16 %v450
  %v899 = vunpack.c.h.b16 %v450
  %v900 = vunpack.c.l.b16 %v451
  %v901 = vunpack.c.h.b16 %v451
  %v902 = vunpack.c.l.b16 %v452
  %v903 = vunpack.c.h.b16 %v452
  %v904 = vunpack.c.l.b16 %v453
  %v905 = vunpack.c.h.b16 %v453
  %v906 = vunpack.c.l.b16 %v454
  %v907 = vunpack.c.h.b16 %v454
  %v908 = vunpack.c.l.b16 %v455
  %v909 = vunpack.c.h.b16 %v455
  %v910 = vunpack.c.l.b16 %v456
  %v911 = vunpack.c.h.b16 %v456
  %v912 = vunpack.c.l.b16 %v457
  %v913 = vunpack.c.h.b16 %v457
  %v914 = vunpack.c.l.b16 %v458
  %v915 = vunpack.c.h.b16 %v458
  %v916 = vunpack.c.l.b16 %v459
  %v917 = vunpack.c.h.b16 %v459
  %v918 = vunpack.c.l.b16 %v460
  %v919 = vunpack.c.h.b16 %v460
  %v920 = vunpack.c.l.b16 %v461
  %v921 = vunpack.c.h.b16 %v461
  %v922 = vunpack.c.l.b16 %v462
  %v923 = vunpack.c.h.b16 %v462
  %v924 = vunpack.c.l.b16 %v463
  %v925 = vunpack.c.h.b16 %v463
  %v926 = vunpack.c.l.b16 %v464
  %v927 = vunpack.c.h.b16 %v464
  %v928 = vunpack.c.l.b16 %v465
  %v929 = vunpack.c.h.b16 %v465
  %v930 = vunpack.c.l.b16 %v466
  %v931 = vunpack.c.h.b16 %v466
  %v932 = vunpack.c.l.b16 %v467
  %v933 = vunpack.c.h.b16 %v467
  %v934 = vunpack.c.l.b16 %v468
  %v935 = vunpack.c.h.b16 %v468
  %v936 = vunpack.c.l.b16 %v469
  %v937 = vunpack.c.h.b16 %v469
  %v938 = vunpack.c.l.b16 %v470
  %v939 = vunpack.c.h.b16 %v470
  %v940 = vunpack.c.l.b16 %v471
  %v941 = vunpack.c.h.b16 %v471
  %v942 = vunpack.c.l.b16 %v472
  %v943 = vunpack.c.h.b16 %v472
  %v944 = vunpack.c.l.b16 %v473
  %v945 = vunpack.c.h.b16 %v473
  %v946 = vunpack.c.l.b16 %v474
  %v947 = vunpack.c.h.b16 %v474
  %v948 = vunpack.c.l.b16 %v475
  %v949 = vunpack.c.h.b16 %v475
  %v950 = vunpack.c.l.b16 %v476
  %v951 = vunpack.c.h.b16 %v476
  %v952 = vunpack.c.l.b16 %v477
  %v953 = vunpack.c.h.b16 %v477
  %v954 = vunpack.c.l.b16 %v478
  %v955 = vunpack.c.h.b16 %v478
  %v956 = vunpack.c.l.b16 %v479
  %v957 = vunpack.c.h.b16 %v479
  %v958 = vunpack.c.l.b16 %v480
  %v959 = vunpack.c.h.b16 %v480
  %v960 = vunpack.c.l.b16 %v481
  %v961 = vunpack.c.h.b16 %v481
  %v962 = vunpack.c.l.b16 %v482
  %v963 = vunpack.c.h.b16 %v482
  %v964 = vunpack.c.l.b16 %v483
  %v965 = vunpack.c.h.b16 %v483
  %v966 = vunpack.c.l.b16 %v484
  %v967 = vunpack.c.h.b16 %v484
  %v968 = vunpack.c.l.b16 %v485
  %v969 = vunpack.c.h.b16 %v485
  %v970 = vunpack.c.l.b16 %v486
  %v971 = vunpack.c.h.b16 %v486
  %v972 = vunpack.c.l.b16 %v487
  %v973 = vunpack.c.h.b16 %v487
  %v974 = vunpack.c.l.b16 %v488
  %v975 = vunpack.c.h.b16 %v488
  %v976 = vunpack.c.l.b16 %v489
  %v977 = vunpack.c.h.b16 %v489
  %v978 = vunpack.c.l.b16 %v490
  %v979 = vunpack.c.h.b16 %v490
  %v980 = vunpack.c.l.b16 %v491
  %v981 = vunpack.c.h.b16 %v491
  %v982 = vunpack.c.l.b16 %v492
  %v983 = vunpack.c.h.b16 %v492
  %v984 = vunpack.c.l.b16 %v493
  %v985 = vunpack.c.h.b16 %v493
  %v986 = vunpack.c.l.b16 %v494
  %v987 = vunpack.c.h.b16 %v494
  %v988 = vunpack.c.l.b16 %v495
  %v989 = vunpack.c.h.b16 %v495
  %v990 = vunpack.c.l.b16 %v496
  %v991 = vunpack.c.h.b16 %v496
  %v992 = vunpack.c.l.b16 %v497
  %v993 = vunpack.c.h.b16 %v497
  %v994 = vunpack.c.l.b16 %v498
  %v995 = vunpack.c.h.b16 %v498
  %v996 = vunpack.c.l.b16 %v499
  %v997 = vunpack.c.h.b16 %v499
  %v998 = vunpack.c.l.b16 %v500
  %v999 = vunpack.c.h.b16 %v500
  %v1000 = vunpack.c.l.b16 %v501
  %v1001 = vunpack.c.h.b16 %v501
  %v1002 = vunpack.c.l.b16 %v502
  %v1003 = vunpack.c.h.b16 %v502
  %v1004 = vunpack.c.l.b16 %v503
  %v1005 = vunpack.c.h.b16 %v503
  %v1006 = vunpack.c.l.b16 %v504
  %v1007 = vunpack.c.h.b16 %v504
  %v1008 = vunpack.c.l.b16 %v505
  %v1009 = vunpack.c.h.b16 %v505
  %v1010 = vunpack.c.l.b16 %v506
  %v1011 = vunpack.c.h.b16 %v506
  %v1012 = vunpack.c.l.b16 %v507
  %v1013 = vunpack.c.h.b16 %v507
  %v1014 = vunpack.c.l.b16 %v508
  %v1015 = vunpack.c.h.b16 %v508
  %v1016 = vunpack.c.l.b16 %v509
  %v1017 = vunpack.c.h.b16 %v509
  %v1018 = vunpack.c.l.b16 %v510
  %v1019 = vunpack.c.h.b16 %v510
  %v1020 = vunpack.c.l.b16 %v511
  %v1021 = vunpack.c.h.b16 %v511
  %v1022 = vunpack.c.l.b16 %v512
  %v1023 = vunpack.c.h.b16 %v512
  %v1024 = vunpack.c.l.b16 %v513
  %v1025 = vunpack.c.h.b16 %v513
  %v1026 = vunpack.c.l.b16 %v514
  %v1027 = vunpack.c.h.b16 %v514
  %v1028 = vunpack.c.l.b16 %v515
  %v1029 = vunpack.c.h.b16 %v515
  %v1030 = vunpack.c.l.b16 %v516
  %v1031 = vunpack.c.h.b16 %v516
  %v1032 = vunpack.c.l.b16 %v517
  %v1033 = vunpack.c.h.b16 %v517
  %v1034 = vunpack.c.l.b16 %v518
  %v1035 = vunpack.c.h.b16 %v518
  %v1036 = vunpack.c.l.b16 %v519
  %v1037 = vunpack.c.h.b16 %v519
  %v1038 = vunpack.c.l.b16 %v520
  %v1039 = vunpack.c.h.b16 %v520
  %v1040 = vunpack.c.l.b16 %v521
  %v1041 = vunpack.c.h.b16 %v521
  %v1042 = vunpack.c.l.b16 %v522
  %v1043 = vunpack.c.h.b16 %v522
  %v1044 = vunpack.c.l.b16 %v523
  %v1045 = vunpack.c.h.b16 %v523
  %v1046 = vunpack.c.l.b16 %v524
  %v1047 = vunpack.c.h.b16 %v524
  %v1048 = vunpack.c.l.b16 %v525
  %v1049 = vunpack.c.h.b16 %v525
  %v1050 = vunpack.c.l.b16 %v526
  %v1051 = vunpack.c.h.b16 %v526
  %v1052 = vunpack.c.l.b16 %v527
  %v1053 = vunpack.c.h.b16 %v527
  %v1054 = vunpack.c.l.b16 %v528
  %v1055 = vunpack.c.h.b16 %v528
  %v1056 = vunpack.c.l.b16 %v529
  %v1057 = vunpack.c.h.b16 %v529
  %v1058 = vunpack.c.l.b16 %v530
  %v1059 = vunpack.c.h.b16 %v530
  %v1060 = vunpack.c.l.b16 %v531
  %v1061 = vunpack.c.h.b16 %v531
  %v1062 = vunpack.c.l.b16 %v532
  %v1063 = vunpack.c.h.b16 %v532
  %v1064 = vunpack.c.l.b16 %v533
  %v1065 = vunpack.c.h.b16 %v533
  %v1066 = vunpack.c.l.b16 %v534
  %v1067 = vunpack.c.h.b16 %v534
  %v1068 = vunpack.c.l.b16 %v535
  %v1069 = vunpack.c.h.b16 %v535
  %v1070 = vunpack.c.l.b16 %v536
  %v1071 = vunpack.c.h.b16 %v536
  %v1072 = vunpack.c.l.b16 %v537
  %v1073 = vunpack.c.h.b16 %v537
  %v1074 = vunpack.c.l.b16 %v538
  %v1075 = vunpack.c.h.b16 %v538
  %v1076 = vunpack.c.l.b16 %v539
  %v1077 = vunpack.c.h.b16 %v539
  %v1078 = vunpack.c.l.b16 %v540
  %v1079 = vunpack.c.h.b16 %v540
  %v1080 = vunpack.c.l.b16 %v541
  %v1081 = vunpack.c.h.b16 %v541
  %v1082 = vpack.c.b16 %v834, %v826
  %v1083 = vpack.c.b16 %v835, %v827
  %v1084 = vpack.c.b16 %v836, %v828
  %v1085 = vpack.c.b16 %v837, %v829
  %v1086 = vpack.c.b16 %v838, %v830
  %v1087 = vpack.c.b16 %v839, %v831
  %v1088 = vpack.c.b16 %v840, %v832
  %v1089 = vpack.c.b16 %v841, %v833
  %v1090 = vpack.c.b16 %v850, %v842
  %v1091 = vpack.c.b16 %v851, %v843
  %v1092 = vpack.c.b16 %v852, %v844
  %v1093 = vpack.c.b16 %v853, %v845
  %v1094 = vpack.c.b16 %v854, %v846
  %v1095 = vpack.c.b16 %v855, %v847
  %v1096 = vpack.c.b16 %v856, %v848
  %v1097 = vpack.c.b16 %v857, %v849
  %v1098 = vpack.c.b16 %v866, %v858
  %v1099 = vpack.c.b16 %v867, %v859
  %v1100 = vpack.c.b16 %v868, %v860
  %v1101 = vpack.c.b16 %v869, %v861
  %v1102 = vpack.c.b16 %v870, %v862
  %v1103 = vpack.c.b16 %v871, %v863
  %v1104 = vpack.c.b16 %v872, %v864
  %v1105 = vpack.c.b16 %v873, %v865
  %v1106 = vpack.c.b16 %v882, %v874
  %v1107 = vpack.c.b16 %v883, %v875
  %v1108 = vpack.c.b16 %v884, %v876
  %v1109 = vpack.c.b16 %v885, %v877
  %v1110 = vpack.c.b16 %v886, %v878
  %v1111 = vpack.c.b16 %v887, %v879
  %v1112 = vpack.c.b16 %v888, %v880
  %v1113 = vpack.c.b16 %v889, %v881
  %v1114 = vpack.c.b16 %v898, %v890
  %v1115 = vpack.c.b16 %v899, %v891
  %v1116 = vpack.c.b16 %v900, %v892
  %v1117 = vpack.c.b16 %v901, %v893
  %v1118 = vpack.c.b16 %v902, %v894
  %v1119 = vpack.c.b16 %v903, %v895
  %v1120 = vpack.c.b16 %v904, %v896
  %v1121 = vpack.c.b16 %v905, %v897
  %v1122 = vpack.c.b16 %v914, %v906
  %v1123 = vpack.c.b16 %v915, %v907
  %v1124 = vpack.c.b16 %v916, %v908
  %v1125 = vpack.c.b16 %v917, %v909
  %v1126 = vpack.c.b16 %v918, %v910
  %v1127 = vpack.c.b16 %v919, %v911
  %v1128 = vpack.c.b16 %v920, %v912
  %v1129 = vpack.c.b16 %v921, %v913
  %v1130 = vpack.c.b16 %v930, %v922
  %v1131 = vpack.c.b16 %v931, %v923
  %v1132 = vpack.c.b16 %v932, %v924
  %v1133 = vpack.c.b16 %v933, %v925
  %v1134 = vpack.c.b16 %v934, %v926
  %v1135 = vpack.c.b16 %v935, %v927
  %v1136 = vpack.c.b16 %v936, %v928
  %v1137 = vpack.c.b16 %v937, %v929
  %v1138 = vpack.c.b16 %v946, %v938
  %v1139 = vpack.c.b16 %v947, %v939
  %v1140 = vpack.c.b16 %v948, %v940
  %v1141 = vpack.c.b16 %v949, %v941
  %v1142 = vpack.c.b16 %v950, %v942
  %v1143 = vpack.c.b16 %v951, %v943
  %v1144 = vpack.c.b16 %v952, %v944
  %v1145 = vpack.c.b16 %v953, %v945
  %v1146 = vpack.c.b16 %v962, %v954
  %v1147 = vpack.c.b16 %v963, %v955
  %v1148 = vpack.c.b16 %v964, %v956
  %v1149 = vpack.c.b16 %v965, %v957
  %v1150 = vpack.c.b16 %v966, %v958
  %v1151 = vpack.c.b16 %v967, %v959
  %v1152 = vpack.c.b16 %v968, %v960
  %v1153 = vpack.c.b16 %v969, %v961
  %v1154 = vpack.c.b16 %v978, %v970
  %v1155 = vpack.c.b16 %v979, %v971
  %v1156 = vpack.c.b16 %v980, %v972
  %v1157 = vpack.c.b16 %v981, %v973
  %v1158 = vpack.c.b16 %v982, %v974
  %v1159 = vpack.c.b16 %v983, %v975
  %v1160 = vpack.c.b16 %v984, %v976
  %v1161 = vpack.c.b16 %v985, %v977
  %v1162 = vpack.c.b16 %v994, %v986
  %v1163 = vpack.c.b16 %v995, %v987
  %v1164 = vpack.c.b16 %v996, %v988
  %v1165 = vpack.c.b16 %v997, %v989
  %v1166 = vpack.c.b16 %v998, %v990
  %v1167 = vpack.c.b16 %v999, %v991
  %v1168 = vpack.c.b16 %v1000, %v992
  %v1169 = vpack.c.b16 %v1001, %v993
  %v1170 = vpack.c.b16 %v1010, %v1002
  %v1171 = vpack.c.b16 %v1011, %v1003
  %v1172 = vpack.c.b16 %v1012, %v1004
  %v1173 = vpack.c.b16 %v1013, %v1005
  %v1174 = vpack.c.b16 %v1014, %v1006
  %v1175 = vpack.c.b16 %v1015, %v1007
  %v1176 = vpack.c.b16 %v1016, %v1008
  %v1177 = vpack.c.b16 %v1017, %v1009
  %v1178 = vpack.c.b16 %v1026, %v1018
  %v1179 = vpack.c.b16 %v1027, %v1019
  %v1180 = vpack.c.b16 %v1028, %v1020
  %v1181 = vpack.c.b16 %v1029, %v1021
  %v1182 = vpack.c.b16 %v1030, %v1022
  %v1183 = vpack.c.b16 %v1031, %v1023
  %v1184 = vpack.c.b16 %v1032, %v1024
  %v1185 = vpack.c.b16 %v1033, %v1025
  %v1186 = vpack.c.b16 %v1042, %v1034
  %v1187 = vpack.c.b16 %v1043, %v1035
  %v1188 = vpack.c.b16 %v1044, %v1036
  %v1189 = vpack.c.b16 %v1045, %v1037
  %v1190 = vpack.c.b16 %v1046, %v1038
  %v1191 = vpack.c.b16 %v1047, %v1039
  %v1192 = vpack.c.b16 %v1048, %v1040
  %v1193 = vpack.c.b16 %v1049, %v1041
  %v1194 = vpack.c.b16 %v1058, %v1050
  %v1195 = vpack.c.b16 %v1059, %v1051
  %v1196 = vpack.c.b16 %v1060, %v1052
  %v1197 = vpack.c.b16 %v1061, %v1053
  %v1198 = vpack.c.b16 %v1062, %v1054
  %v1199 = vpack.c.b16 %v1063, %v1055
  %v1200 = vpack.c.b16 %v1064, %v1056
  %v1201 = vpack.c.b16 %v1065, %v1057
  %v1202 = vpack.c.b16 %v1074, %v1066
  %v1203 = vpack.c.b16 %v1075, %v1067
  %v1204 = vpack.c.b16 %v1076, %v1068
  %v1205 = vpack.c.b16 %v1077, %v1069
  %v1206 = vpack.c.b16 %v1078, %v1070
  %v1207 = vpack.c.b16 %v1079, %v1071
  %v1208 = vpack.c.b16 %v1080, %v1072
  %v1209 = vpack.c.b16 %v1081, %v1073
  %1338 = vmatpush.bf16.msra.mxu0 %v1138
  %1339 = vmatpush.bf16.msra.mxu0 %v1130
  %1340 = vmatpush.bf16.msra.mxu0 %v1122
  %1341 = vmatpush.bf16.msra.mxu0 %v1114
  %1342 = vmatpush.bf16.msra.mxu0 %v1106
  %1343 = vmatpush.bf16.msra.mxu0 %v1098
  %1344 = vmatpush.bf16.msra.mxu0 %v1090
  %1345 = vmatpush.bf16.msra.mxu0 %v1082
  %1346 = vmatmul.bf16.gmra.mxu0 0
  %v1347 = vpop.f32.mrf.mxu0
  %v1348 = vadd.f32 0.0, %v1347
  %v1349 = vpop.f32.mrf.mxu0
  %1350 = vdwg.mxu0
  %1351 = vmatpush.bf16.msra.mxu0 %v1202
  %1352 = vmatpush.bf16.msra.mxu0 %v1194
  %1353 = vmatpush.bf16.msra.mxu0 %v1186
  %1354 = vmatpush.bf16.msra.mxu0 %v1178
  %1355 = vmatpush.bf16.msra.mxu0 %v1170
  %1356 = vmatpush.bf16.msra.mxu0 %v1162
  %1357 = vmatpush.bf16.msra.mxu0 %v1154
  %1358 = vmatpush.bf16.msra.mxu0 %v1146
  %1359 = vmatmul.bf16.gmra.mxu0 0
  %v1360 = vpop.f32.mrf.mxu0
  %v1361 = vadd.f32 %v1348, %v1360
  %v1362 = vpop.f32.mrf.mxu0
  %1363 = vdwg.mxu0
  %1364 = vmatpush.bf16.msra.mxu0 %v1139
  %1365 = vmatpush.bf16.msra.mxu0 %v1131
  %1366 = vmatpush.bf16.msra.mxu0 %v1123
  %1367 = vmatpush.bf16.msra.mxu0 %v1115
  %1368 = vmatpush.bf16.msra.mxu0 %v1107
  %1369 = vmatpush.bf16.msra.mxu0 %v1099
  %1370 = vmatpush.bf16.msra.mxu0 %v1091
  %1371 = vmatpush.bf16.msra.mxu0 %v1083
  %1372 = vmatmul.bf16.gmra.mxu0 0
  %v1373 = vpop.f32.mrf.mxu0
  %v1374 = vadd.f32 0.0, %v1373
  %v1375 = vpop.f32.mrf.mxu0
  %1376 = vdwg.mxu0
  %1377 = vmatpush.bf16.msra.mxu0 %v1203
  %1378 = vmatpush.bf16.msra.mxu0 %v1195
  %1379 = vmatpush.bf16.msra.mxu0 %v1187
  %1380 = vmatpush.bf16.msra.mxu0 %v1179
  %1381 = vmatpush.bf16.msra.mxu0 %v1171
  %1382 = vmatpush.bf16.msra.mxu0 %v1163
  %1383 = vmatpush.bf16.msra.mxu0 %v1155
  %1384 = vmatpush.bf16.msra.mxu0 %v1147
  %1385 = vmatmul.bf16.gmra.mxu0 0
  %v1386 = vpop.f32.mrf.mxu0
  %v1387 = vadd.f32 %v1374, %v1386
  %v1388 = vpop.f32.mrf.mxu0
  %1389 = vdwg.mxu0
  %1390 = vmatpush.bf16.msra.mxu0 %v1140
  %1391 = vmatpush.bf16.msra.mxu0 %v1132
  %1392 = vmatpush.bf16.msra.mxu0 %v1124
  %1393 = vmatpush.bf16.msra.mxu0 %v1116
  %1394 = vmatpush.bf16.msra.mxu0 %v1108
  %1395 = vmatpush.bf16.msra.mxu0 %v1100
  %1396 = vmatpush.bf16.msra.mxu0 %v1092
  %1397 = vmatpush.bf16.msra.mxu0 %v1084
  %1398 = vmatmul.bf16.gmra.mxu0 0
  %v1399 = vpop.f32.mrf.mxu0
  %v1400 = vadd.f32 0.0, %v1399
  %v1401 = vpop.f32.mrf.mxu0
  %1402 = vdwg.mxu0
  %1403 = vmatpush.bf16.msra.mxu0 %v1204
  %1404 = vmatpush.bf16.msra.mxu0 %v1196
  %1405 = vmatpush.bf16.msra.mxu0 %v1188
  %1406 = vmatpush.bf16.msra.mxu0 %v1180
  %1407 = vmatpush.bf16.msra.mxu0 %v1172
  %1408 = vmatpush.bf16.msra.mxu0 %v1164
  %1409 = vmatpush.bf16.msra.mxu0 %v1156
  %1410 = vmatpush.bf16.msra.mxu0 %v1148
  %1411 = vmatmul.bf16.gmra.mxu0 0
  %v1412 = vpop.f32.mrf.mxu0
  %v1413 = vadd.f32 %v1400, %v1412
  %v1414 = vpop.f32.mrf.mxu0
  %1415 = vdwg.mxu0
  %1416 = vmatpush.bf16.msra.mxu0 %v1141
  %1417 = vmatpush.bf16.msra.mxu0 %v1133
  %1418 = vmatpush.bf16.msra.mxu0 %v1125
  %1419 = vmatpush.bf16.msra.mxu0 %v1117
  %1420 = vmatpush.bf16.msra.mxu0 %v1109
  %1421 = vmatpush.bf16.msra.mxu0 %v1101
  %1422 = vmatpush.bf16.msra.mxu0 %v1093
  %1423 = vmatpush.bf16.msra.mxu0 %v1085
  %1424 = vmatmul.bf16.gmra.mxu0 0
  %v1425 = vpop.f32.mrf.mxu0
  %v1426 = vadd.f32 0.0, %v1425
  %v1427 = vpop.f32.mrf.mxu0
  %1428 = vdwg.mxu0
  %1429 = vmatpush.bf16.msra.mxu0 %v1205
  %1430 = vmatpush.bf16.msra.mxu0 %v1197
  %1431 = vmatpush.bf16.msra.mxu0 %v1189
  %1432 = vmatpush.bf16.msra.mxu0 %v1181
  %1433 = vmatpush.bf16.msra.mxu0 %v1173
  %1434 = vmatpush.bf16.msra.mxu0 %v1165
  %1435 = vmatpush.bf16.msra.mxu0 %v1157
  %1436 = vmatpush.bf16.msra.mxu0 %v1149
  %1437 = vmatmul.bf16.gmra.mxu0 0
  %v1438 = vpop.f32.mrf.mxu0
  %v1439 = vadd.f32 %v1426, %v1438
  %v1440 = vpop.f32.mrf.mxu0
  %1441 = vdwg.mxu0
  %1442 = vmatpush.bf16.msra.mxu0 %v1142
  %1443 = vmatpush.bf16.msra.mxu0 %v1134
  %1444 = vmatpush.bf16.msra.mxu0 %v1126
  %1445 = vmatpush.bf16.msra.mxu0 %v1118
  %1446 = vmatpush.bf16.msra.mxu0 %v1110
  %1447 = vmatpush.bf16.msra.mxu0 %v1102
  %1448 = vmatpush.bf16.msra.mxu0 %v1094
  %1449 = vmatpush.bf16.msra.mxu0 %v1086
  %1450 = vmatmul.bf16.gmra.mxu0 0
  %v1451 = vpop.f32.mrf.mxu0
  %v1452 = vadd.f32 0.0, %v1451
  %v1453 = vpop.f32.mrf.mxu0
  %1454 = vdwg.mxu0
  %1455 = vmatpush.bf16.msra.mxu0 %v1206
  %1456 = vmatpush.bf16.msra.mxu0 %v1198
  %1457 = vmatpush.bf16.msra.mxu0 %v1190
  %1458 = vmatpush.bf16.msra.mxu0 %v1182
  %1459 = vmatpush.bf16.msra.mxu0 %v1174
  %1460 = vmatpush.bf16.msra.mxu0 %v1166
  %1461 = vmatpush.bf16.msra.mxu0 %v1158
  %1462 = vmatpush.bf16.msra.mxu0 %v1150
  %1463 = vmatmul.bf16.gmra.mxu0 0
  %v1464 = vpop.f32.mrf.mxu0
  %v1465 = vadd.f32 %v1452, %v1464
  %v1466 = vpop.f32.mrf.mxu0
  %1467 = vdwg.mxu0
  %1468 = vmatpush.bf16.msra.mxu0 %v1143
  %1469 = vmatpush.bf16.msra.mxu0 %v1135
  %1470 = vmatpush.bf16.msra.mxu0 %v1127
  %1471 = vmatpush.bf16.msra.mxu0 %v1119
  %1472 = vmatpush.bf16.msra.mxu0 %v1111
  %1473 = vmatpush.bf16.msra.mxu0 %v1103
  %1474 = vmatpush.bf16.msra.mxu0 %v1095
  %1475 = vmatpush.bf16.msra.mxu0 %v1087
  %1476 = vmatmul.bf16.gmra.mxu0 0
  %v1477 = vpop.f32.mrf.mxu0
  %v1478 = vadd.f32 0.0, %v1477
  %v1479 = vpop.f32.mrf.mxu0
  %1480 = vdwg.mxu0
  %1481 = vmatpush.bf16.msra.mxu0 %v1207
  %1482 = vmatpush.bf16.msra.mxu0 %v1199
  %1483 = vmatpush.bf16.msra.mxu0 %v1191
  %1484 = vmatpush.bf16.msra.mxu0 %v1183
  %1485 = vmatpush.bf16.msra.mxu0 %v1175
  %1486 = vmatpush.bf16.msra.mxu0 %v1167
  %1487 = vmatpush.bf16.msra.mxu0 %v1159
  %1488 = vmatpush.bf16.msra.mxu0 %v1151
  %1489 = vmatmul.bf16.gmra.mxu0 0
  %v1490 = vpop.f32.mrf.mxu0
  %v1491 = vadd.f32 %v1478, %v1490
  %v1492 = vpop.f32.mrf.mxu0
  %1493 = vdwg.mxu0
  %1494 = vmatpush.bf16.msra.mxu0 %v1144
  %1495 = vmatpush.bf16.msra.mxu0 %v1136
  %1496 = vmatpush.bf16.msra.mxu0 %v1128
  %1497 = vmatpush.bf16.msra.mxu0 %v1120
  %1498 = vmatpush.bf16.msra.mxu0 %v1112
  %1499 = vmatpush.bf16.msra.mxu0 %v1104
  %1500 = vmatpush.bf16.msra.mxu0 %v1096
  %1501 = vmatpush.bf16.msra.mxu0 %v1088
  %1502 = vmatmul.bf16.gmra.mxu0 0
  %v1503 = vpop.f32.mrf.mxu0
  %v1504 = vadd.f32 0.0, %v1503
  %v1505 = vpop.f32.mrf.mxu0
  %1506 = vdwg.mxu0
  %1507 = vmatpush.bf16.msra.mxu0 %v1208
  %1508 = vmatpush.bf16.msra.mxu0 %v1200
  %1509 = vmatpush.bf16.msra.mxu0 %v1192
  %1510 = vmatpush.bf16.msra.mxu0 %v1184
  %1511 = vmatpush.bf16.msra.mxu0 %v1176
  %1512 = vmatpush.bf16.msra.mxu0 %v1168
  %1513 = vmatpush.bf16.msra.mxu0 %v1160
  %1514 = vmatpush.bf16.msra.mxu0 %v1152
  %1515 = vmatmul.bf16.gmra.mxu0 0
  %v1516 = vpop.f32.mrf.mxu0
  %v1517 = vadd.f32 %v1504, %v1516
  %v1518 = vpop.f32.mrf.mxu0
  %1519 = vdwg.mxu0
  %1520 = vmatpush.bf16.msra.mxu0 %v1145
  %1521 = vmatpush.bf16.msra.mxu0 %v1137
  %1522 = vmatpush.bf16.msra.mxu0 %v1129
  %1523 = vmatpush.bf16.msra.mxu0 %v1121
  %1524 = vmatpush.bf16.msra.mxu0 %v1113
  %1525 = vmatpush.bf16.msra.mxu0 %v1105
  %1526 = vmatpush.bf16.msra.mxu0 %v1097
  %1527 = vmatpush.bf16.msra.mxu0 %v1089
  %1528 = vmatmul.bf16.gmra.mxu0 0
  %v1529 = vpop.f32.mrf.mxu0
  %v1530 = vadd.f32 0.0, %v1529
  %v1531 = vpop.f32.mrf.mxu0
  %1532 = vdwg.mxu0
  %1533 = vmatpush.bf16.msra.mxu0 %v1209
  %1534 = vmatpush.bf16.msra.mxu0 %v1201
  %1535 = vmatpush.bf16.msra.mxu0 %v1193
  %1536 = vmatpush.bf16.msra.mxu0 %v1185
  %1537 = vmatpush.bf16.msra.mxu0 %v1177
  %1538 = vmatpush.bf16.msra.mxu0 %v1169
  %1539 = vmatpush.bf16.msra.mxu0 %v1161
  %1540 = vmatpush.bf16.msra.mxu0 %v1153
  %1541 = vmatmul.bf16.gmra.mxu0 0
  %v1542 = vpop.f32.mrf.mxu0
  %v1543 = vadd.f32 %v1530, %v1542
  %v1544 = vpop.f32.mrf.mxu0
  %1545 = vdwg.mxu0
  %v1546 = vadd.f32 %v690, %v1361
  %v1547 = vadd.f32 %v691, %v1387
  %v1548 = vadd.f32 %v692, %v1413
  %v1549 = vadd.f32 %v693, %v1439
  %v1550 = vadd.f32 %v694, %v1465
  %v1551 = vadd.f32 %v695, %v1491
  %v1552 = vadd.f32 %v696, %v1517
  %v1553 = vadd.f32 %v697, %v1543
  %v1554 = vxor.u32 %v1546, 2147483648
  %v1555 = vxor.u32 %v1547, 2147483648
  %v1556 = vmul.f32 %v1554, 1.442695
  %v1557 = vpow.pop %v1556
  %v1558 = vmul.f32 %v1555, 1.442695
  %v1559 = vpow.pop %v1558
  %v1560 = vadd.f32 %v1557, 1.0
  %v1561 = vadd.f32 %v1559, 1.0
  %v1562 = vrcp.pop %v1560
  %v1563 = vmul.f32 %v1560, %v1562
  %v1564 = vsub.f32 1.0, %v1563
  %v1565 = vmul.f32 %v1562, %v1564
  %v1566 = vadd.f32 %v1562, %v1565
  %vm1567 = vweird.f32 %v1560
  %vm1568 = vweird.f32 %v1562
  %vm1569 = vmor %vm1567, %vm1568
  %v1570 = vsel %vm1569, %v1562, %v1566
  %v1571 = vand.u32 2147483647, %v1560
  %vm1572 = vcmp.eq.f32.partialorder %v1571, 8.507059e+37
  %v1573 = vand.u32 %v1560, 2147483648
  %v1574 = vor.u32 1.1754944e-38, %v1573
  %v1575 = vsel %vm1572, %v1574, %v1570
  %v1576 = vmul.f32 1.0, %v1575
  %v1577 = vrcp.pop %v1561
  %v1578 = vmul.f32 %v1561, %v1577
  %v1579 = vsub.f32 1.0, %v1578
  %v1580 = vmul.f32 %v1577, %v1579
  %v1581 = vadd.f32 %v1577, %v1580
  %vm1582 = vweird.f32 %v1561
  %vm1583 = vweird.f32 %v1577
  %vm1584 = vmor %vm1582, %vm1583
  %v1585 = vsel %vm1584, %v1577, %v1581
  %v1586 = vand.u32 2147483647, %v1561
  %vm1587 = vcmp.eq.f32.partialorder %v1586, 8.507059e+37
  %v1588 = vand.u32 %v1561, 2147483648
  %v1589 = vor.u32 1.1754944e-38, %v1588
  %v1590 = vsel %vm1587, %v1589, %v1585
  %v1591 = vmul.f32 1.0, %v1590
  %v1592 = vxor.u32 %v1548, 2147483648
  %v1593 = vxor.u32 %v1549, 2147483648
  %v1594 = vmul.f32 %v1592, 1.442695
  %v1595 = vpow.pop %v1594
  %v1596 = vmul.f32 %v1593, 1.442695
  %v1597 = vpow.pop %v1596
  %v1598 = vadd.f32 %v1595, 1.0
  %v1599 = vadd.f32 %v1597, 1.0
  %v1600 = vrcp.pop %v1598
  %v1601 = vmul.f32 %v1598, %v1600
  %v1602 = vsub.f32 1.0, %v1601
  %v1603 = vmul.f32 %v1600, %v1602
  %v1604 = vadd.f32 %v1600, %v1603
  %vm1605 = vweird.f32 %v1598
  %vm1606 = vweird.f32 %v1600
  %vm1607 = vmor %vm1605, %vm1606
  %v1608 = vsel %vm1607, %v1600, %v1604
  %v1609 = vand.u32 2147483647, %v1598
  %vm1610 = vcmp.eq.f32.partialorder %v1609, 8.507059e+37
  %v1611 = vand.u32 %v1598, 2147483648
  %v1612 = vor.u32 1.1754944e-38, %v1611
  %v1613 = vsel %vm1610, %v1612, %v1608
  %v1614 = vmul.f32 1.0, %v1613
  %v1615 = vrcp.pop %v1599
  %v1616 = vmul.f32 %v1599, %v1615
  %v1617 = vsub.f32 1.0, %v1616
  %v1618 = vmul.f32 %v1615, %v1617
  %v1619 = vadd.f32 %v1615, %v1618
  %vm1620 = vweird.f32 %v1599
  %vm1621 = vweird.f32 %v1615
  %vm1622 = vmor %vm1620, %vm1621
  %v1623 = vsel %vm1622, %v1615, %v1619
  %v1624 = vand.u32 2147483647, %v1599
  %vm1625 = vcmp.eq.f32.partialorder %v1624, 8.507059e+37
  %v1626 = vand.u32 %v1599, 2147483648
  %v1627 = vor.u32 1.1754944e-38, %v1626
  %v1628 = vsel %vm1625, %v1627, %v1623
  %v1629 = vmul.f32 1.0, %v1628
  %v1630 = vtanh.pop %v1550
  %v1631 = vtanh.pop %v1551
  %v1632 = vxor.u32 %v1552, 2147483648
  %v1633 = vxor.u32 %v1553, 2147483648
  %v1634 = vmul.f32 %v1632, 1.442695
  %v1635 = vpow.pop %v1634
  %v1636 = vmul.f32 %v1633, 1.442695
  %v1637 = vpow.pop %v1636
  %v1638 = vadd.f32 %v1635, 1.0
  %v1639 = vadd.f32 %v1637, 1.0
  %v1640 = vrcp.pop %v1638
  %v1641 = vmul.f32 %v1638, %v1640
  %v1642 = vsub.f32 1.0, %v1641
  %v1643 = vmul.f32 %v1640, %v1642
  %v1644 = vadd.f32 %v1640, %v1643
  %vm1645 = vweird.f32 %v1638
  %vm1646 = vweird.f32 %v1640
  %vm1647 = vmor %vm1645, %vm1646
  %v1648 = vsel %vm1647, %v1640, %v1644
  %v1649 = vand.u32 2147483647, %v1638
  %vm1650 = vcmp.eq.f32.partialorder %v1649, 8.507059e+37
  %v1651 = vand.u32 %v1638, 2147483648
  %v1652 = vor.u32 1.1754944e-38, %v1651
  %v1653 = vsel %vm1650, %v1652, %v1648
  %v1654 = vmul.f32 1.0, %v1653
  %v1655 = vrcp.pop %v1639
  %v1656 = vmul.f32 %v1639, %v1655
  %v1657 = vsub.f32 1.0, %v1656
  %v1658 = vmul.f32 %v1655, %v1657
  %v1659 = vadd.f32 %v1655, %v1658
  %vm1660 = vweird.f32 %v1639
  %vm1661 = vweird.f32 %v1655
  %vm1662 = vmor %vm1660, %vm1661
  %v1663 = vsel %vm1662, %v1655, %v1659
  %v1664 = vand.u32 2147483647, %v1639
  %vm1665 = vcmp.eq.f32.partialorder %v1664, 8.507059e+37
  %v1666 = vand.u32 %v1639, 2147483648
  %v1667 = vor.u32 1.1754944e-38, %v1666
  %v1668 = vsel %vm1665, %v1667, %v1663
  %v1669 = vmul.f32 1.0, %v1668
  %v1670 = vmul.f32 %v1614, 0.0
  %v1671 = vmul.f32 %v1629, 0.0
  %v1672 = vmul.f32 %v1576, %v1630
  %v1673 = vmul.f32 %v1591, %v1631
  %v1674 = vadd.f32 %v1670, %v1672
  %v1675 = vadd.f32 %v1671, %v1673
  %v1676 = vtanh.pop %v1674
  %v1677 = vtanh.pop %v1675
  %v1678 = vmul.f32 %v1654, %v1676
  %v1679 = vmul.f32 %v1669, %v1677
  %v1680 = vsel %vm656, 0, 7
  %v1681 = vsel %vm657, 0, 7
  %1682 = vset.pattern.permute.xlu0 0
  %1683 = vperm.xlu0 %1682, %v542
  %v1684 = vpop.permute.xlu0 %1683
  %vm1685 = vcmp.lt.s32.totalorder %v1680, %v1684
  %vm1686 = vcmp.lt.s32.totalorder %v1681, %v1684
  %v1687 = vsel %vm1685, 1, 0
  %v1688 = vsel %vm1686, 1, 0
  %v1689 = vcvt.s32.f32 %v1687
  %v1690 = vcvt.s32.f32 %v1688
  %v1691 = vmul.f32 %v1689, %v1674
  %v1692 = vmul.f32 %v1690, %v1675
  %v1693 = vadd.f32 %v1691, 0.0
  %v1694 = vadd.f32 %v1692, 0.0
  %v1695 = vmul.f32 %v1689, %v1678
  %v1696 = vmul.f32 %v1690, %v1679
  %v1697 = vadd.f32 %v1695, 0.0
  %v1698 = vadd.f32 %v1696, 0.0
  %v1699 = vld [vmem:[#allocation2 + $0x40] sm:$0xff]
  %v1700 = vld [vmem:[#allocation2 + $0x48] sm:$0xff]
  %v1701 = vld [vmem:[#allocation2 + $0x50] sm:$0xff]
  %v1702 = vld [vmem:[#allocation2 + $0x58] sm:$0xff]
  %v1703 = vld [vmem:[#allocation2 + $0x60] sm:$0xff]
  %v1704 = vld [vmem:[#allocation2 + $0x68] sm:$0xff]
  %v1705 = vld [vmem:[#allocation2 + $0x70] sm:$0xff]
  %v1706 = vld [vmem:[#allocation2 + $0x78] sm:$0xff]
  %v1707 = vld [vmem:[#allocation2 + $0x180] sm:$0xff]
  %v1708 = vld [vmem:[#allocation2 + $0x188] sm:$0xff]
  %v1709 = vld [vmem:[#allocation2 + $0x190] sm:$0xff]
  %v1710 = vld [vmem:[#allocation2 + $0x198] sm:$0xff]
  %v1711 = vld [vmem:[#allocation2 + $0x1a0] sm:$0xff]
  %v1712 = vld [vmem:[#allocation2 + $0x1a8] sm:$0xff]
  %v1713 = vld [vmem:[#allocation2 + $0x1b0] sm:$0xff]
  %v1714 = vld [vmem:[#allocation2 + $0x1b8] sm:$0xff]
  %v1715 = vsel %vm682, %v1699, %v1707
  %v1716 = vsel %vm683, %v1700, %v1708
  %v1717 = vsel %vm684, %v1701, %v1709
  %v1718 = vsel %vm685, %v1702, %v1710
  %v1719 = vsel %vm686, %v1703, %v1711
  %v1720 = vsel %vm687, %v1704, %v1712
  %v1721 = vsel %vm688, %v1705, %v1713
  %v1722 = vsel %vm689, %v1706, %v1714
  %v1723 = vpack.c.bf16 %v1697, %v1697
  %v1724 = vpack.c.bf16 %v1698, %v1698
  %1725 = vmatpush.bf16.msra.mxu0 %v1138
  %1726 = vmatpush.bf16.msra.mxu0 %v1130
  %1727 = vmatpush.bf16.msra.mxu0 %v1122
  %1728 = vmatpush.bf16.msra.mxu0 %v1114
  %1729 = vmatpush.bf16.msra.mxu0 %v1106
  %1730 = vmatpush.bf16.msra.mxu0 %v1098
  %1731 = vmatpush.bf16.msra.mxu0 %v1090
  %1732 = vmatpush.bf16.msra.mxu0 %v1082
  %1733 = vmatmul.bf16.gmra.mxu0 %v1723
  %v1734 = vpop.f32.mrf.mxu0
  %v1735 = vadd.f32 0.0, %v1734
  %v1736 = vpop.f32.mrf.mxu0
  %1737 = vdwg.mxu0
  %1738 = vmatpush.bf16.msra.mxu0 %v1202
  %1739 = vmatpush.bf16.msra.mxu0 %v1194
  %1740 = vmatpush.bf16.msra.mxu0 %v1186
  %1741 = vmatpush.bf16.msra.mxu0 %v1178
  %1742 = vmatpush.bf16.msra.mxu0 %v1170
  %1743 = vmatpush.bf16.msra.mxu0 %v1162
  %1744 = vmatpush.bf16.msra.mxu0 %v1154
  %1745 = vmatpush.bf16.msra.mxu0 %v1146
  %1746 = vmatmul.bf16.gmra.mxu0 %v1724
  %v1747 = vpop.f32.mrf.mxu0
  %v1748 = vadd.f32 %v1735, %v1747
  %v1749 = vpop.f32.mrf.mxu0
  %1750 = vdwg.mxu0
  %1751 = vmatpush.bf16.msra.mxu0 %v1139
  %1752 = vmatpush.bf16.msra.mxu0 %v1131
  %1753 = vmatpush.bf16.msra.mxu0 %v1123
  %1754 = vmatpush.bf16.msra.mxu0 %v1115
  %1755 = vmatpush.bf16.msra.mxu0 %v1107
  %1756 = vmatpush.bf16.msra.mxu0 %v1099
  %1757 = vmatpush.bf16.msra.mxu0 %v1091
  %1758 = vmatpush.bf16.msra.mxu0 %v1083
  %1759 = vmatmul.bf16.gmra.mxu0 %v1723
  %v1760 = vpop.f32.mrf.mxu0
  %v1761 = vadd.f32 0.0, %v1760
  %v1762 = vpop.f32.mrf.mxu0
  %1763 = vdwg.mxu0
  %1764 = vmatpush.bf16.msra.mxu0 %v1203
  %1765 = vmatpush.bf16.msra.mxu0 %v1195
  %1766 = vmatpush.bf16.msra.mxu0 %v1187
  %1767 = vmatpush.bf16.msra.mxu0 %v1179
  %1768 = vmatpush.bf16.msra.mxu0 %v1171
  %1769 = vmatpush.bf16.msra.mxu0 %v1163
  %1770 = vmatpush.bf16.msra.mxu0 %v1155
  %1771 = vmatpush.bf16.msra.mxu0 %v1147
  %1772 = vmatmul.bf16.gmra.mxu0 %v1724
  %v1773 = vpop.f32.mrf.mxu0
  %v1774 = vadd.f32 %v1761, %v1773
  %v1775 = vpop.f32.mrf.mxu0
  %1776 = vdwg.mxu0
  %1777 = vmatpush.bf16.msra.mxu0 %v1140
  %1778 = vmatpush.bf16.msra.mxu0 %v1132
  %1779 = vmatpush.bf16.msra.mxu0 %v1124
  %1780 = vmatpush.bf16.msra.mxu0 %v1116
  %1781 = vmatpush.bf16.msra.mxu0 %v1108
  %1782 = vmatpush.bf16.msra.mxu0 %v1100
  %1783 = vmatpush.bf16.msra.mxu0 %v1092
  %1784 = vmatpush.bf16.msra.mxu0 %v1084
  %1785 = vmatmul.bf16.gmra.mxu0 %v1723
  %v1786 = vpop.f32.mrf.mxu0
  %v1787 = vadd.f32 0.0, %v1786
  %v1788 = vpop.f32.mrf.mxu0
  %1789 = vdwg.mxu0
  %1790 = vmatpush.bf16.msra.mxu0 %v1204
  %1791 = vmatpush.bf16.msra.mxu0 %v1196
  %1792 = vmatpush.bf16.msra.mxu0 %v1188
  %1793 = vmatpush.bf16.msra.mxu0 %v1180
  %1794 = vmatpush.bf16.msra.mxu0 %v1172
  %1795 = vmatpush.bf16.msra.mxu0 %v1164
  %1796 = vmatpush.bf16.msra.mxu0 %v1156
  %1797 = vmatpush.bf16.msra.mxu0 %v1148
  %1798 = vmatmul.bf16.gmra.mxu0 %v1724
  %v1799 = vpop.f32.mrf.mxu0
  %v1800 = vadd.f32 %v1787, %v1799
  %v1801 = vpop.f32.mrf.mxu0
  %1802 = vdwg.mxu0
  %1803 = vmatpush.bf16.msra.mxu0 %v1141
  %1804 = vmatpush.bf16.msra.mxu0 %v1133
  %1805 = vmatpush.bf16.msra.mxu0 %v1125
  %1806 = vmatpush.bf16.msra.mxu0 %v1117
  %1807 = vmatpush.bf16.msra.mxu0 %v1109
  %1808 = vmatpush.bf16.msra.mxu0 %v1101
  %1809 = vmatpush.bf16.msra.mxu0 %v1093
  %1810 = vmatpush.bf16.msra.mxu0 %v1085
  %1811 = vmatmul.bf16.gmra.mxu0 %v1723
  %v1812 = vpop.f32.mrf.mxu0
  %v1813 = vadd.f32 0.0, %v1812
  %v1814 = vpop.f32.mrf.mxu0
  %1815 = vdwg.mxu0
  %1816 = vmatpush.bf16.msra.mxu0 %v1205
  %1817 = vmatpush.bf16.msra.mxu0 %v1197
  %1818 = vmatpush.bf16.msra.mxu0 %v1189
  %1819 = vmatpush.bf16.msra.mxu0 %v1181
  %1820 = vmatpush.bf16.msra.mxu0 %v1173
  %1821 = vmatpush.bf16.msra.mxu0 %v1165
  %1822 = vmatpush.bf16.msra.mxu0 %v1157
  %1823 = vmatpush.bf16.msra.mxu0 %v1149
  %1824 = vmatmul.bf16.gmra.mxu0 %v1724
  %v1825 = vpop.f32.mrf.mxu0
  %v1826 = vadd.f32 %v1813, %v1825
  %v1827 = vpop.f32.mrf.mxu0
  %1828 = vdwg.mxu0
  %1829 = vmatpush.bf16.msra.mxu0 %v1142
  %1830 = vmatpush.bf16.msra.mxu0 %v1134
  %1831 = vmatpush.bf16.msra.mxu0 %v1126
  %1832 = vmatpush.bf16.msra.mxu0 %v1118
  %1833 = vmatpush.bf16.msra.mxu0 %v1110
  %1834 = vmatpush.bf16.msra.mxu0 %v1102
  %1835 = vmatpush.bf16.msra.mxu0 %v1094
  %1836 = vmatpush.bf16.msra.mxu0 %v1086
  %1837 = vmatmul.bf16.gmra.mxu0 %v1723
  %v1838 = vpop.f32.mrf.mxu0
  %v1839 = vadd.f32 0.0, %v1838
  %v1840 = vpop.f32.mrf.mxu0
  %1841 = vdwg.mxu0
  %1842 = vmatpush.bf16.msra.mxu0 %v1206
  %1843 = vmatpush.bf16.msra.mxu0 %v1198
  %1844 = vmatpush.bf16.msra.mxu0 %v1190
  %1845 = vmatpush.bf16.msra.mxu0 %v1182
  %1846 = vmatpush.bf16.msra.mxu0 %v1174
  %1847 = vmatpush.bf16.msra.mxu0 %v1166
  %1848 = vmatpush.bf16.msra.mxu0 %v1158
  %1849 = vmatpush.bf16.msra.mxu0 %v1150
  %1850 = vmatmul.bf16.gmra.mxu0 %v1724
  %v1851 = vpop.f32.mrf.mxu0
  %v1852 = vadd.f32 %v1839, %v1851
  %v1853 = vpop.f32.mrf.mxu0
  %1854 = vdwg.mxu0
  %1855 = vmatpush.bf16.msra.mxu0 %v1143
  %1856 = vmatpush.bf16.msra.mxu0 %v1135
  %1857 = vmatpush.bf16.msra.mxu0 %v1127
  %1858 = vmatpush.bf16.msra.mxu0 %v1119
  %1859 = vmatpush.bf16.msra.mxu0 %v1111
  %1860 = vmatpush.bf16.msra.mxu0 %v1103
  %1861 = vmatpush.bf16.msra.mxu0 %v1095
  %1862 = vmatpush.bf16.msra.mxu0 %v1087
  %1863 = vmatmul.bf16.gmra.mxu0 %v1723
  %v1864 = vpop.f32.mrf.mxu0
  %v1865 = vadd.f32 0.0, %v1864
  %v1866 = vpop.f32.mrf.mxu0
  %1867 = vdwg.mxu0
  %1868 = vmatpush.bf16.msra.mxu0 %v1207
  %1869 = vmatpush.bf16.msra.mxu0 %v1199
  %1870 = vmatpush.bf16.msra.mxu0 %v1191
  %1871 = vmatpush.bf16.msra.mxu0 %v1183
  %1872 = vmatpush.bf16.msra.mxu0 %v1175
  %1873 = vmatpush.bf16.msra.mxu0 %v1167
  %1874 = vmatpush.bf16.msra.mxu0 %v1159
  %1875 = vmatpush.bf16.msra.mxu0 %v1151
  %1876 = vmatmul.bf16.gmra.mxu0 %v1724
  %v1877 = vpop.f32.mrf.mxu0
  %v1878 = vadd.f32 %v1865, %v1877
  %v1879 = vpop.f32.mrf.mxu0
  %1880 = vdwg.mxu0
  %1881 = vmatpush.bf16.msra.mxu0 %v1144
  %1882 = vmatpush.bf16.msra.mxu0 %v1136
  %1883 = vmatpush.bf16.msra.mxu0 %v1128
  %1884 = vmatpush.bf16.msra.mxu0 %v1120
  %1885 = vmatpush.bf16.msra.mxu0 %v1112
  %1886 = vmatpush.bf16.msra.mxu0 %v1104
  %1887 = vmatpush.bf16.msra.mxu0 %v1096
  %1888 = vmatpush.bf16.msra.mxu0 %v1088
  %1889 = vmatmul.bf16.gmra.mxu0 %v1723
  %v1890 = vpop.f32.mrf.mxu0
  %v1891 = vadd.f32 0.0, %v1890
  %v1892 = vpop.f32.mrf.mxu0
  %1893 = vdwg.mxu0
  %1894 = vmatpush.bf16.msra.mxu0 %v1208
  %1895 = vmatpush.bf16.msra.mxu0 %v1200
  %1896 = vmatpush.bf16.msra.mxu0 %v1192
  %1897 = vmatpush.bf16.msra.mxu0 %v1184
  %1898 = vmatpush.bf16.msra.mxu0 %v1176
  %1899 = vmatpush.bf16.msra.mxu0 %v1168
  %1900 = vmatpush.bf16.msra.mxu0 %v1160
  %1901 = vmatpush.bf16.msra.mxu0 %v1152
  %1902 = vmatmul.bf16.gmra.mxu0 %v1724
  %v1903 = vpop.f32.mrf.mxu0
  %v1904 = vadd.f32 %v1891, %v1903
  %v1905 = vpop.f32.mrf.mxu0
  %1906 = vdwg.mxu0
  %1907 = vmatpush.bf16.msra.mxu0 %v1145
  %1908 = vmatpush.bf16.msra.mxu0 %v1137
  %1909 = vmatpush.bf16.msra.mxu0 %v1129
  %1910 = vmatpush.bf16.msra.mxu0 %v1121
  %1911 = vmatpush.bf16.msra.mxu0 %v1113
  %1912 = vmatpush.bf16.msra.mxu0 %v1105
  %1913 = vmatpush.bf16.msra.mxu0 %v1097
  %1914 = vmatpush.bf16.msra.mxu0 %v1089
  %1915 = vmatmul.bf16.gmra.mxu0 %v1723
  %v1916 = vpop.f32.mrf.mxu0
  %v1917 = vadd.f32 0.0, %v1916
  %v1918 = vpop.f32.mrf.mxu0
  %1919 = vdwg.mxu0
  %1920 = vmatpush.bf16.msra.mxu0 %v1209
  %1921 = vmatpush.bf16.msra.mxu0 %v1201
  %1922 = vmatpush.bf16.msra.mxu0 %v1193
  %1923 = vmatpush.bf16.msra.mxu0 %v1185
  %1924 = vmatpush.bf16.msra.mxu0 %v1177
  %1925 = vmatpush.bf16.msra.mxu0 %v1169
  %1926 = vmatpush.bf16.msra.mxu0 %v1161
  %1927 = vmatpush.bf16.msra.mxu0 %v1153
  %1928 = vmatmul.bf16.gmra.mxu0 %v1724
  %v1929 = vpop.f32.mrf.mxu0
  %v1930 = vadd.f32 %v1917, %v1929
  %v1931 = vpop.f32.mrf.mxu0
  %1932 = vdwg.mxu0
  %v1933 = vadd.f32 %v1715, %v1748
  %v1934 = vadd.f32 %v1716, %v1774
  %v1935 = vadd.f32 %v1717, %v1800
  %v1936 = vadd.f32 %v1718, %v1826
  %v1937 = vadd.f32 %v1719, %v1852
  %v1938 = vadd.f32 %v1720, %v1878
  %v1939 = vadd.f32 %v1721, %v1904
  %v1940 = vadd.f32 %v1722, %v1930
  %v1941 = vxor.u32 %v1933, 2147483648
  %v1942 = vxor.u32 %v1934, 2147483648
  %v1943 = vmul.f32 %v1941, 1.442695
  %v1944 = vpow.pop %v1943
  %v1945 = vmul.f32 %v1942, 1.442695
  %v1946 = vpow.pop %v1945
  %v1947 = vadd.f32 %v1944, 1.0
  %v1948 = vadd.f32 %v1946, 1.0
  %v1949 = vrcp.pop %v1947
  %v1950 = vmul.f32 %v1947, %v1949
  %v1951 = vsub.f32 1.0, %v1950
  %v1952 = vmul.f32 %v1949, %v1951
  %v1953 = vadd.f32 %v1949, %v1952
  %vm1954 = vweird.f32 %v1947
  %vm1955 = vweird.f32 %v1949
  %vm1956 = vmor %vm1954, %vm1955
  %v1957 = vsel %vm1956, %v1949, %v1953
  %v1958 = vand.u32 2147483647, %v1947
  %vm1959 = vcmp.eq.f32.partialorder %v1958, 8.507059e+37
  %v1960 = vand.u32 %v1947, 2147483648
  %v1961 = vor.u32 1.1754944e-38, %v1960
  %v1962 = vsel %vm1959, %v1961, %v1957
  %v1963 = vmul.f32 1.0, %v1962
  %v1964 = vrcp.pop %v1948
  %v1965 = vmul.f32 %v1948, %v1964
  %v1966 = vsub.f32 1.0, %v1965
  %v1967 = vmul.f32 %v1964, %v1966
  %v1968 = vadd.f32 %v1964, %v1967
  %vm1969 = vweird.f32 %v1948
  %vm1970 = vweird.f32 %v1964
  %vm1971 = vmor %vm1969, %vm1970
  %v1972 = vsel %vm1971, %v1964, %v1968
  %v1973 = vand.u32 2147483647, %v1948
  %vm1974 = vcmp.eq.f32.partialorder %v1973, 8.507059e+37
  %v1975 = vand.u32 %v1948, 2147483648
  %v1976 = vor.u32 1.1754944e-38, %v1975
  %v1977 = vsel %vm1974, %v1976, %v1972
  %v1978 = vmul.f32 1.0, %v1977
  %v1979 = vxor.u32 %v1935, 2147483648
  %v1980 = vxor.u32 %v1936, 2147483648
  %v1981 = vmul.f32 %v1979, 1.442695
  %v1982 = vpow.pop %v1981
  %v1983 = vmul.f32 %v1980, 1.442695
  %v1984 = vpow.pop %v1983
  %v1985 = vadd.f32 %v1982, 1.0
  %v1986 = vadd.f32 %v1984, 1.0
  %v1987 = vrcp.pop %v1985
  %v1988 = vmul.f32 %v1985, %v1987
  %v1989 = vsub.f32 1.0, %v1988
  %v1990 = vmul.f32 %v1987, %v1989
  %v1991 = vadd.f32 %v1987, %v1990
  %vm1992 = vweird.f32 %v1985
  %vm1993 = vweird.f32 %v1987
  %vm1994 = vmor %vm1992, %vm1993
  %v1995 = vsel %vm1994, %v1987, %v1991
  %v1996 = vand.u32 2147483647, %v1985
  %vm1997 = vcmp.eq.f32.partialorder %v1996, 8.507059e+37
  %v1998 = vand.u32 %v1985, 2147483648
  %v1999 = vor.u32 1.1754944e-38, %v1998
  %v2000 = vsel %vm1997, %v1999, %v1995
  %v2001 = vmul.f32 1.0, %v2000
  %v2002 = vrcp.pop %v1986
  %v2003 = vmul.f32 %v1986, %v2002
  %v2004 = vsub.f32 1.0, %v2003
  %v2005 = vmul.f32 %v2002, %v2004
  %v2006 = vadd.f32 %v2002, %v2005
  %vm2007 = vweird.f32 %v1986
  %vm2008 = vweird.f32 %v2002
  %vm2009 = vmor %vm2007, %vm2008
  %v2010 = vsel %vm2009, %v2002, %v2006
  %v2011 = vand.u32 2147483647, %v1986
  %vm2012 = vcmp.eq.f32.partialorder %v2011, 8.507059e+37
  %v2013 = vand.u32 %v1986, 2147483648
  %v2014 = vor.u32 1.1754944e-38, %v2013
  %v2015 = vsel %vm2012, %v2014, %v2010
  %v2016 = vmul.f32 1.0, %v2015
  %v2017 = vtanh.pop %v1937
  %v2018 = vtanh.pop %v1938
  %v2019 = vxor.u32 %v1939, 2147483648
  %v2020 = vxor.u32 %v1940, 2147483648
  %v2021 = vmul.f32 %v2019, 1.442695
  %v2022 = vpow.pop %v2021
  %v2023 = vmul.f32 %v2020, 1.442695
  %v2024 = vpow.pop %v2023
  %v2025 = vadd.f32 %v2022, 1.0
  %v2026 = vadd.f32 %v2024, 1.0
  %v2027 = vrcp.pop %v2025
  %v2028 = vmul.f32 %v2025, %v2027
  %v2029 = vsub.f32 1.0, %v2028
  %v2030 = vmul.f32 %v2027, %v2029
  %v2031 = vadd.f32 %v2027, %v2030
  %vm2032 = vweird.f32 %v2025
  %vm2033 = vweird.f32 %v2027
  %vm2034 = vmor %vm2032, %vm2033
  %v2035 = vsel %vm2034, %v2027, %v2031
  %v2036 = vand.u32 2147483647, %v2025
  %vm2037 = vcmp.eq.f32.partialorder %v2036, 8.507059e+37
  %v2038 = vand.u32 %v2025, 2147483648
  %v2039 = vor.u32 1.1754944e-38, %v2038
  %v2040 = vsel %vm2037, %v2039, %v2035
  %v2041 = vmul.f32 1.0, %v2040
  %v2042 = vrcp.pop %v2026
  %v2043 = vmul.f32 %v2026, %v2042
  %v2044 = vsub.f32 1.0, %v2043
  %v2045 = vmul.f32 %v2042, %v2044
  %v2046 = vadd.f32 %v2042, %v2045
  %vm2047 = vweird.f32 %v2026
  %vm2048 = vweird.f32 %v2042
  %vm2049 = vmor %vm2047, %vm2048
  %v2050 = vsel %vm2049, %v2042, %v2046
  %v2051 = vand.u32 2147483647, %v2026
  %vm2052 = vcmp.eq.f32.partialorder %v2051, 8.507059e+37
  %v2053 = vand.u32 %v2026, 2147483648
  %v2054 = vor.u32 1.1754944e-38, %v2053
  %v2055 = vsel %vm2052, %v2054, %v2050
  %v2056 = vmul.f32 1.0, %v2055
  %v2057 = vmul.f32 %v2001, %v1693
  %v2058 = vmul.f32 %v2016, %v1694
  %v2059 = vmul.f32 %v1963, %v2017
  %v2060 = vmul.f32 %v1978, %v2018
  %v2061 = vadd.f32 %v2057, %v2059
  %v2062 = vadd.f32 %v2058, %v2060
  %v2063 = vtanh.pop %v2061
  %v2064 = vtanh.pop %v2062
  %v2065 = vmul.f32 %v2041, %v2063
  %v2066 = vmul.f32 %v2056, %v2064
  %v2067 = vsel %vm656, 1, 6
  %v2068 = vsel %vm657, 1, 6
  %vm2069 = vcmp.lt.s32.totalorder %v2067, %v1684
  %vm2070 = vcmp.lt.s32.totalorder %v2068, %v1684
  %v2071 = vsel %vm2069, 1, 0
  %v2072 = vsel %vm2070, 1, 0
  %v2073 = vcvt.s32.f32 %v2071
  %v2074 = vcvt.s32.f32 %v2072
  %v2075 = vsub.f32 %v2061, %v1693
  %v2076 = vsub.f32 %v2062, %v1694
  %v2077 = vmul.f32 %v2073, %v2075
  %v2078 = vmul.f32 %v2074, %v2076
  %v2079 = vadd.f32 %v1693, %v2077
  %v2080 = vadd.f32 %v1694, %v2078
  %v2081 = vsub.f32 %v2065, %v1697
  %v2082 = vsub.f32 %v2066, %v1698
  %v2083 = vmul.f32 %v2073, %v2081
  %v2084 = vmul.f32 %v2074, %v2082
  %v2085 = vadd.f32 %v1697, %v2083
  %v2086 = vadd.f32 %v1698, %v2084
  %v2087 = vld [vmem:[#allocation2 + $0x80] sm:$0xff]
  %v2088 = vld [vmem:[#allocation2 + $0x88] sm:$0xff]
  %v2089 = vld [vmem:[#allocation2 + $0x90] sm:$0xff]
  %v2090 = vld [vmem:[#allocation2 + $0x98] sm:$0xff]
  %v2091 = vld [vmem:[#allocation2 + $0xa0] sm:$0xff]
  %v2092 = vld [vmem:[#allocation2 + $0xa8] sm:$0xff]
  %v2093 = vld [vmem:[#allocation2 + $0xb0] sm:$0xff]
  %v2094 = vld [vmem:[#allocation2 + $0xb8] sm:$0xff]
  %v2095 = vld [vmem:[#allocation2 + $0x140] sm:$0xff]
  %v2096 = vld [vmem:[#allocation2 + $0x148] sm:$0xff]
  %v2097 = vld [vmem:[#allocation2 + $0x150] sm:$0xff]
  %v2098 = vld [vmem:[#allocation2 + $0x158] sm:$0xff]
  %v2099 = vld [vmem:[#allocation2 + $0x160] sm:$0xff]
  %v2100 = vld [vmem:[#allocation2 + $0x168] sm:$0xff]
  %v2101 = vld [vmem:[#allocation2 + $0x170] sm:$0xff]
  %v2102 = vld [vmem:[#allocation2 + $0x178] sm:$0xff]
  %v2103 = vsel %vm682, %v2087, %v2095
  %v2104 = vsel %vm683, %v2088, %v2096
  %v2105 = vsel %vm684, %v2089, %v2097
  %v2106 = vsel %vm685, %v2090, %v2098
  %v2107 = vsel %vm686, %v2091, %v2099
  %v2108 = vsel %vm687, %v2092, %v2100
  %v2109 = vsel %vm688, %v2093, %v2101
  %v2110 = vsel %vm689, %v2094, %v2102
  %v2111 = vpack.c.bf16 %v2085, %v2085
  %v2112 = vpack.c.bf16 %v2086, %v2086
  %2113 = vmatpush.bf16.msra.mxu0 %v1138
  %2114 = vmatpush.bf16.msra.mxu0 %v1130
  %2115 = vmatpush.bf16.msra.mxu0 %v1122
  %2116 = vmatpush.bf16.msra.mxu0 %v1114
  %2117 = vmatpush.bf16.msra.mxu0 %v1106
  %2118 = vmatpush.bf16.msra.mxu0 %v1098
  %2119 = vmatpush.bf16.msra.mxu0 %v1090
  %2120 = vmatpush.bf16.msra.mxu0 %v1082
  %2121 = vmatmul.bf16.gmra.mxu0 %v2111
  %v2122 = vpop.f32.mrf.mxu0
  %v2123 = vadd.f32 0.0, %v2122
  %v2124 = vpop.f32.mrf.mxu0
  %2125 = vdwg.mxu0
  %2126 = vmatpush.bf16.msra.mxu0 %v1202
  %2127 = vmatpush.bf16.msra.mxu0 %v1194
  %2128 = vmatpush.bf16.msra.mxu0 %v1186
  %2129 = vmatpush.bf16.msra.mxu0 %v1178
  %2130 = vmatpush.bf16.msra.mxu0 %v1170
  %2131 = vmatpush.bf16.msra.mxu0 %v1162
  %2132 = vmatpush.bf16.msra.mxu0 %v1154
  %2133 = vmatpush.bf16.msra.mxu0 %v1146
  %2134 = vmatmul.bf16.gmra.mxu0 %v2112
  %v2135 = vpop.f32.mrf.mxu0
  %v2136 = vadd.f32 %v2123, %v2135
  %v2137 = vpop.f32.mrf.mxu0
  %2138 = vdwg.mxu0
  %2139 = vmatpush.bf16.msra.mxu0 %v1139
  %2140 = vmatpush.bf16.msra.mxu0 %v1131
  %2141 = vmatpush.bf16.msra.mxu0 %v1123
  %2142 = vmatpush.bf16.msra.mxu0 %v1115
  %2143 = vmatpush.bf16.msra.mxu0 %v1107
  %2144 = vmatpush.bf16.msra.mxu0 %v1099
  %2145 = vmatpush.bf16.msra.mxu0 %v1091
  %2146 = vmatpush.bf16.msra.mxu0 %v1083
  %2147 = vmatmul.bf16.gmra.mxu0 %v2111
  %v2148 = vpop.f32.mrf.mxu0
  %v2149 = vadd.f32 0.0, %v2148
  %v2150 = vpop.f32.mrf.mxu0
  %2151 = vdwg.mxu0
  %2152 = vmatpush.bf16.msra.mxu0 %v1203
  %2153 = vmatpush.bf16.msra.mxu0 %v1195
  %2154 = vmatpush.bf16.msra.mxu0 %v1187
  %2155 = vmatpush.bf16.msra.mxu0 %v1179
  %2156 = vmatpush.bf16.msra.mxu0 %v1171
  %2157 = vmatpush.bf16.msra.mxu0 %v1163
  %2158 = vmatpush.bf16.msra.mxu0 %v1155
  %2159 = vmatpush.bf16.msra.mxu0 %v1147
  %2160 = vmatmul.bf16.gmra.mxu0 %v2112
  %v2161 = vpop.f32.mrf.mxu0
  %v2162 = vadd.f32 %v2149, %v2161
  %v2163 = vpop.f32.mrf.mxu0
  %2164 = vdwg.mxu0
  %2165 = vmatpush.bf16.msra.mxu0 %v1140
  %2166 = vmatpush.bf16.msra.mxu0 %v1132
  %2167 = vmatpush.bf16.msra.mxu0 %v1124
  %2168 = vmatpush.bf16.msra.mxu0 %v1116
  %2169 = vmatpush.bf16.msra.mxu0 %v1108
  %2170 = vmatpush.bf16.msra.mxu0 %v1100
  %2171 = vmatpush.bf16.msra.mxu0 %v1092
  %2172 = vmatpush.bf16.msra.mxu0 %v1084
  %2173 = vmatmul.bf16.gmra.mxu0 %v2111
  %v2174 = vpop.f32.mrf.mxu0
  %v2175 = vadd.f32 0.0, %v2174
  %v2176 = vpop.f32.mrf.mxu0
  %2177 = vdwg.mxu0
  %2178 = vmatpush.bf16.msra.mxu0 %v1204
  %2179 = vmatpush.bf16.msra.mxu0 %v1196
  %2180 = vmatpush.bf16.msra.mxu0 %v1188
  %2181 = vmatpush.bf16.msra.mxu0 %v1180
  %2182 = vmatpush.bf16.msra.mxu0 %v1172
  %2183 = vmatpush.bf16.msra.mxu0 %v1164
  %2184 = vmatpush.bf16.msra.mxu0 %v1156
  %2185 = vmatpush.bf16.msra.mxu0 %v1148
  %2186 = vmatmul.bf16.gmra.mxu0 %v2112
  %v2187 = vpop.f32.mrf.mxu0
  %v2188 = vadd.f32 %v2175, %v2187
  %v2189 = vpop.f32.mrf.mxu0
  %2190 = vdwg.mxu0
  %2191 = vmatpush.bf16.msra.mxu0 %v1141
  %2192 = vmatpush.bf16.msra.mxu0 %v1133
  %2193 = vmatpush.bf16.msra.mxu0 %v1125
  %2194 = vmatpush.bf16.msra.mxu0 %v1117
  %2195 = vmatpush.bf16.msra.mxu0 %v1109
  %2196 = vmatpush.bf16.msra.mxu0 %v1101
  %2197 = vmatpush.bf16.msra.mxu0 %v1093
  %2198 = vmatpush.bf16.msra.mxu0 %v1085
  %2199 = vmatmul.bf16.gmra.mxu0 %v2111
  %v2200 = vpop.f32.mrf.mxu0
  %v2201 = vadd.f32 0.0, %v2200
  %v2202 = vpop.f32.mrf.mxu0
  %2203 = vdwg.mxu0
  %2204 = vmatpush.bf16.msra.mxu0 %v1205
  %2205 = vmatpush.bf16.msra.mxu0 %v1197
  %2206 = vmatpush.bf16.msra.mxu0 %v1189
  %2207 = vmatpush.bf16.msra.mxu0 %v1181
  %2208 = vmatpush.bf16.msra.mxu0 %v1173
  %2209 = vmatpush.bf16.msra.mxu0 %v1165
  %2210 = vmatpush.bf16.msra.mxu0 %v1157
  %2211 = vmatpush.bf16.msra.mxu0 %v1149
  %2212 = vmatmul.bf16.gmra.mxu0 %v2112
  %v2213 = vpop.f32.mrf.mxu0
  %v2214 = vadd.f32 %v2201, %v2213
  %v2215 = vpop.f32.mrf.mxu0
  %2216 = vdwg.mxu0
  %2217 = vmatpush.bf16.msra.mxu0 %v1142
  %2218 = vmatpush.bf16.msra.mxu0 %v1134
  %2219 = vmatpush.bf16.msra.mxu0 %v1126
  %2220 = vmatpush.bf16.msra.mxu0 %v1118
  %2221 = vmatpush.bf16.msra.mxu0 %v1110
  %2222 = vmatpush.bf16.msra.mxu0 %v1102
  %2223 = vmatpush.bf16.msra.mxu0 %v1094
  %2224 = vmatpush.bf16.msra.mxu0 %v1086
  %2225 = vmatmul.bf16.gmra.mxu0 %v2111
  %v2226 = vpop.f32.mrf.mxu0
  %v2227 = vadd.f32 0.0, %v2226
  %v2228 = vpop.f32.mrf.mxu0
  %2229 = vdwg.mxu0
  %2230 = vmatpush.bf16.msra.mxu0 %v1206
  %2231 = vmatpush.bf16.msra.mxu0 %v1198
  %2232 = vmatpush.bf16.msra.mxu0 %v1190
  %2233 = vmatpush.bf16.msra.mxu0 %v1182
  %2234 = vmatpush.bf16.msra.mxu0 %v1174
  %2235 = vmatpush.bf16.msra.mxu0 %v1166
  %2236 = vmatpush.bf16.msra.mxu0 %v1158
  %2237 = vmatpush.bf16.msra.mxu0 %v1150
  %2238 = vmatmul.bf16.gmra.mxu0 %v2112
  %v2239 = vpop.f32.mrf.mxu0
  %v2240 = vadd.f32 %v2227, %v2239
  %v2241 = vpop.f32.mrf.mxu0
  %2242 = vdwg.mxu0
  %2243 = vmatpush.bf16.msra.mxu0 %v1143
  %2244 = vmatpush.bf16.msra.mxu0 %v1135
  %2245 = vmatpush.bf16.msra.mxu0 %v1127
  %2246 = vmatpush.bf16.msra.mxu0 %v1119
  %2247 = vmatpush.bf16.msra.mxu0 %v1111
  %2248 = vmatpush.bf16.msra.mxu0 %v1103
  %2249 = vmatpush.bf16.msra.mxu0 %v1095
  %2250 = vmatpush.bf16.msra.mxu0 %v1087
  %2251 = vmatmul.bf16.gmra.mxu0 %v2111
  %v2252 = vpop.f32.mrf.mxu0
  %v2253 = vadd.f32 0.0, %v2252
  %v2254 = vpop.f32.mrf.mxu0
  %2255 = vdwg.mxu0
  %2256 = vmatpush.bf16.msra.mxu0 %v1207
  %2257 = vmatpush.bf16.msra.mxu0 %v1199
  %2258 = vmatpush.bf16.msra.mxu0 %v1191
  %2259 = vmatpush.bf16.msra.mxu0 %v1183
  %2260 = vmatpush.bf16.msra.mxu0 %v1175
  %2261 = vmatpush.bf16.msra.mxu0 %v1167
  %2262 = vmatpush.bf16.msra.mxu0 %v1159
  %2263 = vmatpush.bf16.msra.mxu0 %v1151
  %2264 = vmatmul.bf16.gmra.mxu0 %v2112
  %v2265 = vpop.f32.mrf.mxu0
  %v2266 = vadd.f32 %v2253, %v2265
  %v2267 = vpop.f32.mrf.mxu0
  %2268 = vdwg.mxu0
  %2269 = vmatpush.bf16.msra.mxu0 %v1144
  %2270 = vmatpush.bf16.msra.mxu0 %v1136
  %2271 = vmatpush.bf16.msra.mxu0 %v1128
  %2272 = vmatpush.bf16.msra.mxu0 %v1120
  %2273 = vmatpush.bf16.msra.mxu0 %v1112
  %2274 = vmatpush.bf16.msra.mxu0 %v1104
  %2275 = vmatpush.bf16.msra.mxu0 %v1096
  %2276 = vmatpush.bf16.msra.mxu0 %v1088
  %2277 = vmatmul.bf16.gmra.mxu0 %v2111
  %v2278 = vpop.f32.mrf.mxu0
  %v2279 = vadd.f32 0.0, %v2278
  %v2280 = vpop.f32.mrf.mxu0
  %2281 = vdwg.mxu0
  %2282 = vmatpush.bf16.msra.mxu0 %v1208
  %2283 = vmatpush.bf16.msra.mxu0 %v1200
  %2284 = vmatpush.bf16.msra.mxu0 %v1192
  %2285 = vmatpush.bf16.msra.mxu0 %v1184
  %2286 = vmatpush.bf16.msra.mxu0 %v1176
  %2287 = vmatpush.bf16.msra.mxu0 %v1168
  %2288 = vmatpush.bf16.msra.mxu0 %v1160
  %2289 = vmatpush.bf16.msra.mxu0 %v1152
  %2290 = vmatmul.bf16.gmra.mxu0 %v2112
  %v2291 = vpop.f32.mrf.mxu0
  %v2292 = vadd.f32 %v2279, %v2291
  %v2293 = vpop.f32.mrf.mxu0
  %2294 = vdwg.mxu0
  %2295 = vmatpush.bf16.msra.mxu0 %v1145
  %2296 = vmatpush.bf16.msra.mxu0 %v1137
  %2297 = vmatpush.bf16.msra.mxu0 %v1129
  %2298 = vmatpush.bf16.msra.mxu0 %v1121
  %2299 = vmatpush.bf16.msra.mxu0 %v1113
  %2300 = vmatpush.bf16.msra.mxu0 %v1105
  %2301 = vmatpush.bf16.msra.mxu0 %v1097
  %2302 = vmatpush.bf16.msra.mxu0 %v1089
  %2303 = vmatmul.bf16.gmra.mxu0 %v2111
  %v2304 = vpop.f32.mrf.mxu0
  %v2305 = vadd.f32 0.0, %v2304
  %v2306 = vpop.f32.mrf.mxu0
  %2307 = vdwg.mxu0
  %2308 = vmatpush.bf16.msra.mxu0 %v1209
  %2309 = vmatpush.bf16.msra.mxu0 %v1201
  %2310 = vmatpush.bf16.msra.mxu0 %v1193
  %2311 = vmatpush.bf16.msra.mxu0 %v1185
  %2312 = vmatpush.bf16.msra.mxu0 %v1177
  %2313 = vmatpush.bf16.msra.mxu0 %v1169
  %2314 = vmatpush.bf16.msra.mxu0 %v1161
  %2315 = vmatpush.bf16.msra.mxu0 %v1153
  %2316 = vmatmul.bf16.gmra.mxu0 %v2112
  %v2317 = vpop.f32.mrf.mxu0
  %v2318 = vadd.f32 %v2305, %v2317
  %v2319 = vpop.f32.mrf.mxu0
  %2320 = vdwg.mxu0
  %v2321 = vadd.f32 %v2103, %v2136
  %v2322 = vadd.f32 %v2104, %v2162
  %v2323 = vadd.f32 %v2105, %v2188
  %v2324 = vadd.f32 %v2106, %v2214
  %v2325 = vadd.f32 %v2107, %v2240
  %v2326 = vadd.f32 %v2108, %v2266
  %v2327 = vadd.f32 %v2109, %v2292
  %v2328 = vadd.f32 %v2110, %v2318
  %v2329 = vxor.u32 %v2321, 2147483648
  %v2330 = vxor.u32 %v2322, 2147483648
  %v2331 = vmul.f32 %v2329, 1.442695
  %v2332 = vpow.pop %v2331
  %v2333 = vmul.f32 %v2330, 1.442695
  %v2334 = vpow.pop %v2333
  %v2335 = vadd.f32 %v2332, 1.0
  %v2336 = vadd.f32 %v2334, 1.0
  %v2337 = vrcp.pop %v2335
  %v2338 = vmul.f32 %v2335, %v2337
  %v2339 = vsub.f32 1.0, %v2338
  %v2340 = vmul.f32 %v2337, %v2339
  %v2341 = vadd.f32 %v2337, %v2340
  %vm2342 = vweird.f32 %v2335
  %vm2343 = vweird.f32 %v2337
  %vm2344 = vmor %vm2342, %vm2343
  %v2345 = vsel %vm2344, %v2337, %v2341
  %v2346 = vand.u32 2147483647, %v2335
  %vm2347 = vcmp.eq.f32.partialorder %v2346, 8.507059e+37
  %v2348 = vand.u32 %v2335, 2147483648
  %v2349 = vor.u32 1.1754944e-38, %v2348
  %v2350 = vsel %vm2347, %v2349, %v2345
  %v2351 = vmul.f32 1.0, %v2350
  %v2352 = vrcp.pop %v2336
  %v2353 = vmul.f32 %v2336, %v2352
  %v2354 = vsub.f32 1.0, %v2353
  %v2355 = vmul.f32 %v2352, %v2354
  %v2356 = vadd.f32 %v2352, %v2355
  %vm2357 = vweird.f32 %v2336
  %vm2358 = vweird.f32 %v2352
  %vm2359 = vmor %vm2357, %vm2358
  %v2360 = vsel %vm2359, %v2352, %v2356
  %v2361 = vand.u32 2147483647, %v2336
  %vm2362 = vcmp.eq.f32.partialorder %v2361, 8.507059e+37
  %v2363 = vand.u32 %v2336, 2147483648
  %v2364 = vor.u32 1.1754944e-38, %v2363
  %v2365 = vsel %vm2362, %v2364, %v2360
  %v2366 = vmul.f32 1.0, %v2365
  %v2367 = vxor.u32 %v2323, 2147483648
  %v2368 = vxor.u32 %v2324, 2147483648
  %v2369 = vmul.f32 %v2367, 1.442695
  %v2370 = vpow.pop %v2369
  %v2371 = vmul.f32 %v2368, 1.442695
  %v2372 = vpow.pop %v2371
  %v2373 = vadd.f32 %v2370, 1.0
  %v2374 = vadd.f32 %v2372, 1.0
  %v2375 = vrcp.pop %v2373
  %v2376 = vmul.f32 %v2373, %v2375
  %v2377 = vsub.f32 1.0, %v2376
  %v2378 = vmul.f32 %v2375, %v2377
  %v2379 = vadd.f32 %v2375, %v2378
  %vm2380 = vweird.f32 %v2373
  %vm2381 = vweird.f32 %v2375
  %vm2382 = vmor %vm2380, %vm2381
  %v2383 = vsel %vm2382, %v2375, %v2379
  %v2384 = vand.u32 2147483647, %v2373
  %vm2385 = vcmp.eq.f32.partialorder %v2384, 8.507059e+37
  %v2386 = vand.u32 %v2373, 2147483648
  %v2387 = vor.u32 1.1754944e-38, %v2386
  %v2388 = vsel %vm2385, %v2387, %v2383
  %v2389 = vmul.f32 1.0, %v2388
  %v2390 = vrcp.pop %v2374
  %v2391 = vmul.f32 %v2374, %v2390
  %v2392 = vsub.f32 1.0, %v2391
  %v2393 = vmul.f32 %v2390, %v2392
  %v2394 = vadd.f32 %v2390, %v2393
  %vm2395 = vweird.f32 %v2374
  %vm2396 = vweird.f32 %v2390
  %vm2397 = vmor %vm2395, %vm2396
  %v2398 = vsel %vm2397, %v2390, %v2394
  %v2399 = vand.u32 2147483647, %v2374
  %vm2400 = vcmp.eq.f32.partialorder %v2399, 8.507059e+37
  %v2401 = vand.u32 %v2374, 2147483648
  %v2402 = vor.u32 1.1754944e-38, %v2401
  %v2403 = vsel %vm2400, %v2402, %v2398
  %v2404 = vmul.f32 1.0, %v2403
  %v2405 = vtanh.pop %v2325
  %v2406 = vtanh.pop %v2326
  %v2407 = vxor.u32 %v2327, 2147483648
  %v2408 = vxor.u32 %v2328, 2147483648
  %v2409 = vmul.f32 %v2407, 1.442695
  %v2410 = vpow.pop %v2409
  %v2411 = vmul.f32 %v2408, 1.442695
  %v2412 = vpow.pop %v2411
  %v2413 = vadd.f32 %v2410, 1.0
  %v2414 = vadd.f32 %v2412, 1.0
  %v2415 = vrcp.pop %v2413
  %v2416 = vmul.f32 %v2413, %v2415
  %v2417 = vsub.f32 1.0, %v2416
  %v2418 = vmul.f32 %v2415, %v2417
  %v2419 = vadd.f32 %v2415, %v2418
  %vm2420 = vweird.f32 %v2413
  %vm2421 = vweird.f32 %v2415
  %vm2422 = vmor %vm2420, %vm2421
  %v2423 = vsel %vm2422, %v2415, %v2419
  %v2424 = vand.u32 2147483647, %v2413
  %vm2425 = vcmp.eq.f32.partialorder %v2424, 8.507059e+37
  %v2426 = vand.u32 %v2413, 2147483648
  %v2427 = vor.u32 1.1754944e-38, %v2426
  %v2428 = vsel %vm2425, %v2427, %v2423
  %v2429 = vmul.f32 1.0, %v2428
  %v2430 = vrcp.pop %v2414
  %v2431 = vmul.f32 %v2414, %v2430
  %v2432 = vsub.f32 1.0, %v2431
  %v2433 = vmul.f32 %v2430, %v2432
  %v2434 = vadd.f32 %v2430, %v2433
  %vm2435 = vweird.f32 %v2414
  %vm2436 = vweird.f32 %v2430
  %vm2437 = vmor %vm2435, %vm2436
  %v2438 = vsel %vm2437, %v2430, %v2434
  %v2439 = vand.u32 2147483647, %v2414
  %vm2440 = vcmp.eq.f32.partialorder %v2439, 8.507059e+37
  %v2441 = vand.u32 %v2414, 2147483648
  %v2442 = vor.u32 1.1754944e-38, %v2441
  %v2443 = vsel %vm2440, %v2442, %v2438
  %v2444 = vmul.f32 1.0, %v2443
  %v2445 = vmul.f32 %v2389, %v2079
  %v2446 = vmul.f32 %v2404, %v2080
  %v2447 = vmul.f32 %v2351, %v2405
  %v2448 = vmul.f32 %v2366, %v2406
  %v2449 = vadd.f32 %v2445, %v2447
  %v2450 = vadd.f32 %v2446, %v2448
  %v2451 = vtanh.pop %v2449
  %v2452 = vtanh.pop %v2450
  %v2453 = vmul.f32 %v2429, %v2451
  %v2454 = vmul.f32 %v2444, %v2452
  %v2455 = vsel %vm656, 2, 5
  %v2456 = vsel %vm657, 2, 5
  %vm2457 = vcmp.lt.s32.totalorder %v2455, %v1684
  %vm2458 = vcmp.lt.s32.totalorder %v2456, %v1684
  %v2459 = vsel %vm2457, 1, 0
  %v2460 = vsel %vm2458, 1, 0
  %v2461 = vcvt.s32.f32 %v2459
  %v2462 = vcvt.s32.f32 %v2460
  %v2463 = vsub.f32 %v2449, %v2079
  %v2464 = vsub.f32 %v2450, %v2080
  %v2465 = vmul.f32 %v2461, %v2463
  %v2466 = vmul.f32 %v2462, %v2464
  %v2467 = vadd.f32 %v2079, %v2465
  %v2468 = vadd.f32 %v2080, %v2466
  %v2469 = vsub.f32 %v2453, %v2085
  %v2470 = vsub.f32 %v2454, %v2086
  %v2471 = vmul.f32 %v2461, %v2469
  %v2472 = vmul.f32 %v2462, %v2470
  %v2473 = vadd.f32 %v2085, %v2471
  %v2474 = vadd.f32 %v2086, %v2472
  %v2475 = vld [vmem:[#allocation2 + $0xc0] sm:$0xff]
  %v2476 = vld [vmem:[#allocation2 + $0xc8] sm:$0xff]
  %v2477 = vld [vmem:[#allocation2 + $0xd0] sm:$0xff]
  %v2478 = vld [vmem:[#allocation2 + $0xd8] sm:$0xff]
  %v2479 = vld [vmem:[#allocation2 + $0xe0] sm:$0xff]
  %v2480 = vld [vmem:[#allocation2 + $0xe8] sm:$0xff]
  %v2481 = vld [vmem:[#allocation2 + $0xf0] sm:$0xff]
  %v2482 = vld [vmem:[#allocation2 + $0xf8] sm:$0xff]
  %v2483 = vld [vmem:[#allocation2 + $0x100] sm:$0xff]
  %v2484 = vld [vmem:[#allocation2 + $0x108] sm:$0xff]
  %v2485 = vld [vmem:[#allocation2 + $0x110] sm:$0xff]
  %v2486 = vld [vmem:[#allocation2 + $0x118] sm:$0xff]
  %v2487 = vld [vmem:[#allocation2 + $0x120] sm:$0xff]
  %v2488 = vld [vmem:[#allocation2 + $0x128] sm:$0xff]
  %v2489 = vld [vmem:[#allocation2 + $0x130] sm:$0xff]
  %v2490 = vld [vmem:[#allocation2 + $0x138] sm:$0xff]
  %v2491 = vsel %vm682, %v2475, %v2483
  %v2492 = vsel %vm683, %v2476, %v2484
  %v2493 = vsel %vm684, %v2477, %v2485
  %v2494 = vsel %vm685, %v2478, %v2486
  %v2495 = vsel %vm686, %v2479, %v2487
  %v2496 = vsel %vm687, %v2480, %v2488
  %v2497 = vsel %vm688, %v2481, %v2489
  %v2498 = vsel %vm689, %v2482, %v2490
  %v2499 = vpack.c.bf16 %v2473, %v2473
  %v2500 = vpack.c.bf16 %v2474, %v2474
  %2501 = vmatpush.bf16.msra.mxu0 %v1138
  %2502 = vmatpush.bf16.msra.mxu0 %v1130
  %2503 = vmatpush.bf16.msra.mxu0 %v1122
  %2504 = vmatpush.bf16.msra.mxu0 %v1114
  %2505 = vmatpush.bf16.msra.mxu0 %v1106
  %2506 = vmatpush.bf16.msra.mxu0 %v1098
  %2507 = vmatpush.bf16.msra.mxu0 %v1090
  %2508 = vmatpush.bf16.msra.mxu0 %v1082
  %2509 = vmatmul.bf16.gmra.mxu0 %v2499
  %v2510 = vpop.f32.mrf.mxu0
  %v2511 = vadd.f32 0.0, %v2510
  %v2512 = vpop.f32.mrf.mxu0
  %2513 = vdwg.mxu0
  %2514 = vmatpush.bf16.msra.mxu0 %v1202
  %2515 = vmatpush.bf16.msra.mxu0 %v1194
  %2516 = vmatpush.bf16.msra.mxu0 %v1186
  %2517 = vmatpush.bf16.msra.mxu0 %v1178
  %2518 = vmatpush.bf16.msra.mxu0 %v1170
  %2519 = vmatpush.bf16.msra.mxu0 %v1162
  %2520 = vmatpush.bf16.msra.mxu0 %v1154
  %2521 = vmatpush.bf16.msra.mxu0 %v1146
  %2522 = vmatmul.bf16.gmra.mxu0 %v2500
  %v2523 = vpop.f32.mrf.mxu0
  %v2524 = vadd.f32 %v2511, %v2523
  %v2525 = vpop.f32.mrf.mxu0
  %2526 = vdwg.mxu0
  %2527 = vmatpush.bf16.msra.mxu0 %v1139
  %2528 = vmatpush.bf16.msra.mxu0 %v1131
  %2529 = vmatpush.bf16.msra.mxu0 %v1123
  %2530 = vmatpush.bf16.msra.mxu0 %v1115
  %2531 = vmatpush.bf16.msra.mxu0 %v1107
  %2532 = vmatpush.bf16.msra.mxu0 %v1099
  %2533 = vmatpush.bf16.msra.mxu0 %v1091
  %2534 = vmatpush.bf16.msra.mxu0 %v1083
  %2535 = vmatmul.bf16.gmra.mxu0 %v2499
  %v2536 = vpop.f32.mrf.mxu0
  %v2537 = vadd.f32 0.0, %v2536
  %v2538 = vpop.f32.mrf.mxu0
  %2539 = vdwg.mxu0
  %2540 = vmatpush.bf16.msra.mxu0 %v1203
  %2541 = vmatpush.bf16.msra.mxu0 %v1195
  %2542 = vmatpush.bf16.msra.mxu0 %v1187
  %2543 = vmatpush.bf16.msra.mxu0 %v1179
  %2544 = vmatpush.bf16.msra.mxu0 %v1171
  %2545 = vmatpush.bf16.msra.mxu0 %v1163
  %2546 = vmatpush.bf16.msra.mxu0 %v1155
  %2547 = vmatpush.bf16.msra.mxu0 %v1147
  %2548 = vmatmul.bf16.gmra.mxu0 %v2500
  %v2549 = vpop.f32.mrf.mxu0
  %v2550 = vadd.f32 %v2537, %v2549
  %v2551 = vpop.f32.mrf.mxu0
  %2552 = vdwg.mxu0
  %2553 = vmatpush.bf16.msra.mxu0 %v1140
  %2554 = vmatpush.bf16.msra.mxu0 %v1132
  %2555 = vmatpush.bf16.msra.mxu0 %v1124
  %2556 = vmatpush.bf16.msra.mxu0 %v1116
  %2557 = vmatpush.bf16.msra.mxu0 %v1108
  %2558 = vmatpush.bf16.msra.mxu0 %v1100
  %2559 = vmatpush.bf16.msra.mxu0 %v1092
  %2560 = vmatpush.bf16.msra.mxu0 %v1084
  %2561 = vmatmul.bf16.gmra.mxu0 %v2499
  %v2562 = vpop.f32.mrf.mxu0
  %v2563 = vadd.f32 0.0, %v2562
  %v2564 = vpop.f32.mrf.mxu0
  %2565 = vdwg.mxu0
  %2566 = vmatpush.bf16.msra.mxu0 %v1204
  %2567 = vmatpush.bf16.msra.mxu0 %v1196
  %2568 = vmatpush.bf16.msra.mxu0 %v1188
  %2569 = vmatpush.bf16.msra.mxu0 %v1180
  %2570 = vmatpush.bf16.msra.mxu0 %v1172
  %2571 = vmatpush.bf16.msra.mxu0 %v1164
  %2572 = vmatpush.bf16.msra.mxu0 %v1156
  %2573 = vmatpush.bf16.msra.mxu0 %v1148
  %2574 = vmatmul.bf16.gmra.mxu0 %v2500
  %v2575 = vpop.f32.mrf.mxu0
  %v2576 = vadd.f32 %v2563, %v2575
  %v2577 = vpop.f32.mrf.mxu0
  %2578 = vdwg.mxu0
  %2579 = vmatpush.bf16.msra.mxu0 %v1141
  %2580 = vmatpush.bf16.msra.mxu0 %v1133
  %2581 = vmatpush.bf16.msra.mxu0 %v1125
  %2582 = vmatpush.bf16.msra.mxu0 %v1117
  %2583 = vmatpush.bf16.msra.mxu0 %v1109
  %2584 = vmatpush.bf16.msra.mxu0 %v1101
  %2585 = vmatpush.bf16.msra.mxu0 %v1093
  %2586 = vmatpush.bf16.msra.mxu0 %v1085
  %2587 = vmatmul.bf16.gmra.mxu0 %v2499
  %v2588 = vpop.f32.mrf.mxu0
  %v2589 = vadd.f32 0.0, %v2588
  %v2590 = vpop.f32.mrf.mxu0
  %2591 = vdwg.mxu0
  %2592 = vmatpush.bf16.msra.mxu0 %v1205
  %2593 = vmatpush.bf16.msra.mxu0 %v1197
  %2594 = vmatpush.bf16.msra.mxu0 %v1189
  %2595 = vmatpush.bf16.msra.mxu0 %v1181
  %2596 = vmatpush.bf16.msra.mxu0 %v1173
  %2597 = vmatpush.bf16.msra.mxu0 %v1165
  %2598 = vmatpush.bf16.msra.mxu0 %v1157
  %2599 = vmatpush.bf16.msra.mxu0 %v1149
  %2600 = vmatmul.bf16.gmra.mxu0 %v2500
  %v2601 = vpop.f32.mrf.mxu0
  %v2602 = vadd.f32 %v2589, %v2601
  %v2603 = vpop.f32.mrf.mxu0
  %2604 = vdwg.mxu0
  %2605 = vmatpush.bf16.msra.mxu0 %v1142
  %2606 = vmatpush.bf16.msra.mxu0 %v1134
  %2607 = vmatpush.bf16.msra.mxu0 %v1126
  %2608 = vmatpush.bf16.msra.mxu0 %v1118
  %2609 = vmatpush.bf16.msra.mxu0 %v1110
  %2610 = vmatpush.bf16.msra.mxu0 %v1102
  %2611 = vmatpush.bf16.msra.mxu0 %v1094
  %2612 = vmatpush.bf16.msra.mxu0 %v1086
  %2613 = vmatmul.bf16.gmra.mxu0 %v2499
  %v2614 = vpop.f32.mrf.mxu0
  %v2615 = vadd.f32 0.0, %v2614
  %v2616 = vpop.f32.mrf.mxu0
  %2617 = vdwg.mxu0
  %2618 = vmatpush.bf16.msra.mxu0 %v1206
  %2619 = vmatpush.bf16.msra.mxu0 %v1198
  %2620 = vmatpush.bf16.msra.mxu0 %v1190
  %2621 = vmatpush.bf16.msra.mxu0 %v1182
  %2622 = vmatpush.bf16.msra.mxu0 %v1174
  %2623 = vmatpush.bf16.msra.mxu0 %v1166
  %2624 = vmatpush.bf16.msra.mxu0 %v1158
  %2625 = vmatpush.bf16.msra.mxu0 %v1150
  %2626 = vmatmul.bf16.gmra.mxu0 %v2500
  %v2627 = vpop.f32.mrf.mxu0
  %v2628 = vadd.f32 %v2615, %v2627
  %v2629 = vpop.f32.mrf.mxu0
  %2630 = vdwg.mxu0
  %2631 = vmatpush.bf16.msra.mxu0 %v1143
  %2632 = vmatpush.bf16.msra.mxu0 %v1135
  %2633 = vmatpush.bf16.msra.mxu0 %v1127
  %2634 = vmatpush.bf16.msra.mxu0 %v1119
  %2635 = vmatpush.bf16.msra.mxu0 %v1111
  %2636 = vmatpush.bf16.msra.mxu0 %v1103
  %2637 = vmatpush.bf16.msra.mxu0 %v1095
  %2638 = vmatpush.bf16.msra.mxu0 %v1087
  %2639 = vmatmul.bf16.gmra.mxu0 %v2499
  %v2640 = vpop.f32.mrf.mxu0
  %v2641 = vadd.f32 0.0, %v2640
  %v2642 = vpop.f32.mrf.mxu0
  %2643 = vdwg.mxu0
  %2644 = vmatpush.bf16.msra.mxu0 %v1207
  %2645 = vmatpush.bf16.msra.mxu0 %v1199
  %2646 = vmatpush.bf16.msra.mxu0 %v1191
  %2647 = vmatpush.bf16.msra.mxu0 %v1183
  %2648 = vmatpush.bf16.msra.mxu0 %v1175
  %2649 = vmatpush.bf16.msra.mxu0 %v1167
  %2650 = vmatpush.bf16.msra.mxu0 %v1159
  %2651 = vmatpush.bf16.msra.mxu0 %v1151
  %2652 = vmatmul.bf16.gmra.mxu0 %v2500
  %v2653 = vpop.f32.mrf.mxu0
  %v2654 = vadd.f32 %v2641, %v2653
  %v2655 = vpop.f32.mrf.mxu0
  %2656 = vdwg.mxu0
  %2657 = vmatpush.bf16.msra.mxu0 %v1144
  %2658 = vmatpush.bf16.msra.mxu0 %v1136
  %2659 = vmatpush.bf16.msra.mxu0 %v1128
  %2660 = vmatpush.bf16.msra.mxu0 %v1120
  %2661 = vmatpush.bf16.msra.mxu0 %v1112
  %2662 = vmatpush.bf16.msra.mxu0 %v1104
  %2663 = vmatpush.bf16.msra.mxu0 %v1096
  %2664 = vmatpush.bf16.msra.mxu0 %v1088
  %2665 = vmatmul.bf16.gmra.mxu0 %v2499
  %v2666 = vpop.f32.mrf.mxu0
  %v2667 = vadd.f32 0.0, %v2666
  %v2668 = vpop.f32.mrf.mxu0
  %2669 = vdwg.mxu0
  %2670 = vmatpush.bf16.msra.mxu0 %v1208
  %2671 = vmatpush.bf16.msra.mxu0 %v1200
  %2672 = vmatpush.bf16.msra.mxu0 %v1192
  %2673 = vmatpush.bf16.msra.mxu0 %v1184
  %2674 = vmatpush.bf16.msra.mxu0 %v1176
  %2675 = vmatpush.bf16.msra.mxu0 %v1168
  %2676 = vmatpush.bf16.msra.mxu0 %v1160
  %2677 = vmatpush.bf16.msra.mxu0 %v1152
  %2678 = vmatmul.bf16.gmra.mxu0 %v2500
  %v2679 = vpop.f32.mrf.mxu0
  %v2680 = vadd.f32 %v2667, %v2679
  %v2681 = vpop.f32.mrf.mxu0
  %2682 = vdwg.mxu0
  %2683 = vmatpush.bf16.msra.mxu0 %v1145
  %2684 = vmatpush.bf16.msra.mxu0 %v1137
  %2685 = vmatpush.bf16.msra.mxu0 %v1129
  %2686 = vmatpush.bf16.msra.mxu0 %v1121
  %2687 = vmatpush.bf16.msra.mxu0 %v1113
  %2688 = vmatpush.bf16.msra.mxu0 %v1105
  %2689 = vmatpush.bf16.msra.mxu0 %v1097
  %2690 = vmatpush.bf16.msra.mxu0 %v1089
  %2691 = vmatmul.bf16.gmra.mxu0 %v2499
  %v2692 = vpop.f32.mrf.mxu0
  %v2693 = vadd.f32 0.0, %v2692
  %v2694 = vpop.f32.mrf.mxu0
  %2695 = vdwg.mxu0
  %2696 = vmatpush.bf16.msra.mxu0 %v1209
  %2697 = vmatpush.bf16.msra.mxu0 %v1201
  %2698 = vmatpush.bf16.msra.mxu0 %v1193
  %2699 = vmatpush.bf16.msra.mxu0 %v1185
  %2700 = vmatpush.bf16.msra.mxu0 %v1177
  %2701 = vmatpush.bf16.msra.mxu0 %v1169
  %2702 = vmatpush.bf16.msra.mxu0 %v1161
  %2703 = vmatpush.bf16.msra.mxu0 %v1153
  %2704 = vmatmul.bf16.gmra.mxu0 %v2500
  %v2705 = vpop.f32.mrf.mxu0
  %v2706 = vadd.f32 %v2693, %v2705
  %v2707 = vpop.f32.mrf.mxu0
  %2708 = vdwg.mxu0
  %v2709 = vadd.f32 %v2491, %v2524
  %v2710 = vadd.f32 %v2492, %v2550
  %v2711 = vadd.f32 %v2493, %v2576
  %v2712 = vadd.f32 %v2494, %v2602
  %v2713 = vadd.f32 %v2495, %v2628
  %v2714 = vadd.f32 %v2496, %v2654
  %v2715 = vadd.f32 %v2497, %v2680
  %v2716 = vadd.f32 %v2498, %v2706
  %v2717 = vxor.u32 %v2709, 2147483648
  %v2718 = vxor.u32 %v2710, 2147483648
  %v2719 = vmul.f32 %v2717, 1.442695
  %v2720 = vpow.pop %v2719
  %v2721 = vmul.f32 %v2718, 1.442695
  %v2722 = vpow.pop %v2721
  %v2723 = vadd.f32 %v2720, 1.0
  %v2724 = vadd.f32 %v2722, 1.0
  %v2725 = vrcp.pop %v2723
  %v2726 = vmul.f32 %v2723, %v2725
  %v2727 = vsub.f32 1.0, %v2726
  %v2728 = vmul.f32 %v2725, %v2727
  %v2729 = vadd.f32 %v2725, %v2728
  %vm2730 = vweird.f32 %v2723
  %vm2731 = vweird.f32 %v2725
  %vm2732 = vmor %vm2730, %vm2731
  %v2733 = vsel %vm2732, %v2725, %v2729
  %v2734 = vand.u32 2147483647, %v2723
  %vm2735 = vcmp.eq.f32.partialorder %v2734, 8.507059e+37
  %v2736 = vand.u32 %v2723, 2147483648
  %v2737 = vor.u32 1.1754944e-38, %v2736
  %v2738 = vsel %vm2735, %v2737, %v2733
  %v2739 = vmul.f32 1.0, %v2738
  %v2740 = vrcp.pop %v2724
  %v2741 = vmul.f32 %v2724, %v2740
  %v2742 = vsub.f32 1.0, %v2741
  %v2743 = vmul.f32 %v2740, %v2742
  %v2744 = vadd.f32 %v2740, %v2743
  %vm2745 = vweird.f32 %v2724
  %vm2746 = vweird.f32 %v2740
  %vm2747 = vmor %vm2745, %vm2746
  %v2748 = vsel %vm2747, %v2740, %v2744
  %v2749 = vand.u32 2147483647, %v2724
  %vm2750 = vcmp.eq.f32.partialorder %v2749, 8.507059e+37
  %v2751 = vand.u32 %v2724, 2147483648
  %v2752 = vor.u32 1.1754944e-38, %v2751
  %v2753 = vsel %vm2750, %v2752, %v2748
  %v2754 = vmul.f32 1.0, %v2753
  %v2755 = vxor.u32 %v2711, 2147483648
  %v2756 = vxor.u32 %v2712, 2147483648
  %v2757 = vmul.f32 %v2755, 1.442695
  %v2758 = vpow.pop %v2757
  %v2759 = vmul.f32 %v2756, 1.442695
  %v2760 = vpow.pop %v2759
  %v2761 = vadd.f32 %v2758, 1.0
  %v2762 = vadd.f32 %v2760, 1.0
  %v2763 = vrcp.pop %v2761
  %v2764 = vmul.f32 %v2761, %v2763
  %v2765 = vsub.f32 1.0, %v2764
  %v2766 = vmul.f32 %v2763, %v2765
  %v2767 = vadd.f32 %v2763, %v2766
  %vm2768 = vweird.f32 %v2761
  %vm2769 = vweird.f32 %v2763
  %vm2770 = vmor %vm2768, %vm2769
  %v2771 = vsel %vm2770, %v2763, %v2767
  %v2772 = vand.u32 2147483647, %v2761
  %vm2773 = vcmp.eq.f32.partialorder %v2772, 8.507059e+37
  %v2774 = vand.u32 %v2761, 2147483648
  %v2775 = vor.u32 1.1754944e-38, %v2774
  %v2776 = vsel %vm2773, %v2775, %v2771
  %v2777 = vmul.f32 1.0, %v2776
  %v2778 = vrcp.pop %v2762
  %v2779 = vmul.f32 %v2762, %v2778
  %v2780 = vsub.f32 1.0, %v2779
  %v2781 = vmul.f32 %v2778, %v2780
  %v2782 = vadd.f32 %v2778, %v2781
  %vm2783 = vweird.f32 %v2762
  %vm2784 = vweird.f32 %v2778
  %vm2785 = vmor %vm2783, %vm2784
  %v2786 = vsel %vm2785, %v2778, %v2782
  %v2787 = vand.u32 2147483647, %v2762
  %vm2788 = vcmp.eq.f32.partialorder %v2787, 8.507059e+37
  %v2789 = vand.u32 %v2762, 2147483648
  %v2790 = vor.u32 1.1754944e-38, %v2789
  %v2791 = vsel %vm2788, %v2790, %v2786
  %v2792 = vmul.f32 1.0, %v2791
  %v2793 = vtanh.pop %v2713
  %v2794 = vtanh.pop %v2714
  %v2795 = vxor.u32 %v2715, 2147483648
  %v2796 = vxor.u32 %v2716, 2147483648
  %v2797 = vmul.f32 %v2795, 1.442695
  %v2798 = vpow.pop %v2797
  %v2799 = vmul.f32 %v2796, 1.442695
  %v2800 = vpow.pop %v2799
  %v2801 = vadd.f32 %v2798, 1.0
  %v2802 = vadd.f32 %v2800, 1.0
  %v2803 = vrcp.pop %v2801
  %v2804 = vmul.f32 %v2801, %v2803
  %v2805 = vsub.f32 1.0, %v2804
  %v2806 = vmul.f32 %v2803, %v2805
  %v2807 = vadd.f32 %v2803, %v2806
  %vm2808 = vweird.f32 %v2801
  %vm2809 = vweird.f32 %v2803
  %vm2810 = vmor %vm2808, %vm2809
  %v2811 = vsel %vm2810, %v2803, %v2807
  %v2812 = vand.u32 2147483647, %v2801
  %vm2813 = vcmp.eq.f32.partialorder %v2812, 8.507059e+37
  %v2814 = vand.u32 %v2801, 2147483648
  %v2815 = vor.u32 1.1754944e-38, %v2814
  %v2816 = vsel %vm2813, %v2815, %v2811
  %v2817 = vmul.f32 1.0, %v2816
  %v2818 = vrcp.pop %v2802
  %v2819 = vmul.f32 %v2802, %v2818
  %v2820 = vsub.f32 1.0, %v2819
  %v2821 = vmul.f32 %v2818, %v2820
  %v2822 = vadd.f32 %v2818, %v2821
  %vm2823 = vweird.f32 %v2802
  %vm2824 = vweird.f32 %v2818
  %vm2825 = vmor %vm2823, %vm2824
  %v2826 = vsel %vm2825, %v2818, %v2822
  %v2827 = vand.u32 2147483647, %v2802
  %vm2828 = vcmp.eq.f32.partialorder %v2827, 8.507059e+37
  %v2829 = vand.u32 %v2802, 2147483648
  %v2830 = vor.u32 1.1754944e-38, %v2829
  %v2831 = vsel %vm2828, %v2830, %v2826
  %v2832 = vmul.f32 1.0, %v2831
  %v2833 = vmul.f32 %v2777, %v2467
  %v2834 = vmul.f32 %v2792, %v2468
  %v2835 = vmul.f32 %v2739, %v2793
  %v2836 = vmul.f32 %v2754, %v2794
  %v2837 = vadd.f32 %v2833, %v2835
  %v2838 = vadd.f32 %v2834, %v2836
  %v2839 = vtanh.pop %v2837
  %v2840 = vtanh.pop %v2838
  %v2841 = vmul.f32 %v2817, %v2839
  %v2842 = vmul.f32 %v2832, %v2840
  %v2843 = vsel %vm656, 3, 4
  %v2844 = vsel %vm657, 3, 4
  %vm2845 = vcmp.lt.s32.totalorder %v2843, %v1684
  %vm2846 = vcmp.lt.s32.totalorder %v2844, %v1684
  %v2847 = vsel %vm2845, 1, 0
  %v2848 = vsel %vm2846, 1, 0
  %v2849 = vcvt.s32.f32 %v2847
  %v2850 = vcvt.s32.f32 %v2848
  %v2851 = vsub.f32 %v2837, %v2467
  %v2852 = vsub.f32 %v2838, %v2468
  %v2853 = vmul.f32 %v2849, %v2851
  %v2854 = vmul.f32 %v2850, %v2852
  %v2855 = vadd.f32 %v2467, %v2853
  %v2856 = vadd.f32 %v2468, %v2854
  %v2857 = vsub.f32 %v2841, %v2473
  %v2858 = vsub.f32 %v2842, %v2474
  %v2859 = vmul.f32 %v2849, %v2857
  %v2860 = vmul.f32 %v2850, %v2858
  %v2861 = vadd.f32 %v2473, %v2859
  %v2862 = vadd.f32 %v2474, %v2860
  %v2863 = vsel %vm682, %v2483, %v2475
  %v2864 = vsel %vm683, %v2484, %v2476
  %v2865 = vsel %vm684, %v2485, %v2477
  %v2866 = vsel %vm685, %v2486, %v2478
  %v2867 = vsel %vm686, %v2487, %v2479
  %v2868 = vsel %vm687, %v2488, %v2480
  %v2869 = vsel %vm688, %v2489, %v2481
  %v2870 = vsel %vm689, %v2490, %v2482
  %v2871 = vpack.c.bf16 %v2861, %v2861
  %v2872 = vpack.c.bf16 %v2862, %v2862
  %2873 = vmatpush.bf16.msra.mxu0 %v1138
  %2874 = vmatpush.bf16.msra.mxu0 %v1130
  %2875 = vmatpush.bf16.msra.mxu0 %v1122
  %2876 = vmatpush.bf16.msra.mxu0 %v1114
  %2877 = vmatpush.bf16.msra.mxu0 %v1106
  %2878 = vmatpush.bf16.msra.mxu0 %v1098
  %2879 = vmatpush.bf16.msra.mxu0 %v1090
  %2880 = vmatpush.bf16.msra.mxu0 %v1082
  %2881 = vmatmul.bf16.gmra.mxu0 %v2871
  %v2882 = vpop.f32.mrf.mxu0
  %v2883 = vadd.f32 0.0, %v2882
  %v2884 = vpop.f32.mrf.mxu0
  %2885 = vdwg.mxu0
  %2886 = vmatpush.bf16.msra.mxu0 %v1202
  %2887 = vmatpush.bf16.msra.mxu0 %v1194
  %2888 = vmatpush.bf16.msra.mxu0 %v1186
  %2889 = vmatpush.bf16.msra.mxu0 %v1178
  %2890 = vmatpush.bf16.msra.mxu0 %v1170
  %2891 = vmatpush.bf16.msra.mxu0 %v1162
  %2892 = vmatpush.bf16.msra.mxu0 %v1154
  %2893 = vmatpush.bf16.msra.mxu0 %v1146
  %2894 = vmatmul.bf16.gmra.mxu0 %v2872
  %v2895 = vpop.f32.mrf.mxu0
  %v2896 = vadd.f32 %v2883, %v2895
  %v2897 = vpop.f32.mrf.mxu0
  %2898 = vdwg.mxu0
  %2899 = vmatpush.bf16.msra.mxu0 %v1139
  %2900 = vmatpush.bf16.msra.mxu0 %v1131
  %2901 = vmatpush.bf16.msra.mxu0 %v1123
  %2902 = vmatpush.bf16.msra.mxu0 %v1115
  %2903 = vmatpush.bf16.msra.mxu0 %v1107
  %2904 = vmatpush.bf16.msra.mxu0 %v1099
  %2905 = vmatpush.bf16.msra.mxu0 %v1091
  %2906 = vmatpush.bf16.msra.mxu0 %v1083
  %2907 = vmatmul.bf16.gmra.mxu0 %v2871
  %v2908 = vpop.f32.mrf.mxu0
  %v2909 = vadd.f32 0.0, %v2908
  %v2910 = vpop.f32.mrf.mxu0
  %2911 = vdwg.mxu0
  %2912 = vmatpush.bf16.msra.mxu0 %v1203
  %2913 = vmatpush.bf16.msra.mxu0 %v1195
  %2914 = vmatpush.bf16.msra.mxu0 %v1187
  %2915 = vmatpush.bf16.msra.mxu0 %v1179
  %2916 = vmatpush.bf16.msra.mxu0 %v1171
  %2917 = vmatpush.bf16.msra.mxu0 %v1163
  %2918 = vmatpush.bf16.msra.mxu0 %v1155
  %2919 = vmatpush.bf16.msra.mxu0 %v1147
  %2920 = vmatmul.bf16.gmra.mxu0 %v2872
  %v2921 = vpop.f32.mrf.mxu0
  %v2922 = vadd.f32 %v2909, %v2921
  %v2923 = vpop.f32.mrf.mxu0
  %2924 = vdwg.mxu0
  %2925 = vmatpush.bf16.msra.mxu0 %v1140
  %2926 = vmatpush.bf16.msra.mxu0 %v1132
  %2927 = vmatpush.bf16.msra.mxu0 %v1124
  %2928 = vmatpush.bf16.msra.mxu0 %v1116
  %2929 = vmatpush.bf16.msra.mxu0 %v1108
  %2930 = vmatpush.bf16.msra.mxu0 %v1100
  %2931 = vmatpush.bf16.msra.mxu0 %v1092
  %2932 = vmatpush.bf16.msra.mxu0 %v1084
  %2933 = vmatmul.bf16.gmra.mxu0 %v2871
  %v2934 = vpop.f32.mrf.mxu0
  %v2935 = vadd.f32 0.0, %v2934
  %v2936 = vpop.f32.mrf.mxu0
  %2937 = vdwg.mxu0
  %2938 = vmatpush.bf16.msra.mxu0 %v1204
  %2939 = vmatpush.bf16.msra.mxu0 %v1196
  %2940 = vmatpush.bf16.msra.mxu0 %v1188
  %2941 = vmatpush.bf16.msra.mxu0 %v1180
  %2942 = vmatpush.bf16.msra.mxu0 %v1172
  %2943 = vmatpush.bf16.msra.mxu0 %v1164
  %2944 = vmatpush.bf16.msra.mxu0 %v1156
  %2945 = vmatpush.bf16.msra.mxu0 %v1148
  %2946 = vmatmul.bf16.gmra.mxu0 %v2872
  %v2947 = vpop.f32.mrf.mxu0
  %v2948 = vadd.f32 %v2935, %v2947
  %v2949 = vpop.f32.mrf.mxu0
  %2950 = vdwg.mxu0
  %2951 = vmatpush.bf16.msra.mxu0 %v1141
  %2952 = vmatpush.bf16.msra.mxu0 %v1133
  %2953 = vmatpush.bf16.msra.mxu0 %v1125
  %2954 = vmatpush.bf16.msra.mxu0 %v1117
  %2955 = vmatpush.bf16.msra.mxu0 %v1109
  %2956 = vmatpush.bf16.msra.mxu0 %v1101
  %2957 = vmatpush.bf16.msra.mxu0 %v1093
  %2958 = vmatpush.bf16.msra.mxu0 %v1085
  %2959 = vmatmul.bf16.gmra.mxu0 %v2871
  %v2960 = vpop.f32.mrf.mxu0
  %v2961 = vadd.f32 0.0, %v2960
  %v2962 = vpop.f32.mrf.mxu0
  %2963 = vdwg.mxu0
  %2964 = vmatpush.bf16.msra.mxu0 %v1205
  %2965 = vmatpush.bf16.msra.mxu0 %v1197
  %2966 = vmatpush.bf16.msra.mxu0 %v1189
  %2967 = vmatpush.bf16.msra.mxu0 %v1181
  %2968 = vmatpush.bf16.msra.mxu0 %v1173
  %2969 = vmatpush.bf16.msra.mxu0 %v1165
  %2970 = vmatpush.bf16.msra.mxu0 %v1157
  %2971 = vmatpush.bf16.msra.mxu0 %v1149
  %2972 = vmatmul.bf16.gmra.mxu0 %v2872
  %v2973 = vpop.f32.mrf.mxu0
  %v2974 = vadd.f32 %v2961, %v2973
  %v2975 = vpop.f32.mrf.mxu0
  %2976 = vdwg.mxu0
  %2977 = vmatpush.bf16.msra.mxu0 %v1142
  %2978 = vmatpush.bf16.msra.mxu0 %v1134
  %2979 = vmatpush.bf16.msra.mxu0 %v1126
  %2980 = vmatpush.bf16.msra.mxu0 %v1118
  %2981 = vmatpush.bf16.msra.mxu0 %v1110
  %2982 = vmatpush.bf16.msra.mxu0 %v1102
  %2983 = vmatpush.bf16.msra.mxu0 %v1094
  %2984 = vmatpush.bf16.msra.mxu0 %v1086
  %2985 = vmatmul.bf16.gmra.mxu0 %v2871
  %v2986 = vpop.f32.mrf.mxu0
  %v2987 = vadd.f32 0.0, %v2986
  %v2988 = vpop.f32.mrf.mxu0
  %2989 = vdwg.mxu0
  %2990 = vmatpush.bf16.msra.mxu0 %v1206
  %2991 = vmatpush.bf16.msra.mxu0 %v1198
  %2992 = vmatpush.bf16.msra.mxu0 %v1190
  %2993 = vmatpush.bf16.msra.mxu0 %v1182
  %2994 = vmatpush.bf16.msra.mxu0 %v1174
  %2995 = vmatpush.bf16.msra.mxu0 %v1166
  %2996 = vmatpush.bf16.msra.mxu0 %v1158
  %2997 = vmatpush.bf16.msra.mxu0 %v1150
  %2998 = vmatmul.bf16.gmra.mxu0 %v2872
  %v2999 = vpop.f32.mrf.mxu0
  %v3000 = vadd.f32 %v2987, %v2999
  %v3001 = vpop.f32.mrf.mxu0
  %3002 = vdwg.mxu0
  %3003 = vmatpush.bf16.msra.mxu0 %v1143
  %3004 = vmatpush.bf16.msra.mxu0 %v1135
  %3005 = vmatpush.bf16.msra.mxu0 %v1127
  %3006 = vmatpush.bf16.msra.mxu0 %v1119
  %3007 = vmatpush.bf16.msra.mxu0 %v1111
  %3008 = vmatpush.bf16.msra.mxu0 %v1103
  %3009 = vmatpush.bf16.msra.mxu0 %v1095
  %3010 = vmatpush.bf16.msra.mxu0 %v1087
  %3011 = vmatmul.bf16.gmra.mxu0 %v2871
  %v3012 = vpop.f32.mrf.mxu0
  %v3013 = vadd.f32 0.0, %v3012
  %v3014 = vpop.f32.mrf.mxu0
  %3015 = vdwg.mxu0
  %3016 = vmatpush.bf16.msra.mxu0 %v1207
  %3017 = vmatpush.bf16.msra.mxu0 %v1199
  %3018 = vmatpush.bf16.msra.mxu0 %v1191
  %3019 = vmatpush.bf16.msra.mxu0 %v1183
  %3020 = vmatpush.bf16.msra.mxu0 %v1175
  %3021 = vmatpush.bf16.msra.mxu0 %v1167
  %3022 = vmatpush.bf16.msra.mxu0 %v1159
  %3023 = vmatpush.bf16.msra.mxu0 %v1151
  %3024 = vmatmul.bf16.gmra.mxu0 %v2872
  %v3025 = vpop.f32.mrf.mxu0
  %v3026 = vadd.f32 %v3013, %v3025
  %v3027 = vpop.f32.mrf.mxu0
  %3028 = vdwg.mxu0
  %3029 = vmatpush.bf16.msra.mxu0 %v1144
  %3030 = vmatpush.bf16.msra.mxu0 %v1136
  %3031 = vmatpush.bf16.msra.mxu0 %v1128
  %3032 = vmatpush.bf16.msra.mxu0 %v1120
  %3033 = vmatpush.bf16.msra.mxu0 %v1112
  %3034 = vmatpush.bf16.msra.mxu0 %v1104
  %3035 = vmatpush.bf16.msra.mxu0 %v1096
  %3036 = vmatpush.bf16.msra.mxu0 %v1088
  %3037 = vmatmul.bf16.gmra.mxu0 %v2871
  %v3038 = vpop.f32.mrf.mxu0
  %v3039 = vadd.f32 0.0, %v3038
  %v3040 = vpop.f32.mrf.mxu0
  %3041 = vdwg.mxu0
  %3042 = vmatpush.bf16.msra.mxu0 %v1208
  %3043 = vmatpush.bf16.msra.mxu0 %v1200
  %3044 = vmatpush.bf16.msra.mxu0 %v1192
  %3045 = vmatpush.bf16.msra.mxu0 %v1184
  %3046 = vmatpush.bf16.msra.mxu0 %v1176
  %3047 = vmatpush.bf16.msra.mxu0 %v1168
  %3048 = vmatpush.bf16.msra.mxu0 %v1160
  %3049 = vmatpush.bf16.msra.mxu0 %v1152
  %3050 = vmatmul.bf16.gmra.mxu0 %v2872
  %v3051 = vpop.f32.mrf.mxu0
  %v3052 = vadd.f32 %v3039, %v3051
  %v3053 = vpop.f32.mrf.mxu0
  %3054 = vdwg.mxu0
  %3055 = vmatpush.bf16.msra.mxu0 %v1145
  %3056 = vmatpush.bf16.msra.mxu0 %v1137
  %3057 = vmatpush.bf16.msra.mxu0 %v1129
  %3058 = vmatpush.bf16.msra.mxu0 %v1121
  %3059 = vmatpush.bf16.msra.mxu0 %v1113
  %3060 = vmatpush.bf16.msra.mxu0 %v1105
  %3061 = vmatpush.bf16.msra.mxu0 %v1097
  %3062 = vmatpush.bf16.msra.mxu0 %v1089
  %3063 = vmatmul.bf16.gmra.mxu0 %v2871
  %v3064 = vpop.f32.mrf.mxu0
  %v3065 = vadd.f32 0.0, %v3064
  %v3066 = vpop.f32.mrf.mxu0
  %3067 = vdwg.mxu0
  %3068 = vmatpush.bf16.msra.mxu0 %v1209
  %3069 = vmatpush.bf16.msra.mxu0 %v1201
  %3070 = vmatpush.bf16.msra.mxu0 %v1193
  %3071 = vmatpush.bf16.msra.mxu0 %v1185
  %3072 = vmatpush.bf16.msra.mxu0 %v1177
  %3073 = vmatpush.bf16.msra.mxu0 %v1169
  %3074 = vmatpush.bf16.msra.mxu0 %v1161
  %3075 = vmatpush.bf16.msra.mxu0 %v1153
  %3076 = vmatmul.bf16.gmra.mxu0 %v2872
  %v3077 = vpop.f32.mrf.mxu0
  %v3078 = vadd.f32 %v3065, %v3077
  %v3079 = vpop.f32.mrf.mxu0
  %3080 = vdwg.mxu0
  %v3081 = vadd.f32 %v2863, %v2896
  %v3082 = vadd.f32 %v2864, %v2922
  %v3083 = vadd.f32 %v2865, %v2948
  %v3084 = vadd.f32 %v2866, %v2974
  %v3085 = vadd.f32 %v2867, %v3000
  %v3086 = vadd.f32 %v2868, %v3026
  %v3087 = vadd.f32 %v2869, %v3052
  %v3088 = vadd.f32 %v2870, %v3078
  %v3089 = vxor.u32 %v3081, 2147483648
  %v3090 = vxor.u32 %v3082, 2147483648
  %v3091 = vmul.f32 %v3089, 1.442695
  %v3092 = vpow.pop %v3091
  %v3093 = vmul.f32 %v3090, 1.442695
  %v3094 = vpow.pop %v3093
  %v3095 = vadd.f32 %v3092, 1.0
  %v3096 = vadd.f32 %v3094, 1.0
  %v3097 = vrcp.pop %v3095
  %v3098 = vmul.f32 %v3095, %v3097
  %v3099 = vsub.f32 1.0, %v3098
  %v3100 = vmul.f32 %v3097, %v3099
  %v3101 = vadd.f32 %v3097, %v3100
  %vm3102 = vweird.f32 %v3095
  %vm3103 = vweird.f32 %v3097
  %vm3104 = vmor %vm3102, %vm3103
  %v3105 = vsel %vm3104, %v3097, %v3101
  %v3106 = vand.u32 2147483647, %v3095
  %vm3107 = vcmp.eq.f32.partialorder %v3106, 8.507059e+37
  %v3108 = vand.u32 %v3095, 2147483648
  %v3109 = vor.u32 1.1754944e-38, %v3108
  %v3110 = vsel %vm3107, %v3109, %v3105
  %v3111 = vmul.f32 1.0, %v3110
  %v3112 = vrcp.pop %v3096
  %v3113 = vmul.f32 %v3096, %v3112
  %v3114 = vsub.f32 1.0, %v3113
  %v3115 = vmul.f32 %v3112, %v3114
  %v3116 = vadd.f32 %v3112, %v3115
  %vm3117 = vweird.f32 %v3096
  %vm3118 = vweird.f32 %v3112
  %vm3119 = vmor %vm3117, %vm3118
  %v3120 = vsel %vm3119, %v3112, %v3116
  %v3121 = vand.u32 2147483647, %v3096
  %vm3122 = vcmp.eq.f32.partialorder %v3121, 8.507059e+37
  %v3123 = vand.u32 %v3096, 2147483648
  %v3124 = vor.u32 1.1754944e-38, %v3123
  %v3125 = vsel %vm3122, %v3124, %v3120
  %v3126 = vmul.f32 1.0, %v3125
  %v3127 = vxor.u32 %v3083, 2147483648
  %v3128 = vxor.u32 %v3084, 2147483648
  %v3129 = vmul.f32 %v3127, 1.442695
  %v3130 = vpow.pop %v3129
  %v3131 = vmul.f32 %v3128, 1.442695
  %v3132 = vpow.pop %v3131
  %v3133 = vadd.f32 %v3130, 1.0
  %v3134 = vadd.f32 %v3132, 1.0
  %v3135 = vrcp.pop %v3133
  %v3136 = vmul.f32 %v3133, %v3135
  %v3137 = vsub.f32 1.0, %v3136
  %v3138 = vmul.f32 %v3135, %v3137
  %v3139 = vadd.f32 %v3135, %v3138
  %vm3140 = vweird.f32 %v3133
  %vm3141 = vweird.f32 %v3135
  %vm3142 = vmor %vm3140, %vm3141
  %v3143 = vsel %vm3142, %v3135, %v3139
  %v3144 = vand.u32 2147483647, %v3133
  %vm3145 = vcmp.eq.f32.partialorder %v3144, 8.507059e+37
  %v3146 = vand.u32 %v3133, 2147483648
  %v3147 = vor.u32 1.1754944e-38, %v3146
  %v3148 = vsel %vm3145, %v3147, %v3143
  %v3149 = vmul.f32 1.0, %v3148
  %v3150 = vrcp.pop %v3134
  %v3151 = vmul.f32 %v3134, %v3150
  %v3152 = vsub.f32 1.0, %v3151
  %v3153 = vmul.f32 %v3150, %v3152
  %v3154 = vadd.f32 %v3150, %v3153
  %vm3155 = vweird.f32 %v3134
  %vm3156 = vweird.f32 %v3150
  %vm3157 = vmor %vm3155, %vm3156
  %v3158 = vsel %vm3157, %v3150, %v3154
  %v3159 = vand.u32 2147483647, %v3134
  %vm3160 = vcmp.eq.f32.partialorder %v3159, 8.507059e+37
  %v3161 = vand.u32 %v3134, 2147483648
  %v3162 = vor.u32 1.1754944e-38, %v3161
  %v3163 = vsel %vm3160, %v3162, %v3158
  %v3164 = vmul.f32 1.0, %v3163
  %v3165 = vtanh.pop %v3085
  %v3166 = vtanh.pop %v3086
  %v3167 = vxor.u32 %v3087, 2147483648
  %v3168 = vxor.u32 %v3088, 2147483648
  %v3169 = vmul.f32 %v3167, 1.442695
  %v3170 = vpow.pop %v3169
  %v3171 = vmul.f32 %v3168, 1.442695
  %v3172 = vpow.pop %v3171
  %v3173 = vadd.f32 %v3170, 1.0
  %v3174 = vadd.f32 %v3172, 1.0
  %v3175 = vrcp.pop %v3173
  %v3176 = vmul.f32 %v3173, %v3175
  %v3177 = vsub.f32 1.0, %v3176
  %v3178 = vmul.f32 %v3175, %v3177
  %v3179 = vadd.f32 %v3175, %v3178
  %vm3180 = vweird.f32 %v3173
  %vm3181 = vweird.f32 %v3175
  %vm3182 = vmor %vm3180, %vm3181
  %v3183 = vsel %vm3182, %v3175, %v3179
  %v3184 = vand.u32 2147483647, %v3173
  %vm3185 = vcmp.eq.f32.partialorder %v3184, 8.507059e+37
  %v3186 = vand.u32 %v3173, 2147483648
  %v3187 = vor.u32 1.1754944e-38, %v3186
  %v3188 = vsel %vm3185, %v3187, %v3183
  %v3189 = vmul.f32 1.0, %v3188
  %v3190 = vrcp.pop %v3174
  %v3191 = vmul.f32 %v3174, %v3190
  %v3192 = vsub.f32 1.0, %v3191
  %v3193 = vmul.f32 %v3190, %v3192
  %v3194 = vadd.f32 %v3190, %v3193
  %vm3195 = vweird.f32 %v3174
  %vm3196 = vweird.f32 %v3190
  %vm3197 = vmor %vm3195, %vm3196
  %v3198 = vsel %vm3197, %v3190, %v3194
  %v3199 = vand.u32 2147483647, %v3174
  %vm3200 = vcmp.eq.f32.partialorder %v3199, 8.507059e+37
  %v3201 = vand.u32 %v3174, 2147483648
  %v3202 = vor.u32 1.1754944e-38, %v3201
  %v3203 = vsel %vm3200, %v3202, %v3198
  %v3204 = vmul.f32 1.0, %v3203
  %v3205 = vmul.f32 %v3149, %v2855
  %v3206 = vmul.f32 %v3164, %v2856
  %v3207 = vmul.f32 %v3111, %v3165
  %v3208 = vmul.f32 %v3126, %v3166
  %v3209 = vadd.f32 %v3205, %v3207
  %v3210 = vadd.f32 %v3206, %v3208
  %v3211 = vtanh.pop %v3209
  %v3212 = vtanh.pop %v3210
  %v3213 = vmul.f32 %v3189, %v3211
  %v3214 = vmul.f32 %v3204, %v3212
  %v3215 = vsel %vm656, 4, 3
  %v3216 = vsel %vm657, 4, 3
  %vm3217 = vcmp.lt.s32.totalorder %v3215, %v1684
  %vm3218 = vcmp.lt.s32.totalorder %v3216, %v1684
  %v3219 = vsel %vm3217, 1, 0
  %v3220 = vsel %vm3218, 1, 0
  %v3221 = vcvt.s32.f32 %v3219
  %v3222 = vcvt.s32.f32 %v3220
  %v3223 = vsub.f32 %v3209, %v2855
  %v3224 = vsub.f32 %v3210, %v2856
  %v3225 = vmul.f32 %v3221, %v3223
  %v3226 = vmul.f32 %v3222, %v3224
  %v3227 = vadd.f32 %v2855, %v3225
  %v3228 = vadd.f32 %v2856, %v3226
  %v3229 = vsub.f32 %v3213, %v2861
  %v3230 = vsub.f32 %v3214, %v2862
  %v3231 = vmul.f32 %v3221, %v3229
  %v3232 = vmul.f32 %v3222, %v3230
  %v3233 = vadd.f32 %v2861, %v3231
  %v3234 = vadd.f32 %v2862, %v3232
  %v3235 = vsel %vm682, %v2095, %v2087
  %v3236 = vsel %vm683, %v2096, %v2088
  %v3237 = vsel %vm684, %v2097, %v2089
  %v3238 = vsel %vm685, %v2098, %v2090
  %v3239 = vsel %vm686, %v2099, %v2091
  %v3240 = vsel %vm687, %v2100, %v2092
  %v3241 = vsel %vm688, %v2101, %v2093
  %v3242 = vsel %vm689, %v2102, %v2094
  %v3243 = vpack.c.bf16 %v3233, %v3233
  %v3244 = vpack.c.bf16 %v3234, %v3234
  %3245 = vmatpush.bf16.msra.mxu0 %v1138
  %3246 = vmatpush.bf16.msra.mxu0 %v1130
  %3247 = vmatpush.bf16.msra.mxu0 %v1122
  %3248 = vmatpush.bf16.msra.mxu0 %v1114
  %3249 = vmatpush.bf16.msra.mxu0 %v1106
  %3250 = vmatpush.bf16.msra.mxu0 %v1098
  %3251 = vmatpush.bf16.msra.mxu0 %v1090
  %3252 = vmatpush.bf16.msra.mxu0 %v1082
  %3253 = vmatmul.bf16.gmra.mxu0 %v3243
  %v3254 = vpop.f32.mrf.mxu0
  %v3255 = vadd.f32 0.0, %v3254
  %v3256 = vpop.f32.mrf.mxu0
  %3257 = vdwg.mxu0
  %3258 = vmatpush.bf16.msra.mxu0 %v1202
  %3259 = vmatpush.bf16.msra.mxu0 %v1194
  %3260 = vmatpush.bf16.msra.mxu0 %v1186
  %3261 = vmatpush.bf16.msra.mxu0 %v1178
  %3262 = vmatpush.bf16.msra.mxu0 %v1170
  %3263 = vmatpush.bf16.msra.mxu0 %v1162
  %3264 = vmatpush.bf16.msra.mxu0 %v1154
  %3265 = vmatpush.bf16.msra.mxu0 %v1146
  %3266 = vmatmul.bf16.gmra.mxu0 %v3244
  %v3267 = vpop.f32.mrf.mxu0
  %v3268 = vadd.f32 %v3255, %v3267
  %v3269 = vpop.f32.mrf.mxu0
  %3270 = vdwg.mxu0
  %3271 = vmatpush.bf16.msra.mxu0 %v1139
  %3272 = vmatpush.bf16.msra.mxu0 %v1131
  %3273 = vmatpush.bf16.msra.mxu0 %v1123
  %3274 = vmatpush.bf16.msra.mxu0 %v1115
  %3275 = vmatpush.bf16.msra.mxu0 %v1107
  %3276 = vmatpush.bf16.msra.mxu0 %v1099
  %3277 = vmatpush.bf16.msra.mxu0 %v1091
  %3278 = vmatpush.bf16.msra.mxu0 %v1083
  %3279 = vmatmul.bf16.gmra.mxu0 %v3243
  %v3280 = vpop.f32.mrf.mxu0
  %v3281 = vadd.f32 0.0, %v3280
  %v3282 = vpop.f32.mrf.mxu0
  %3283 = vdwg.mxu0
  %3284 = vmatpush.bf16.msra.mxu0 %v1203
  %3285 = vmatpush.bf16.msra.mxu0 %v1195
  %3286 = vmatpush.bf16.msra.mxu0 %v1187
  %3287 = vmatpush.bf16.msra.mxu0 %v1179
  %3288 = vmatpush.bf16.msra.mxu0 %v1171
  %3289 = vmatpush.bf16.msra.mxu0 %v1163
  %3290 = vmatpush.bf16.msra.mxu0 %v1155
  %3291 = vmatpush.bf16.msra.mxu0 %v1147
  %3292 = vmatmul.bf16.gmra.mxu0 %v3244
  %v3293 = vpop.f32.mrf.mxu0
  %v3294 = vadd.f32 %v3281, %v3293
  %v3295 = vpop.f32.mrf.mxu0
  %3296 = vdwg.mxu0
  %3297 = vmatpush.bf16.msra.mxu0 %v1140
  %3298 = vmatpush.bf16.msra.mxu0 %v1132
  %3299 = vmatpush.bf16.msra.mxu0 %v1124
  %3300 = vmatpush.bf16.msra.mxu0 %v1116
  %3301 = vmatpush.bf16.msra.mxu0 %v1108
  %3302 = vmatpush.bf16.msra.mxu0 %v1100
  %3303 = vmatpush.bf16.msra.mxu0 %v1092
  %3304 = vmatpush.bf16.msra.mxu0 %v1084
  %3305 = vmatmul.bf16.gmra.mxu0 %v3243
  %v3306 = vpop.f32.mrf.mxu0
  %v3307 = vadd.f32 0.0, %v3306
  %v3308 = vpop.f32.mrf.mxu0
  %3309 = vdwg.mxu0
  %3310 = vmatpush.bf16.msra.mxu0 %v1204
  %3311 = vmatpush.bf16.msra.mxu0 %v1196
  %3312 = vmatpush.bf16.msra.mxu0 %v1188
  %3313 = vmatpush.bf16.msra.mxu0 %v1180
  %3314 = vmatpush.bf16.msra.mxu0 %v1172
  %3315 = vmatpush.bf16.msra.mxu0 %v1164
  %3316 = vmatpush.bf16.msra.mxu0 %v1156
  %3317 = vmatpush.bf16.msra.mxu0 %v1148
  %3318 = vmatmul.bf16.gmra.mxu0 %v3244
  %v3319 = vpop.f32.mrf.mxu0
  %v3320 = vadd.f32 %v3307, %v3319
  %v3321 = vpop.f32.mrf.mxu0
  %3322 = vdwg.mxu0
  %3323 = vmatpush.bf16.msra.mxu0 %v1141
  %3324 = vmatpush.bf16.msra.mxu0 %v1133
  %3325 = vmatpush.bf16.msra.mxu0 %v1125
  %3326 = vmatpush.bf16.msra.mxu0 %v1117
  %3327 = vmatpush.bf16.msra.mxu0 %v1109
  %3328 = vmatpush.bf16.msra.mxu0 %v1101
  %3329 = vmatpush.bf16.msra.mxu0 %v1093
  %3330 = vmatpush.bf16.msra.mxu0 %v1085
  %3331 = vmatmul.bf16.gmra.mxu0 %v3243
  %v3332 = vpop.f32.mrf.mxu0
  %v3333 = vadd.f32 0.0, %v3332
  %v3334 = vpop.f32.mrf.mxu0
  %3335 = vdwg.mxu0
  %3336 = vmatpush.bf16.msra.mxu0 %v1205
  %3337 = vmatpush.bf16.msra.mxu0 %v1197
  %3338 = vmatpush.bf16.msra.mxu0 %v1189
  %3339 = vmatpush.bf16.msra.mxu0 %v1181
  %3340 = vmatpush.bf16.msra.mxu0 %v1173
  %3341 = vmatpush.bf16.msra.mxu0 %v1165
  %3342 = vmatpush.bf16.msra.mxu0 %v1157
  %3343 = vmatpush.bf16.msra.mxu0 %v1149
  %3344 = vmatmul.bf16.gmra.mxu0 %v3244
  %v3345 = vpop.f32.mrf.mxu0
  %v3346 = vadd.f32 %v3333, %v3345
  %v3347 = vpop.f32.mrf.mxu0
  %3348 = vdwg.mxu0
  %3349 = vmatpush.bf16.msra.mxu0 %v1142
  %3350 = vmatpush.bf16.msra.mxu0 %v1134
  %3351 = vmatpush.bf16.msra.mxu0 %v1126
  %3352 = vmatpush.bf16.msra.mxu0 %v1118
  %3353 = vmatpush.bf16.msra.mxu0 %v1110
  %3354 = vmatpush.bf16.msra.mxu0 %v1102
  %3355 = vmatpush.bf16.msra.mxu0 %v1094
  %3356 = vmatpush.bf16.msra.mxu0 %v1086
  %3357 = vmatmul.bf16.gmra.mxu0 %v3243
  %v3358 = vpop.f32.mrf.mxu0
  %v3359 = vadd.f32 0.0, %v3358
  %v3360 = vpop.f32.mrf.mxu0
  %3361 = vdwg.mxu0
  %3362 = vmatpush.bf16.msra.mxu0 %v1206
  %3363 = vmatpush.bf16.msra.mxu0 %v1198
  %3364 = vmatpush.bf16.msra.mxu0 %v1190
  %3365 = vmatpush.bf16.msra.mxu0 %v1182
  %3366 = vmatpush.bf16.msra.mxu0 %v1174
  %3367 = vmatpush.bf16.msra.mxu0 %v1166
  %3368 = vmatpush.bf16.msra.mxu0 %v1158
  %3369 = vmatpush.bf16.msra.mxu0 %v1150
  %3370 = vmatmul.bf16.gmra.mxu0 %v3244
  %v3371 = vpop.f32.mrf.mxu0
  %v3372 = vadd.f32 %v3359, %v3371
  %v3373 = vpop.f32.mrf.mxu0
  %3374 = vdwg.mxu0
  %3375 = vmatpush.bf16.msra.mxu0 %v1143
  %3376 = vmatpush.bf16.msra.mxu0 %v1135
  %3377 = vmatpush.bf16.msra.mxu0 %v1127
  %3378 = vmatpush.bf16.msra.mxu0 %v1119
  %3379 = vmatpush.bf16.msra.mxu0 %v1111
  %3380 = vmatpush.bf16.msra.mxu0 %v1103
  %3381 = vmatpush.bf16.msra.mxu0 %v1095
  %3382 = vmatpush.bf16.msra.mxu0 %v1087
  %3383 = vmatmul.bf16.gmra.mxu0 %v3243
  %v3384 = vpop.f32.mrf.mxu0
  %v3385 = vadd.f32 0.0, %v3384
  %v3386 = vpop.f32.mrf.mxu0
  %3387 = vdwg.mxu0
  %3388 = vmatpush.bf16.msra.mxu0 %v1207
  %3389 = vmatpush.bf16.msra.mxu0 %v1199
  %3390 = vmatpush.bf16.msra.mxu0 %v1191
  %3391 = vmatpush.bf16.msra.mxu0 %v1183
  %3392 = vmatpush.bf16.msra.mxu0 %v1175
  %3393 = vmatpush.bf16.msra.mxu0 %v1167
  %3394 = vmatpush.bf16.msra.mxu0 %v1159
  %3395 = vmatpush.bf16.msra.mxu0 %v1151
  %3396 = vmatmul.bf16.gmra.mxu0 %v3244
  %v3397 = vpop.f32.mrf.mxu0
  %v3398 = vadd.f32 %v3385, %v3397
  %v3399 = vpop.f32.mrf.mxu0
  %3400 = vdwg.mxu0
  %3401 = vmatpush.bf16.msra.mxu0 %v1144
  %3402 = vmatpush.bf16.msra.mxu0 %v1136
  %3403 = vmatpush.bf16.msra.mxu0 %v1128
  %3404 = vmatpush.bf16.msra.mxu0 %v1120
  %3405 = vmatpush.bf16.msra.mxu0 %v1112
  %3406 = vmatpush.bf16.msra.mxu0 %v1104
  %3407 = vmatpush.bf16.msra.mxu0 %v1096
  %3408 = vmatpush.bf16.msra.mxu0 %v1088
  %3409 = vmatmul.bf16.gmra.mxu0 %v3243
  %v3410 = vpop.f32.mrf.mxu0
  %v3411 = vadd.f32 0.0, %v3410
  %v3412 = vpop.f32.mrf.mxu0
  %3413 = vdwg.mxu0
  %3414 = vmatpush.bf16.msra.mxu0 %v1208
  %3415 = vmatpush.bf16.msra.mxu0 %v1200
  %3416 = vmatpush.bf16.msra.mxu0 %v1192
  %3417 = vmatpush.bf16.msra.mxu0 %v1184
  %3418 = vmatpush.bf16.msra.mxu0 %v1176
  %3419 = vmatpush.bf16.msra.mxu0 %v1168
  %3420 = vmatpush.bf16.msra.mxu0 %v1160
  %3421 = vmatpush.bf16.msra.mxu0 %v1152
  %3422 = vmatmul.bf16.gmra.mxu0 %v3244
  %v3423 = vpop.f32.mrf.mxu0
  %v3424 = vadd.f32 %v3411, %v3423
  %v3425 = vpop.f32.mrf.mxu0
  %3426 = vdwg.mxu0
  %3427 = vmatpush.bf16.msra.mxu0 %v1145
  %3428 = vmatpush.bf16.msra.mxu0 %v1137
  %3429 = vmatpush.bf16.msra.mxu0 %v1129
  %3430 = vmatpush.bf16.msra.mxu0 %v1121
  %3431 = vmatpush.bf16.msra.mxu0 %v1113
  %3432 = vmatpush.bf16.msra.mxu0 %v1105
  %3433 = vmatpush.bf16.msra.mxu0 %v1097
  %3434 = vmatpush.bf16.msra.mxu0 %v1089
  %3435 = vmatmul.bf16.gmra.mxu0 %v3243
  %v3436 = vpop.f32.mrf.mxu0
  %v3437 = vadd.f32 0.0, %v3436
  %v3438 = vpop.f32.mrf.mxu0
  %3439 = vdwg.mxu0
  %3440 = vmatpush.bf16.msra.mxu0 %v1209
  %3441 = vmatpush.bf16.msra.mxu0 %v1201
  %3442 = vmatpush.bf16.msra.mxu0 %v1193
  %3443 = vmatpush.bf16.msra.mxu0 %v1185
  %3444 = vmatpush.bf16.msra.mxu0 %v1177
  %3445 = vmatpush.bf16.msra.mxu0 %v1169
  %3446 = vmatpush.bf16.msra.mxu0 %v1161
  %3447 = vmatpush.bf16.msra.mxu0 %v1153
  %3448 = vmatmul.bf16.gmra.mxu0 %v3244
  %v3449 = vpop.f32.mrf.mxu0
  %v3450 = vadd.f32 %v3437, %v3449
  %v3451 = vpop.f32.mrf.mxu0
  %3452 = vdwg.mxu0
  %v3453 = vadd.f32 %v3235, %v3268
  %v3454 = vadd.f32 %v3236, %v3294
  %v3455 = vadd.f32 %v3237, %v3320
  %v3456 = vadd.f32 %v3238, %v3346
  %v3457 = vadd.f32 %v3239, %v3372
  %v3458 = vadd.f32 %v3240, %v3398
  %v3459 = vadd.f32 %v3241, %v3424
  %v3460 = vadd.f32 %v3242, %v3450
  %v3461 = vxor.u32 %v3453, 2147483648
  %v3462 = vxor.u32 %v3454, 2147483648
  %v3463 = vmul.f32 %v3461, 1.442695
  %v3464 = vpow.pop %v3463
  %v3465 = vmul.f32 %v3462, 1.442695
  %v3466 = vpow.pop %v3465
  %v3467 = vadd.f32 %v3464, 1.0
  %v3468 = vadd.f32 %v3466, 1.0
  %v3469 = vrcp.pop %v3467
  %v3470 = vmul.f32 %v3467, %v3469
  %v3471 = vsub.f32 1.0, %v3470
  %v3472 = vmul.f32 %v3469, %v3471
  %v3473 = vadd.f32 %v3469, %v3472
  %vm3474 = vweird.f32 %v3467
  %vm3475 = vweird.f32 %v3469
  %vm3476 = vmor %vm3474, %vm3475
  %v3477 = vsel %vm3476, %v3469, %v3473
  %v3478 = vand.u32 2147483647, %v3467
  %vm3479 = vcmp.eq.f32.partialorder %v3478, 8.507059e+37
  %v3480 = vand.u32 %v3467, 2147483648
  %v3481 = vor.u32 1.1754944e-38, %v3480
  %v3482 = vsel %vm3479, %v3481, %v3477
  %v3483 = vmul.f32 1.0, %v3482
  %v3484 = vrcp.pop %v3468
  %v3485 = vmul.f32 %v3468, %v3484
  %v3486 = vsub.f32 1.0, %v3485
  %v3487 = vmul.f32 %v3484, %v3486
  %v3488 = vadd.f32 %v3484, %v3487
  %vm3489 = vweird.f32 %v3468
  %vm3490 = vweird.f32 %v3484
  %vm3491 = vmor %vm3489, %vm3490
  %v3492 = vsel %vm3491, %v3484, %v3488
  %v3493 = vand.u32 2147483647, %v3468
  %vm3494 = vcmp.eq.f32.partialorder %v3493, 8.507059e+37
  %v3495 = vand.u32 %v3468, 2147483648
  %v3496 = vor.u32 1.1754944e-38, %v3495
  %v3497 = vsel %vm3494, %v3496, %v3492
  %v3498 = vmul.f32 1.0, %v3497
  %v3499 = vxor.u32 %v3455, 2147483648
  %v3500 = vxor.u32 %v3456, 2147483648
  %v3501 = vmul.f32 %v3499, 1.442695
  %v3502 = vpow.pop %v3501
  %v3503 = vmul.f32 %v3500, 1.442695
  %v3504 = vpow.pop %v3503
  %v3505 = vadd.f32 %v3502, 1.0
  %v3506 = vadd.f32 %v3504, 1.0
  %v3507 = vrcp.pop %v3505
  %v3508 = vmul.f32 %v3505, %v3507
  %v3509 = vsub.f32 1.0, %v3508
  %v3510 = vmul.f32 %v3507, %v3509
  %v3511 = vadd.f32 %v3507, %v3510
  %vm3512 = vweird.f32 %v3505
  %vm3513 = vweird.f32 %v3507
  %vm3514 = vmor %vm3512, %vm3513
  %v3515 = vsel %vm3514, %v3507, %v3511
  %v3516 = vand.u32 2147483647, %v3505
  %vm3517 = vcmp.eq.f32.partialorder %v3516, 8.507059e+37
  %v3518 = vand.u32 %v3505, 2147483648
  %v3519 = vor.u32 1.1754944e-38, %v3518
  %v3520 = vsel %vm3517, %v3519, %v3515
  %v3521 = vmul.f32 1.0, %v3520
  %v3522 = vrcp.pop %v3506
  %v3523 = vmul.f32 %v3506, %v3522
  %v3524 = vsub.f32 1.0, %v3523
  %v3525 = vmul.f32 %v3522, %v3524
  %v3526 = vadd.f32 %v3522, %v3525
  %vm3527 = vweird.f32 %v3506
  %vm3528 = vweird.f32 %v3522
  %vm3529 = vmor %vm3527, %vm3528
  %v3530 = vsel %vm3529, %v3522, %v3526
  %v3531 = vand.u32 2147483647, %v3506
  %vm3532 = vcmp.eq.f32.partialorder %v3531, 8.507059e+37
  %v3533 = vand.u32 %v3506, 2147483648
  %v3534 = vor.u32 1.1754944e-38, %v3533
  %v3535 = vsel %vm3532, %v3534, %v3530
  %v3536 = vmul.f32 1.0, %v3535
  %v3537 = vtanh.pop %v3457
  %v3538 = vtanh.pop %v3458
  %v3539 = vxor.u32 %v3459, 2147483648
  %v3540 = vxor.u32 %v3460, 2147483648
  %v3541 = vmul.f32 %v3539, 1.442695
  %v3542 = vpow.pop %v3541
  %v3543 = vmul.f32 %v3540, 1.442695
  %v3544 = vpow.pop %v3543
  %v3545 = vadd.f32 %v3542, 1.0
  %v3546 = vadd.f32 %v3544, 1.0
  %v3547 = vrcp.pop %v3545
  %v3548 = vmul.f32 %v3545, %v3547
  %v3549 = vsub.f32 1.0, %v3548
  %v3550 = vmul.f32 %v3547, %v3549
  %v3551 = vadd.f32 %v3547, %v3550
  %vm3552 = vweird.f32 %v3545
  %vm3553 = vweird.f32 %v3547
  %vm3554 = vmor %vm3552, %vm3553
  %v3555 = vsel %vm3554, %v3547, %v3551
  %v3556 = vand.u32 2147483647, %v3545
  %vm3557 = vcmp.eq.f32.partialorder %v3556, 8.507059e+37
  %v3558 = vand.u32 %v3545, 2147483648
  %v3559 = vor.u32 1.1754944e-38, %v3558
  %v3560 = vsel %vm3557, %v3559, %v3555
  %v3561 = vmul.f32 1.0, %v3560
  %v3562 = vrcp.pop %v3546
  %v3563 = vmul.f32 %v3546, %v3562
  %v3564 = vsub.f32 1.0, %v3563
  %v3565 = vmul.f32 %v3562, %v3564
  %v3566 = vadd.f32 %v3562, %v3565
  %vm3567 = vweird.f32 %v3546
  %vm3568 = vweird.f32 %v3562
  %vm3569 = vmor %vm3567, %vm3568
  %v3570 = vsel %vm3569, %v3562, %v3566
  %v3571 = vand.u32 2147483647, %v3546
  %vm3572 = vcmp.eq.f32.partialorder %v3571, 8.507059e+37
  %v3573 = vand.u32 %v3546, 2147483648
  %v3574 = vor.u32 1.1754944e-38, %v3573
  %v3575 = vsel %vm3572, %v3574, %v3570
  %v3576 = vmul.f32 1.0, %v3575
  %v3577 = vmul.f32 %v3521, %v3227
  %v3578 = vmul.f32 %v3536, %v3228
  %v3579 = vmul.f32 %v3483, %v3537
  %v3580 = vmul.f32 %v3498, %v3538
  %v3581 = vadd.f32 %v3577, %v3579
  %v3582 = vadd.f32 %v3578, %v3580
  %v3583 = vtanh.pop %v3581
  %v3584 = vtanh.pop %v3582
  %v3585 = vmul.f32 %v3561, %v3583
  %v3586 = vmul.f32 %v3576, %v3584
  %v3587 = vsel %vm656, 5, 2
  %v3588 = vsel %vm657, 5, 2
  %vm3589 = vcmp.lt.s32.totalorder %v3587, %v1684
  %vm3590 = vcmp.lt.s32.totalorder %v3588, %v1684
  %v3591 = vsel %vm3589, 1, 0
  %v3592 = vsel %vm3590, 1, 0
  %v3593 = vcvt.s32.f32 %v3591
  %v3594 = vcvt.s32.f32 %v3592
  %v3595 = vsub.f32 %v3581, %v3227
  %v3596 = vsub.f32 %v3582, %v3228
  %v3597 = vmul.f32 %v3593, %v3595
  %v3598 = vmul.f32 %v3594, %v3596
  %v3599 = vadd.f32 %v3227, %v3597
  %v3600 = vadd.f32 %v3228, %v3598
  %v3601 = vsub.f32 %v3585, %v3233
  %v3602 = vsub.f32 %v3586, %v3234
  %v3603 = vmul.f32 %v3593, %v3601
  %v3604 = vmul.f32 %v3594, %v3602
  %v3605 = vadd.f32 %v3233, %v3603
  %v3606 = vadd.f32 %v3234, %v3604
  %v3607 = vsel %vm682, %v1707, %v1699
  %v3608 = vsel %vm683, %v1708, %v1700
  %v3609 = vsel %vm684, %v1709, %v1701
  %v3610 = vsel %vm685, %v1710, %v1702
  %v3611 = vsel %vm686, %v1711, %v1703
  %v3612 = vsel %vm687, %v1712, %v1704
  %v3613 = vsel %vm688, %v1713, %v1705
  %v3614 = vsel %vm689, %v1714, %v1706
  %v3615 = vpack.c.bf16 %v3605, %v3605
  %v3616 = vpack.c.bf16 %v3606, %v3606
  %3617 = vmatpush.bf16.msra.mxu0 %v1138
  %3618 = vmatpush.bf16.msra.mxu0 %v1130
  %3619 = vmatpush.bf16.msra.mxu0 %v1122
  %3620 = vmatpush.bf16.msra.mxu0 %v1114
  %3621 = vmatpush.bf16.msra.mxu0 %v1106
  %3622 = vmatpush.bf16.msra.mxu0 %v1098
  %3623 = vmatpush.bf16.msra.mxu0 %v1090
  %3624 = vmatpush.bf16.msra.mxu0 %v1082
  %3625 = vmatmul.bf16.gmra.mxu0 %v3615
  %v3626 = vpop.f32.mrf.mxu0
  %v3627 = vadd.f32 0.0, %v3626
  %v3628 = vpop.f32.mrf.mxu0
  %3629 = vdwg.mxu0
  %3630 = vmatpush.bf16.msra.mxu0 %v1202
  %3631 = vmatpush.bf16.msra.mxu0 %v1194
  %3632 = vmatpush.bf16.msra.mxu0 %v1186
  %3633 = vmatpush.bf16.msra.mxu0 %v1178
  %3634 = vmatpush.bf16.msra.mxu0 %v1170
  %3635 = vmatpush.bf16.msra.mxu0 %v1162
  %3636 = vmatpush.bf16.msra.mxu0 %v1154
  %3637 = vmatpush.bf16.msra.mxu0 %v1146
  %3638 = vmatmul.bf16.gmra.mxu0 %v3616
  %v3639 = vpop.f32.mrf.mxu0
  %v3640 = vadd.f32 %v3627, %v3639
  %v3641 = vpop.f32.mrf.mxu0
  %3642 = vdwg.mxu0
  %3643 = vmatpush.bf16.msra.mxu0 %v1139
  %3644 = vmatpush.bf16.msra.mxu0 %v1131
  %3645 = vmatpush.bf16.msra.mxu0 %v1123
  %3646 = vmatpush.bf16.msra.mxu0 %v1115
  %3647 = vmatpush.bf16.msra.mxu0 %v1107
  %3648 = vmatpush.bf16.msra.mxu0 %v1099
  %3649 = vmatpush.bf16.msra.mxu0 %v1091
  %3650 = vmatpush.bf16.msra.mxu0 %v1083
  %3651 = vmatmul.bf16.gmra.mxu0 %v3615
  %v3652 = vpop.f32.mrf.mxu0
  %v3653 = vadd.f32 0.0, %v3652
  %v3654 = vpop.f32.mrf.mxu0
  %3655 = vdwg.mxu0
  %3656 = vmatpush.bf16.msra.mxu0 %v1203
  %3657 = vmatpush.bf16.msra.mxu0 %v1195
  %3658 = vmatpush.bf16.msra.mxu0 %v1187
  %3659 = vmatpush.bf16.msra.mxu0 %v1179
  %3660 = vmatpush.bf16.msra.mxu0 %v1171
  %3661 = vmatpush.bf16.msra.mxu0 %v1163
  %3662 = vmatpush.bf16.msra.mxu0 %v1155
  %3663 = vmatpush.bf16.msra.mxu0 %v1147
  %3664 = vmatmul.bf16.gmra.mxu0 %v3616
  %v3665 = vpop.f32.mrf.mxu0
  %v3666 = vadd.f32 %v3653, %v3665
  %v3667 = vpop.f32.mrf.mxu0
  %3668 = vdwg.mxu0
  %3669 = vmatpush.bf16.msra.mxu0 %v1140
  %3670 = vmatpush.bf16.msra.mxu0 %v1132
  %3671 = vmatpush.bf16.msra.mxu0 %v1124
  %3672 = vmatpush.bf16.msra.mxu0 %v1116
  %3673 = vmatpush.bf16.msra.mxu0 %v1108
  %3674 = vmatpush.bf16.msra.mxu0 %v1100
  %3675 = vmatpush.bf16.msra.mxu0 %v1092
  %3676 = vmatpush.bf16.msra.mxu0 %v1084
  %3677 = vmatmul.bf16.gmra.mxu0 %v3615
  %v3678 = vpop.f32.mrf.mxu0
  %v3679 = vadd.f32 0.0, %v3678
  %v3680 = vpop.f32.mrf.mxu0
  %3681 = vdwg.mxu0
  %3682 = vmatpush.bf16.msra.mxu0 %v1204
  %3683 = vmatpush.bf16.msra.mxu0 %v1196
  %3684 = vmatpush.bf16.msra.mxu0 %v1188
  %3685 = vmatpush.bf16.msra.mxu0 %v1180
  %3686 = vmatpush.bf16.msra.mxu0 %v1172
  %3687 = vmatpush.bf16.msra.mxu0 %v1164
  %3688 = vmatpush.bf16.msra.mxu0 %v1156
  %3689 = vmatpush.bf16.msra.mxu0 %v1148
  %3690 = vmatmul.bf16.gmra.mxu0 %v3616
  %v3691 = vpop.f32.mrf.mxu0
  %v3692 = vadd.f32 %v3679, %v3691
  %v3693 = vpop.f32.mrf.mxu0
  %3694 = vdwg.mxu0
  %3695 = vmatpush.bf16.msra.mxu0 %v1141
  %3696 = vmatpush.bf16.msra.mxu0 %v1133
  %3697 = vmatpush.bf16.msra.mxu0 %v1125
  %3698 = vmatpush.bf16.msra.mxu0 %v1117
  %3699 = vmatpush.bf16.msra.mxu0 %v1109
  %3700 = vmatpush.bf16.msra.mxu0 %v1101
  %3701 = vmatpush.bf16.msra.mxu0 %v1093
  %3702 = vmatpush.bf16.msra.mxu0 %v1085
  %3703 = vmatmul.bf16.gmra.mxu0 %v3615
  %v3704 = vpop.f32.mrf.mxu0
  %v3705 = vadd.f32 0.0, %v3704
  %v3706 = vpop.f32.mrf.mxu0
  %3707 = vdwg.mxu0
  %3708 = vmatpush.bf16.msra.mxu0 %v1205
  %3709 = vmatpush.bf16.msra.mxu0 %v1197
  %3710 = vmatpush.bf16.msra.mxu0 %v1189
  %3711 = vmatpush.bf16.msra.mxu0 %v1181
  %3712 = vmatpush.bf16.msra.mxu0 %v1173
  %3713 = vmatpush.bf16.msra.mxu0 %v1165
  %3714 = vmatpush.bf16.msra.mxu0 %v1157
  %3715 = vmatpush.bf16.msra.mxu0 %v1149
  %3716 = vmatmul.bf16.gmra.mxu0 %v3616
  %v3717 = vpop.f32.mrf.mxu0
  %v3718 = vadd.f32 %v3705, %v3717
  %v3719 = vpop.f32.mrf.mxu0
  %3720 = vdwg.mxu0
  %3721 = vmatpush.bf16.msra.mxu0 %v1142
  %3722 = vmatpush.bf16.msra.mxu0 %v1134
  %3723 = vmatpush.bf16.msra.mxu0 %v1126
  %3724 = vmatpush.bf16.msra.mxu0 %v1118
  %3725 = vmatpush.bf16.msra.mxu0 %v1110
  %3726 = vmatpush.bf16.msra.mxu0 %v1102
  %3727 = vmatpush.bf16.msra.mxu0 %v1094
  %3728 = vmatpush.bf16.msra.mxu0 %v1086
  %3729 = vmatmul.bf16.gmra.mxu0 %v3615
  %v3730 = vpop.f32.mrf.mxu0
  %v3731 = vadd.f32 0.0, %v3730
  %v3732 = vpop.f32.mrf.mxu0
  %3733 = vdwg.mxu0
  %3734 = vmatpush.bf16.msra.mxu0 %v1206
  %3735 = vmatpush.bf16.msra.mxu0 %v1198
  %3736 = vmatpush.bf16.msra.mxu0 %v1190
  %3737 = vmatpush.bf16.msra.mxu0 %v1182
  %3738 = vmatpush.bf16.msra.mxu0 %v1174
  %3739 = vmatpush.bf16.msra.mxu0 %v1166
  %3740 = vmatpush.bf16.msra.mxu0 %v1158
  %3741 = vmatpush.bf16.msra.mxu0 %v1150
  %3742 = vmatmul.bf16.gmra.mxu0 %v3616
  %v3743 = vpop.f32.mrf.mxu0
  %v3744 = vadd.f32 %v3731, %v3743
  %v3745 = vpop.f32.mrf.mxu0
  %3746 = vdwg.mxu0
  %3747 = vmatpush.bf16.msra.mxu0 %v1143
  %3748 = vmatpush.bf16.msra.mxu0 %v1135
  %3749 = vmatpush.bf16.msra.mxu0 %v1127
  %3750 = vmatpush.bf16.msra.mxu0 %v1119
  %3751 = vmatpush.bf16.msra.mxu0 %v1111
  %3752 = vmatpush.bf16.msra.mxu0 %v1103
  %3753 = vmatpush.bf16.msra.mxu0 %v1095
  %3754 = vmatpush.bf16.msra.mxu0 %v1087
  %3755 = vmatmul.bf16.gmra.mxu0 %v3615
  %v3756 = vpop.f32.mrf.mxu0
  %v3757 = vadd.f32 0.0, %v3756
  %v3758 = vpop.f32.mrf.mxu0
  %3759 = vdwg.mxu0
  %3760 = vmatpush.bf16.msra.mxu0 %v1207
  %3761 = vmatpush.bf16.msra.mxu0 %v1199
  %3762 = vmatpush.bf16.msra.mxu0 %v1191
  %3763 = vmatpush.bf16.msra.mxu0 %v1183
  %3764 = vmatpush.bf16.msra.mxu0 %v1175
  %3765 = vmatpush.bf16.msra.mxu0 %v1167
  %3766 = vmatpush.bf16.msra.mxu0 %v1159
  %3767 = vmatpush.bf16.msra.mxu0 %v1151
  %3768 = vmatmul.bf16.gmra.mxu0 %v3616
  %v3769 = vpop.f32.mrf.mxu0
  %v3770 = vadd.f32 %v3757, %v3769
  %v3771 = vpop.f32.mrf.mxu0
  %3772 = vdwg.mxu0
  %3773 = vmatpush.bf16.msra.mxu0 %v1144
  %3774 = vmatpush.bf16.msra.mxu0 %v1136
  %3775 = vmatpush.bf16.msra.mxu0 %v1128
  %3776 = vmatpush.bf16.msra.mxu0 %v1120
  %3777 = vmatpush.bf16.msra.mxu0 %v1112
  %3778 = vmatpush.bf16.msra.mxu0 %v1104
  %3779 = vmatpush.bf16.msra.mxu0 %v1096
  %3780 = vmatpush.bf16.msra.mxu0 %v1088
  %3781 = vmatmul.bf16.gmra.mxu0 %v3615
  %v3782 = vpop.f32.mrf.mxu0
  %v3783 = vadd.f32 0.0, %v3782
  %v3784 = vpop.f32.mrf.mxu0
  %3785 = vdwg.mxu0
  %3786 = vmatpush.bf16.msra.mxu0 %v1208
  %3787 = vmatpush.bf16.msra.mxu0 %v1200
  %3788 = vmatpush.bf16.msra.mxu0 %v1192
  %3789 = vmatpush.bf16.msra.mxu0 %v1184
  %3790 = vmatpush.bf16.msra.mxu0 %v1176
  %3791 = vmatpush.bf16.msra.mxu0 %v1168
  %3792 = vmatpush.bf16.msra.mxu0 %v1160
  %3793 = vmatpush.bf16.msra.mxu0 %v1152
  %3794 = vmatmul.bf16.gmra.mxu0 %v3616
  %v3795 = vpop.f32.mrf.mxu0
  %v3796 = vadd.f32 %v3783, %v3795
  %v3797 = vpop.f32.mrf.mxu0
  %3798 = vdwg.mxu0
  %3799 = vmatpush.bf16.msra.mxu0 %v1145
  %3800 = vmatpush.bf16.msra.mxu0 %v1137
  %3801 = vmatpush.bf16.msra.mxu0 %v1129
  %3802 = vmatpush.bf16.msra.mxu0 %v1121
  %3803 = vmatpush.bf16.msra.mxu0 %v1113
  %3804 = vmatpush.bf16.msra.mxu0 %v1105
  %3805 = vmatpush.bf16.msra.mxu0 %v1097
  %3806 = vmatpush.bf16.msra.mxu0 %v1089
  %3807 = vmatmul.bf16.gmra.mxu0 %v3615
  %v3808 = vpop.f32.mrf.mxu0
  %v3809 = vadd.f32 0.0, %v3808
  %v3810 = vpop.f32.mrf.mxu0
  %3811 = vdwg.mxu0
  %3812 = vmatpush.bf16.msra.mxu0 %v1209
  %3813 = vmatpush.bf16.msra.mxu0 %v1201
  %3814 = vmatpush.bf16.msra.mxu0 %v1193
  %3815 = vmatpush.bf16.msra.mxu0 %v1185
  %3816 = vmatpush.bf16.msra.mxu0 %v1177
  %3817 = vmatpush.bf16.msra.mxu0 %v1169
  %3818 = vmatpush.bf16.msra.mxu0 %v1161
  %3819 = vmatpush.bf16.msra.mxu0 %v1153
  %3820 = vmatmul.bf16.gmra.mxu0 %v3616
  %v3821 = vpop.f32.mrf.mxu0
  %v3822 = vadd.f32 %v3809, %v3821
  %v3823 = vpop.f32.mrf.mxu0
  %3824 = vdwg.mxu0
  %v3825 = vadd.f32 %v3607, %v3640
  %v3826 = vadd.f32 %v3608, %v3666
  %v3827 = vadd.f32 %v3609, %v3692
  %v3828 = vadd.f32 %v3610, %v3718
  %v3829 = vadd.f32 %v3611, %v3744
  %v3830 = vadd.f32 %v3612, %v3770
  %v3831 = vadd.f32 %v3613, %v3796
  %v3832 = vadd.f32 %v3614, %v3822
  %v3833 = vxor.u32 %v3825, 2147483648
  %v3834 = vxor.u32 %v3826, 2147483648
  %v3835 = vmul.f32 %v3833, 1.442695
  %v3836 = vpow.pop %v3835
  %v3837 = vmul.f32 %v3834, 1.442695
  %v3838 = vpow.pop %v3837
  %v3839 = vadd.f32 %v3836, 1.0
  %v3840 = vadd.f32 %v3838, 1.0
  %v3841 = vrcp.pop %v3839
  %v3842 = vmul.f32 %v3839, %v3841
  %v3843 = vsub.f32 1.0, %v3842
  %v3844 = vmul.f32 %v3841, %v3843
  %v3845 = vadd.f32 %v3841, %v3844
  %vm3846 = vweird.f32 %v3839
  %vm3847 = vweird.f32 %v3841
  %vm3848 = vmor %vm3846, %vm3847
  %v3849 = vsel %vm3848, %v3841, %v3845
  %v3850 = vand.u32 2147483647, %v3839
  %vm3851 = vcmp.eq.f32.partialorder %v3850, 8.507059e+37
  %v3852 = vand.u32 %v3839, 2147483648
  %v3853 = vor.u32 1.1754944e-38, %v3852
  %v3854 = vsel %vm3851, %v3853, %v3849
  %v3855 = vmul.f32 1.0, %v3854
  %v3856 = vrcp.pop %v3840
  %v3857 = vmul.f32 %v3840, %v3856
  %v3858 = vsub.f32 1.0, %v3857
  %v3859 = vmul.f32 %v3856, %v3858
  %v3860 = vadd.f32 %v3856, %v3859
  %vm3861 = vweird.f32 %v3840
  %vm3862 = vweird.f32 %v3856
  %vm3863 = vmor %vm3861, %vm3862
  %v3864 = vsel %vm3863, %v3856, %v3860
  %v3865 = vand.u32 2147483647, %v3840
  %vm3866 = vcmp.eq.f32.partialorder %v3865, 8.507059e+37
  %v3867 = vand.u32 %v3840, 2147483648
  %v3868 = vor.u32 1.1754944e-38, %v3867
  %v3869 = vsel %vm3866, %v3868, %v3864
  %v3870 = vmul.f32 1.0, %v3869
  %v3871 = vxor.u32 %v3827, 2147483648
  %v3872 = vxor.u32 %v3828, 2147483648
  %v3873 = vmul.f32 %v3871, 1.442695
  %v3874 = vpow.pop %v3873
  %v3875 = vmul.f32 %v3872, 1.442695
  %v3876 = vpow.pop %v3875
  %v3877 = vadd.f32 %v3874, 1.0
  %v3878 = vadd.f32 %v3876, 1.0
  %v3879 = vrcp.pop %v3877
  %v3880 = vmul.f32 %v3877, %v3879
  %v3881 = vsub.f32 1.0, %v3880
  %v3882 = vmul.f32 %v3879, %v3881
  %v3883 = vadd.f32 %v3879, %v3882
  %vm3884 = vweird.f32 %v3877
  %vm3885 = vweird.f32 %v3879
  %vm3886 = vmor %vm3884, %vm3885
  %v3887 = vsel %vm3886, %v3879, %v3883
  %v3888 = vand.u32 2147483647, %v3877
  %vm3889 = vcmp.eq.f32.partialorder %v3888, 8.507059e+37
  %v3890 = vand.u32 %v3877, 2147483648
  %v3891 = vor.u32 1.1754944e-38, %v3890
  %v3892 = vsel %vm3889, %v3891, %v3887
  %v3893 = vmul.f32 1.0, %v3892
  %v3894 = vrcp.pop %v3878
  %v3895 = vmul.f32 %v3878, %v3894
  %v3896 = vsub.f32 1.0, %v3895
  %v3897 = vmul.f32 %v3894, %v3896
  %v3898 = vadd.f32 %v3894, %v3897
  %vm3899 = vweird.f32 %v3878
  %vm3900 = vweird.f32 %v3894
  %vm3901 = vmor %vm3899, %vm3900
  %v3902 = vsel %vm3901, %v3894, %v3898
  %v3903 = vand.u32 2147483647, %v3878
  %vm3904 = vcmp.eq.f32.partialorder %v3903, 8.507059e+37
  %v3905 = vand.u32 %v3878, 2147483648
  %v3906 = vor.u32 1.1754944e-38, %v3905
  %v3907 = vsel %vm3904, %v3906, %v3902
  %v3908 = vmul.f32 1.0, %v3907
  %v3909 = vtanh.pop %v3829
  %v3910 = vtanh.pop %v3830
  %v3911 = vxor.u32 %v3831, 2147483648
  %v3912 = vxor.u32 %v3832, 2147483648
  %v3913 = vmul.f32 %v3911, 1.442695
  %v3914 = vpow.pop %v3913
  %v3915 = vmul.f32 %v3912, 1.442695
  %v3916 = vpow.pop %v3915
  %v3917 = vadd.f32 %v3914, 1.0
  %v3918 = vadd.f32 %v3916, 1.0
  %v3919 = vrcp.pop %v3917
  %v3920 = vmul.f32 %v3917, %v3919
  %v3921 = vsub.f32 1.0, %v3920
  %v3922 = vmul.f32 %v3919, %v3921
  %v3923 = vadd.f32 %v3919, %v3922
  %vm3924 = vweird.f32 %v3917
  %vm3925 = vweird.f32 %v3919
  %vm3926 = vmor %vm3924, %vm3925
  %v3927 = vsel %vm3926, %v3919, %v3923
  %v3928 = vand.u32 2147483647, %v3917
  %vm3929 = vcmp.eq.f32.partialorder %v3928, 8.507059e+37
  %v3930 = vand.u32 %v3917, 2147483648
  %v3931 = vor.u32 1.1754944e-38, %v3930
  %v3932 = vsel %vm3929, %v3931, %v3927
  %v3933 = vmul.f32 1.0, %v3932
  %v3934 = vrcp.pop %v3918
  %v3935 = vmul.f32 %v3918, %v3934
  %v3936 = vsub.f32 1.0, %v3935
  %v3937 = vmul.f32 %v3934, %v3936
  %v3938 = vadd.f32 %v3934, %v3937
  %vm3939 = vweird.f32 %v3918
  %vm3940 = vweird.f32 %v3934
  %vm3941 = vmor %vm3939, %vm3940
  %v3942 = vsel %vm3941, %v3934, %v3938
  %v3943 = vand.u32 2147483647, %v3918
  %vm3944 = vcmp.eq.f32.partialorder %v3943, 8.507059e+37
  %v3945 = vand.u32 %v3918, 2147483648
  %v3946 = vor.u32 1.1754944e-38, %v3945
  %v3947 = vsel %vm3944, %v3946, %v3942
  %v3948 = vmul.f32 1.0, %v3947
  %v3949 = vmul.f32 %v3893, %v3599
  %v3950 = vmul.f32 %v3908, %v3600
  %v3951 = vmul.f32 %v3855, %v3909
  %v3952 = vmul.f32 %v3870, %v3910
  %v3953 = vadd.f32 %v3949, %v3951
  %v3954 = vadd.f32 %v3950, %v3952
  %v3955 = vtanh.pop %v3953
  %v3956 = vtanh.pop %v3954
  %v3957 = vmul.f32 %v3933, %v3955
  %v3958 = vmul.f32 %v3948, %v3956
  %v3959 = vsel %vm656, 6, 1
  %v3960 = vsel %vm657, 6, 1
  %vm3961 = vcmp.lt.s32.totalorder %v3959, %v1684
  %vm3962 = vcmp.lt.s32.totalorder %v3960, %v1684
  %v3963 = vsel %vm3961, 1, 0
  %v3964 = vsel %vm3962, 1, 0
  %v3965 = vcvt.s32.f32 %v3963
  %v3966 = vcvt.s32.f32 %v3964
  %v3967 = vsub.f32 %v3953, %v3599
  %v3968 = vsub.f32 %v3954, %v3600
  %v3969 = vmul.f32 %v3965, %v3967
  %v3970 = vmul.f32 %v3966, %v3968
  %v3971 = vadd.f32 %v3599, %v3969
  %v3972 = vadd.f32 %v3600, %v3970
  %v3973 = vsub.f32 %v3957, %v3605
  %v3974 = vsub.f32 %v3958, %v3606
  %v3975 = vmul.f32 %v3965, %v3973
  %v3976 = vmul.f32 %v3966, %v3974
  %v3977 = vadd.f32 %v3605, %v3975
  %v3978 = vadd.f32 %v3606, %v3976
  %v3979 = vsel %vm682, %v666, %v658
  %v3980 = vsel %vm683, %v667, %v659
  %v3981 = vsel %vm684, %v668, %v660
  %v3982 = vsel %vm685, %v669, %v661
  %v3983 = vsel %vm686, %v670, %v662
  %v3984 = vsel %vm687, %v671, %v663
  %v3985 = vsel %vm688, %v672, %v664
  %v3986 = vsel %vm689, %v673, %v665
  %v3987 = vpack.c.bf16 %v3977, %v3977
  %v3988 = vpack.c.bf16 %v3978, %v3978
  %3989 = vmatpush.bf16.msra.mxu0 %v1138
  %3990 = vmatpush.bf16.msra.mxu0 %v1130
  %3991 = vmatpush.bf16.msra.mxu0 %v1122
  %3992 = vmatpush.bf16.msra.mxu0 %v1114
  %3993 = vmatpush.bf16.msra.mxu0 %v1106
  %3994 = vmatpush.bf16.msra.mxu0 %v1098
  %3995 = vmatpush.bf16.msra.mxu0 %v1090
  %3996 = vmatpush.bf16.msra.mxu0 %v1082
  %3997 = vmatmul.bf16.gmra.mxu0 %v3987
  %v3998 = vpop.f32.mrf.mxu0
  %v3999 = vadd.f32 0.0, %v3998
  %v4000 = vpop.f32.mrf.mxu0
  %4001 = vdwg.mxu0
  %4002 = vmatpush.bf16.msra.mxu0 %v1202
  %4003 = vmatpush.bf16.msra.mxu0 %v1194
  %4004 = vmatpush.bf16.msra.mxu0 %v1186
  %4005 = vmatpush.bf16.msra.mxu0 %v1178
  %4006 = vmatpush.bf16.msra.mxu0 %v1170
  %4007 = vmatpush.bf16.msra.mxu0 %v1162
  %4008 = vmatpush.bf16.msra.mxu0 %v1154
  %4009 = vmatpush.bf16.msra.mxu0 %v1146
  %4010 = vmatmul.bf16.gmra.mxu0 %v3988
  %v4011 = vpop.f32.mrf.mxu0
  %v4012 = vadd.f32 %v3999, %v4011
  %v4013 = vpop.f32.mrf.mxu0
  %4014 = vdwg.mxu0
  %4015 = vmatpush.bf16.msra.mxu0 %v1139
  %4016 = vmatpush.bf16.msra.mxu0 %v1131
  %4017 = vmatpush.bf16.msra.mxu0 %v1123
  %4018 = vmatpush.bf16.msra.mxu0 %v1115
  %4019 = vmatpush.bf16.msra.mxu0 %v1107
  %4020 = vmatpush.bf16.msra.mxu0 %v1099
  %4021 = vmatpush.bf16.msra.mxu0 %v1091
  %4022 = vmatpush.bf16.msra.mxu0 %v1083
  %4023 = vmatmul.bf16.gmra.mxu0 %v3987
  %v4024 = vpop.f32.mrf.mxu0
  %v4025 = vadd.f32 0.0, %v4024
  %v4026 = vpop.f32.mrf.mxu0
  %4027 = vdwg.mxu0
  %4028 = vmatpush.bf16.msra.mxu0 %v1203
  %4029 = vmatpush.bf16.msra.mxu0 %v1195
  %4030 = vmatpush.bf16.msra.mxu0 %v1187
  %4031 = vmatpush.bf16.msra.mxu0 %v1179
  %4032 = vmatpush.bf16.msra.mxu0 %v1171
  %4033 = vmatpush.bf16.msra.mxu0 %v1163
  %4034 = vmatpush.bf16.msra.mxu0 %v1155
  %4035 = vmatpush.bf16.msra.mxu0 %v1147
  %4036 = vmatmul.bf16.gmra.mxu0 %v3988
  %v4037 = vpop.f32.mrf.mxu0
  %v4038 = vadd.f32 %v4025, %v4037
  %v4039 = vpop.f32.mrf.mxu0
  %4040 = vdwg.mxu0
  %4041 = vmatpush.bf16.msra.mxu0 %v1140
  %4042 = vmatpush.bf16.msra.mxu0 %v1132
  %4043 = vmatpush.bf16.msra.mxu0 %v1124
  %4044 = vmatpush.bf16.msra.mxu0 %v1116
  %4045 = vmatpush.bf16.msra.mxu0 %v1108
  %4046 = vmatpush.bf16.msra.mxu0 %v1100
  %4047 = vmatpush.bf16.msra.mxu0 %v1092
  %4048 = vmatpush.bf16.msra.mxu0 %v1084
  %4049 = vmatmul.bf16.gmra.mxu0 %v3987
  %v4050 = vpop.f32.mrf.mxu0
  %v4051 = vadd.f32 0.0, %v4050
  %v4052 = vpop.f32.mrf.mxu0
  %4053 = vdwg.mxu0
  %4054 = vmatpush.bf16.msra.mxu0 %v1204
  %4055 = vmatpush.bf16.msra.mxu0 %v1196
  %4056 = vmatpush.bf16.msra.mxu0 %v1188
  %4057 = vmatpush.bf16.msra.mxu0 %v1180
  %4058 = vmatpush.bf16.msra.mxu0 %v1172
  %4059 = vmatpush.bf16.msra.mxu0 %v1164
  %4060 = vmatpush.bf16.msra.mxu0 %v1156
  %4061 = vmatpush.bf16.msra.mxu0 %v1148
  %4062 = vmatmul.bf16.gmra.mxu0 %v3988
  %v4063 = vpop.f32.mrf.mxu0
  %v4064 = vadd.f32 %v4051, %v4063
  %v4065 = vpop.f32.mrf.mxu0
  %4066 = vdwg.mxu0
  %4067 = vmatpush.bf16.msra.mxu0 %v1141
  %4068 = vmatpush.bf16.msra.mxu0 %v1133
  %4069 = vmatpush.bf16.msra.mxu0 %v1125
  %4070 = vmatpush.bf16.msra.mxu0 %v1117
  %4071 = vmatpush.bf16.msra.mxu0 %v1109
  %4072 = vmatpush.bf16.msra.mxu0 %v1101
  %4073 = vmatpush.bf16.msra.mxu0 %v1093
  %4074 = vmatpush.bf16.msra.mxu0 %v1085
  %4075 = vmatmul.bf16.gmra.mxu0 %v3987
  %v4076 = vpop.f32.mrf.mxu0
  %v4077 = vadd.f32 0.0, %v4076
  %v4078 = vpop.f32.mrf.mxu0
  %4079 = vdwg.mxu0
  %4080 = vmatpush.bf16.msra.mxu0 %v1205
  %4081 = vmatpush.bf16.msra.mxu0 %v1197
  %4082 = vmatpush.bf16.msra.mxu0 %v1189
  %4083 = vmatpush.bf16.msra.mxu0 %v1181
  %4084 = vmatpush.bf16.msra.mxu0 %v1173
  %4085 = vmatpush.bf16.msra.mxu0 %v1165
  %4086 = vmatpush.bf16.msra.mxu0 %v1157
  %4087 = vmatpush.bf16.msra.mxu0 %v1149
  %4088 = vmatmul.bf16.gmra.mxu0 %v3988
  %v4089 = vpop.f32.mrf.mxu0
  %v4090 = vadd.f32 %v4077, %v4089
  %v4091 = vpop.f32.mrf.mxu0
  %4092 = vdwg.mxu0
  %4093 = vmatpush.bf16.msra.mxu0 %v1142
  %4094 = vmatpush.bf16.msra.mxu0 %v1134
  %4095 = vmatpush.bf16.msra.mxu0 %v1126
  %4096 = vmatpush.bf16.msra.mxu0 %v1118
  %4097 = vmatpush.bf16.msra.mxu0 %v1110
  %4098 = vmatpush.bf16.msra.mxu0 %v1102
  %4099 = vmatpush.bf16.msra.mxu0 %v1094
  %4100 = vmatpush.bf16.msra.mxu0 %v1086
  %4101 = vmatmul.bf16.gmra.mxu0 %v3987
  %v4102 = vpop.f32.mrf.mxu0
  %v4103 = vadd.f32 0.0, %v4102
  %v4104 = vpop.f32.mrf.mxu0
  %4105 = vdwg.mxu0
  %4106 = vmatpush.bf16.msra.mxu0 %v1206
  %4107 = vmatpush.bf16.msra.mxu0 %v1198
  %4108 = vmatpush.bf16.msra.mxu0 %v1190
  %4109 = vmatpush.bf16.msra.mxu0 %v1182
  %4110 = vmatpush.bf16.msra.mxu0 %v1174
  %4111 = vmatpush.bf16.msra.mxu0 %v1166
  %4112 = vmatpush.bf16.msra.mxu0 %v1158
  %4113 = vmatpush.bf16.msra.mxu0 %v1150
  %4114 = vmatmul.bf16.gmra.mxu0 %v3988
  %v4115 = vpop.f32.mrf.mxu0
  %v4116 = vadd.f32 %v4103, %v4115
  %v4117 = vpop.f32.mrf.mxu0
  %4118 = vdwg.mxu0
  %4119 = vmatpush.bf16.msra.mxu0 %v1143
  %4120 = vmatpush.bf16.msra.mxu0 %v1135
  %4121 = vmatpush.bf16.msra.mxu0 %v1127
  %4122 = vmatpush.bf16.msra.mxu0 %v1119
  %4123 = vmatpush.bf16.msra.mxu0 %v1111
  %4124 = vmatpush.bf16.msra.mxu0 %v1103
  %4125 = vmatpush.bf16.msra.mxu0 %v1095
  %4126 = vmatpush.bf16.msra.mxu0 %v1087
  %4127 = vmatmul.bf16.gmra.mxu0 %v3987
  %v4128 = vpop.f32.mrf.mxu0
  %v4129 = vadd.f32 0.0, %v4128
  %v4130 = vpop.f32.mrf.mxu0
  %4131 = vdwg.mxu0
  %4132 = vmatpush.bf16.msra.mxu0 %v1207
  %4133 = vmatpush.bf16.msra.mxu0 %v1199
  %4134 = vmatpush.bf16.msra.mxu0 %v1191
  %4135 = vmatpush.bf16.msra.mxu0 %v1183
  %4136 = vmatpush.bf16.msra.mxu0 %v1175
  %4137 = vmatpush.bf16.msra.mxu0 %v1167
  %4138 = vmatpush.bf16.msra.mxu0 %v1159
  %4139 = vmatpush.bf16.msra.mxu0 %v1151
  %4140 = vmatmul.bf16.gmra.mxu0 %v3988
  %v4141 = vpop.f32.mrf.mxu0
  %v4142 = vadd.f32 %v4129, %v4141
  %v4143 = vpop.f32.mrf.mxu0
  %4144 = vdwg.mxu0
  %4145 = vmatpush.bf16.msra.mxu0 %v1144
  %4146 = vmatpush.bf16.msra.mxu0 %v1136
  %4147 = vmatpush.bf16.msra.mxu0 %v1128
  %4148 = vmatpush.bf16.msra.mxu0 %v1120
  %4149 = vmatpush.bf16.msra.mxu0 %v1112
  %4150 = vmatpush.bf16.msra.mxu0 %v1104
  %4151 = vmatpush.bf16.msra.mxu0 %v1096
  %4152 = vmatpush.bf16.msra.mxu0 %v1088
  %4153 = vmatmul.bf16.gmra.mxu0 %v3987
  %v4154 = vpop.f32.mrf.mxu0
  %v4155 = vadd.f32 0.0, %v4154
  %v4156 = vpop.f32.mrf.mxu0
  %4157 = vdwg.mxu0
  %4158 = vmatpush.bf16.msra.mxu0 %v1208
  %4159 = vmatpush.bf16.msra.mxu0 %v1200
  %4160 = vmatpush.bf16.msra.mxu0 %v1192
  %4161 = vmatpush.bf16.msra.mxu0 %v1184
  %4162 = vmatpush.bf16.msra.mxu0 %v1176
  %4163 = vmatpush.bf16.msra.mxu0 %v1168
  %4164 = vmatpush.bf16.msra.mxu0 %v1160
  %4165 = vmatpush.bf16.msra.mxu0 %v1152
  %4166 = vmatmul.bf16.gmra.mxu0 %v3988
  %v4167 = vpop.f32.mrf.mxu0
  %v4168 = vadd.f32 %v4155, %v4167
  %v4169 = vpop.f32.mrf.mxu0
  %4170 = vdwg.mxu0
  %4171 = vmatpush.bf16.msra.mxu0 %v1145
  %4172 = vmatpush.bf16.msra.mxu0 %v1137
  %4173 = vmatpush.bf16.msra.mxu0 %v1129
  %4174 = vmatpush.bf16.msra.mxu0 %v1121
  %4175 = vmatpush.bf16.msra.mxu0 %v1113
  %4176 = vmatpush.bf16.msra.mxu0 %v1105
  %4177 = vmatpush.bf16.msra.mxu0 %v1097
  %4178 = vmatpush.bf16.msra.mxu0 %v1089
  %4179 = vmatmul.bf16.gmra.mxu0 %v3987
  %v4180 = vpop.f32.mrf.mxu0
  %v4181 = vadd.f32 0.0, %v4180
  %v4182 = vpop.f32.mrf.mxu0
  %4183 = vdwg.mxu0
  %4184 = vmatpush.bf16.msra.mxu0 %v1209
  %4185 = vmatpush.bf16.msra.mxu0 %v1201
  %4186 = vmatpush.bf16.msra.mxu0 %v1193
  %4187 = vmatpush.bf16.msra.mxu0 %v1185
  %4188 = vmatpush.bf16.msra.mxu0 %v1177
  %4189 = vmatpush.bf16.msra.mxu0 %v1169
  %4190 = vmatpush.bf16.msra.mxu0 %v1161
  %4191 = vmatpush.bf16.msra.mxu0 %v1153
  %4192 = vmatmul.bf16.gmra.mxu0 %v3988
  %v4193 = vpop.f32.mrf.mxu0
  %v4194 = vadd.f32 %v4181, %v4193
  %v4195 = vpop.f32.mrf.mxu0
  %4196 = vdwg.mxu0
  %v4197 = vadd.f32 %v3979, %v4012
  %v4198 = vadd.f32 %v3980, %v4038
  %v4199 = vadd.f32 %v3981, %v4064
  %v4200 = vadd.f32 %v3982, %v4090
  %v4201 = vadd.f32 %v3983, %v4116
  %v4202 = vadd.f32 %v3984, %v4142
  %v4203 = vadd.f32 %v3985, %v4168
  %v4204 = vadd.f32 %v3986, %v4194
  %v4205 = vxor.u32 %v4197, 2147483648
  %v4206 = vxor.u32 %v4198, 2147483648
  %v4207 = vmul.f32 %v4205, 1.442695
  %v4208 = vpow.pop %v4207
  %v4209 = vmul.f32 %v4206, 1.442695
  %v4210 = vpow.pop %v4209
  %v4211 = vadd.f32 %v4208, 1.0
  %v4212 = vadd.f32 %v4210, 1.0
  %v4213 = vrcp.pop %v4211
  %v4214 = vmul.f32 %v4211, %v4213
  %v4215 = vsub.f32 1.0, %v4214
  %v4216 = vmul.f32 %v4213, %v4215
  %v4217 = vadd.f32 %v4213, %v4216
  %vm4218 = vweird.f32 %v4211
  %vm4219 = vweird.f32 %v4213
  %vm4220 = vmor %vm4218, %vm4219
  %v4221 = vsel %vm4220, %v4213, %v4217
  %v4222 = vand.u32 2147483647, %v4211
  %vm4223 = vcmp.eq.f32.partialorder %v4222, 8.507059e+37
  %v4224 = vand.u32 %v4211, 2147483648
  %v4225 = vor.u32 1.1754944e-38, %v4224
  %v4226 = vsel %vm4223, %v4225, %v4221
  %v4227 = vmul.f32 1.0, %v4226
  %v4228 = vrcp.pop %v4212
  %v4229 = vmul.f32 %v4212, %v4228
  %v4230 = vsub.f32 1.0, %v4229
  %v4231 = vmul.f32 %v4228, %v4230
  %v4232 = vadd.f32 %v4228, %v4231
  %vm4233 = vweird.f32 %v4212
  %vm4234 = vweird.f32 %v4228
  %vm4235 = vmor %vm4233, %vm4234
  %v4236 = vsel %vm4235, %v4228, %v4232
  %v4237 = vand.u32 2147483647, %v4212
  %vm4238 = vcmp.eq.f32.partialorder %v4237, 8.507059e+37
  %v4239 = vand.u32 %v4212, 2147483648
  %v4240 = vor.u32 1.1754944e-38, %v4239
  %v4241 = vsel %vm4238, %v4240, %v4236
  %v4242 = vmul.f32 1.0, %v4241
  %v4243 = vxor.u32 %v4199, 2147483648
  %v4244 = vxor.u32 %v4200, 2147483648
  %v4245 = vmul.f32 %v4243, 1.442695
  %v4246 = vpow.pop %v4245
  %v4247 = vmul.f32 %v4244, 1.442695
  %v4248 = vpow.pop %v4247
  %v4249 = vadd.f32 %v4246, 1.0
  %v4250 = vadd.f32 %v4248, 1.0
  %v4251 = vrcp.pop %v4249
  %v4252 = vmul.f32 %v4249, %v4251
  %v4253 = vsub.f32 1.0, %v4252
  %v4254 = vmul.f32 %v4251, %v4253
  %v4255 = vadd.f32 %v4251, %v4254
  %vm4256 = vweird.f32 %v4249
  %vm4257 = vweird.f32 %v4251
  %vm4258 = vmor %vm4256, %vm4257
  %v4259 = vsel %vm4258, %v4251, %v4255
  %v4260 = vand.u32 2147483647, %v4249
  %vm4261 = vcmp.eq.f32.partialorder %v4260, 8.507059e+37
  %v4262 = vand.u32 %v4249, 2147483648
  %v4263 = vor.u32 1.1754944e-38, %v4262
  %v4264 = vsel %vm4261, %v4263, %v4259
  %v4265 = vmul.f32 1.0, %v4264
  %v4266 = vrcp.pop %v4250
  %v4267 = vmul.f32 %v4250, %v4266
  %v4268 = vsub.f32 1.0, %v4267
  %v4269 = vmul.f32 %v4266, %v4268
  %v4270 = vadd.f32 %v4266, %v4269
  %vm4271 = vweird.f32 %v4250
  %vm4272 = vweird.f32 %v4266
  %vm4273 = vmor %vm4271, %vm4272
  %v4274 = vsel %vm4273, %v4266, %v4270
  %v4275 = vand.u32 2147483647, %v4250
  %vm4276 = vcmp.eq.f32.partialorder %v4275, 8.507059e+37
  %v4277 = vand.u32 %v4250, 2147483648
  %v4278 = vor.u32 1.1754944e-38, %v4277
  %v4279 = vsel %vm4276, %v4278, %v4274
  %v4280 = vmul.f32 1.0, %v4279
  %v4281 = vtanh.pop %v4201
  %v4282 = vtanh.pop %v4202
  %v4283 = vxor.u32 %v4203, 2147483648
  %v4284 = vxor.u32 %v4204, 2147483648
  %v4285 = vmul.f32 %v4283, 1.442695
  %v4286 = vpow.pop %v4285
  %v4287 = vmul.f32 %v4284, 1.442695
  %v4288 = vpow.pop %v4287
  %v4289 = vadd.f32 %v4286, 1.0
  %v4290 = vadd.f32 %v4288, 1.0
  %v4291 = vrcp.pop %v4289
  %v4292 = vmul.f32 %v4289, %v4291
  %v4293 = vsub.f32 1.0, %v4292
  %v4294 = vmul.f32 %v4291, %v4293
  %v4295 = vadd.f32 %v4291, %v4294
  %vm4296 = vweird.f32 %v4289
  %vm4297 = vweird.f32 %v4291
  %vm4298 = vmor %vm4296, %vm4297
  %v4299 = vsel %vm4298, %v4291, %v4295
  %v4300 = vand.u32 2147483647, %v4289
  %vm4301 = vcmp.eq.f32.partialorder %v4300, 8.507059e+37
  %v4302 = vand.u32 %v4289, 2147483648
  %v4303 = vor.u32 1.1754944e-38, %v4302
  %v4304 = vsel %vm4301, %v4303, %v4299
  %v4305 = vmul.f32 1.0, %v4304
  %v4306 = vrcp.pop %v4290
  %v4307 = vmul.f32 %v4290, %v4306
  %v4308 = vsub.f32 1.0, %v4307
  %v4309 = vmul.f32 %v4306, %v4308
  %v4310 = vadd.f32 %v4306, %v4309
  %vm4311 = vweird.f32 %v4290
  %vm4312 = vweird.f32 %v4306
  %vm4313 = vmor %vm4311, %vm4312
  %v4314 = vsel %vm4313, %v4306, %v4310
  %v4315 = vand.u32 2147483647, %v4290
  %vm4316 = vcmp.eq.f32.partialorder %v4315, 8.507059e+37
  %v4317 = vand.u32 %v4290, 2147483648
  %v4318 = vor.u32 1.1754944e-38, %v4317
  %v4319 = vsel %vm4316, %v4318, %v4314
  %v4320 = vmul.f32 1.0, %v4319
  %v4321 = vmul.f32 %v4265, %v3971
  %v4322 = vmul.f32 %v4280, %v3972
  %v4323 = vmul.f32 %v4227, %v4281
  %v4324 = vmul.f32 %v4242, %v4282
  %v4325 = vadd.f32 %v4321, %v4323
  %v4326 = vadd.f32 %v4322, %v4324
  %v4327 = vtanh.pop %v4325
  %v4328 = vtanh.pop %v4326
  %v4329 = vmul.f32 %v4305, %v4327
  %v4330 = vmul.f32 %v4320, %v4328
  %v4331 = vsel %vm656, 7, 0
  %v4332 = vsel %vm657, 7, 0
  %vm4333 = vcmp.lt.s32.totalorder %v4331, %v1684
  %vm4334 = vcmp.lt.s32.totalorder %v4332, %v1684
  %v4335 = vsel %vm4333, 1, 0
  %v4336 = vsel %vm4334, 1, 0
  %v4337 = vcvt.s32.f32 %v4335
  %v4338 = vcvt.s32.f32 %v4336
  %v4339 = vsub.f32 %v4329, %v3977
  %v4340 = vsub.f32 %v4330, %v3978
  %v4341 = vmul.f32 %v4337, %v4339
  %v4342 = vmul.f32 %v4338, %v4340
  %v4343 = vadd.f32 %v3977, %v4341
  %v4344 = vadd.f32 %v3978, %v4342
  %v4345 = vld [vmem:[%s5] sm:$0xff]
  %v4346 = vld [vmem:[%s5 + $0x8] sm:$0xff]
  %v4347 = vld [vmem:[%s5 + $0x10] sm:$0xff]
  %v4348 = vld [vmem:[%s5 + $0x18] sm:$0xff]
  %v4349 = vld [vmem:[%s5 + $0x20] sm:$0xff]
  %v4350 = vld [vmem:[%s5 + $0x28] sm:$0xff]
  %v4351 = vld [vmem:[%s5 + $0x30] sm:$0xff]
  %v4352 = vld [vmem:[%s5 + $0x38] sm:$0xff]
  %v4353 = vld [vmem:[%s5 + $0x40] sm:$0xff]
  %v4354 = vld [vmem:[%s5 + $0x48] sm:$0xff]
  %v4355 = vld [vmem:[%s5 + $0x50] sm:$0xff]
  %v4356 = vld [vmem:[%s5 + $0x58] sm:$0xff]
  %v4357 = vld [vmem:[%s5 + $0x60] sm:$0xff]
  %v4358 = vld [vmem:[%s5 + $0x68] sm:$0xff]
  %v4359 = vld [vmem:[%s5 + $0x70] sm:$0xff]
  %v4360 = vld [vmem:[%s5 + $0x78] sm:$0xff]
  %v4361 = vld [vmem:[%s5 + $0x80] sm:$0xff]
  %v4362 = vld [vmem:[%s5 + $0x88] sm:$0xff]
  %v4363 = vld [vmem:[%s5 + $0x90] sm:$0xff]
  %v4364 = vld [vmem:[%s5 + $0x98] sm:$0xff]
  %v4365 = vld [vmem:[%s5 + $0xa0] sm:$0xff]
  %v4366 = vld [vmem:[%s5 + $0xa8] sm:$0xff]
  %v4367 = vld [vmem:[%s5 + $0xb0] sm:$0xff]
  %v4368 = vld [vmem:[%s5 + $0xb8] sm:$0xff]
  %v4369 = vld [vmem:[%s5 + $0xc0] sm:$0xff]
  %v4370 = vld [vmem:[%s5 + $0xc8] sm:$0xff]
  %v4371 = vld [vmem:[%s5 + $0xd0] sm:$0xff]
  %v4372 = vld [vmem:[%s5 + $0xd8] sm:$0xff]
  %v4373 = vld [vmem:[%s5 + $0xe0] sm:$0xff]
  %v4374 = vld [vmem:[%s5 + $0xe8] sm:$0xff]
  %v4375 = vld [vmem:[%s5 + $0xf0] sm:$0xff]
  %v4376 = vld [vmem:[%s5 + $0xf8] sm:$0xff]
  %v4377 = vld [vmem:[%s6] sm:$0x1]
  %v4379 = vperm.slane %v4377, 0
  %4381 = vmatpush.msra.mxu0 %v4360
  %4382 = vmatpush.msra.mxu0 %v4359
  %4383 = vmatpush.msra.mxu0 %v4358
  %4384 = vmatpush.msra.mxu0 %v4357
  %4385 = vmatpush.msra.mxu0 %v4356
  %4386 = vmatpush.msra.mxu0 %v4355
  %4387 = vmatpush.msra.mxu0 %v4354
  %4388 = vmatpush.msra.mxu0 %v4353
  %4389 = vmatpush.msra.mxu0 %v4352
  %4390 = vmatpush.msra.mxu0 %v4351
  %4391 = vmatpush.msra.mxu0 %v4350
  %4392 = vmatpush.msra.mxu0 %v4349
  %4393 = vmatpush.msra.mxu0 %v4348
  %4394 = vmatpush.msra.mxu0 %v4347
  %4395 = vmatpush.msra.mxu0 %v4346
  %4396 = vmatpush.msra.mxu0 %v4345
  %4397 = vmatmul.f32.gmra.mxu0 %v4343
  %v4398 = vpop.f32.mrf.mxu0
  %v4399 = vadd.f32 %v4379, %v4398
  %4400 = vdwg.mxu0
  %4401 = vmatpush.msra.mxu0 %v4376
  %4402 = vmatpush.msra.mxu0 %v4375
  %4403 = vmatpush.msra.mxu0 %v4374
  %4404 = vmatpush.msra.mxu0 %v4373
  %4405 = vmatpush.msra.mxu0 %v4372
  %4406 = vmatpush.msra.mxu0 %v4371
  %4407 = vmatpush.msra.mxu0 %v4370
  %4408 = vmatpush.msra.mxu0 %v4369
  %4409 = vmatpush.msra.mxu0 %v4368
  %4410 = vmatpush.msra.mxu0 %v4367
  %4411 = vmatpush.msra.mxu0 %v4366
  %4412 = vmatpush.msra.mxu0 %v4365
  %4413 = vmatpush.msra.mxu0 %v4364
  %4414 = vmatpush.msra.mxu0 %v4363
  %4415 = vmatpush.msra.mxu0 %v4362
  %4416 = vmatpush.msra.mxu0 %v4361
  %4417 = vmatmul.f32.gmra.mxu0 %v4344
  %v4418 = vpop.f32.mrf.mxu0
  %v4419 = vadd.f32 %v4399, %v4418
  %4420 = vdwg.mxu0
  %v4421 = vmax.f32 %v4419, 0.0
  %vm4422 = vcmask 130048
  %4423 = vst.msk [vmem:[%s7] sm:$0xff] %vm4422, %v4421
  // Predicated region
  $region30: #{ball_to_ball_forward.1} parent=0 // pred_check
    _
  $region31: #{ball_to_ball_forward.1} parent=0 // pred_check_branch
    %4425 = sbr.rel (0) target = $region33
  $region32: #{ball_to_ball_forward.1} parent=0 // pred_region
    _
  $region33: #{ball_to_ball_forward.1} parent=0 // pred_fallthru
    _
  // Predicated region
  $region34: #{ball_to_ball_forward.1} parent=0 // pred_check
    _
  $region35: #{ball_to_ball_forward.1} parent=0 // pred_check_branch
    %4427 = sbr.rel (0) target = $region37
  $region36: #{ball_to_ball_forward.1} parent=0 // pred_region
    _
  $region37: #{ball_to_ball_forward.1} parent=0 // pred_fallthru
    _

</llo_original>
